<compile_context>
chip_gen: v6e
topology: v6e:2x2x1
jax: 0.10.0
libtpu: 0.0.40
codegen_flags: <defaults>
</compile_context>

<pallas_src>
import functools

import jax
import jax.numpy as jnp
import numpy as np
from jax.experimental import pallas as pl
from jax.experimental.pallas import tpu as pltpu

EPS = 1e-5  # nn.BatchNorm1d default eps


# --------------------------------------------------------------------------
# In-kernel helpers
# --------------------------------------------------------------------------
def _segment_masks(L, TL, K, pad):
    """Validity masks for each nonzero tap offset (built once, reused)."""
    pos = jax.lax.broadcasted_iota(jnp.int32, (1, TL), 1) % L
    masks = {}
    for t in range(K):
        off = t - pad
        if off != 0:
            masks[off] = jnp.logical_and(pos + off >= 0, pos + off < L)
    return masks


def _fused_dwpw_conv(h, w_ref, masks, pad):
    """Depthwise-separable conv as K folded-weight MXU matmuls.

    h:      (C_in, TL) activation (matmul operand dtype, e.g. bf16 or f32)
    w_ref:  (K, C_out, C_in) folded weights  W[t] = W_pw * w_dw[:, t]
    Result: (C_out, TL) float32 accumulator.
    """
    K = w_ref.shape[0]
    TL = h.shape[1]
    acc = None
    for t in range(K):
        off = t - pad
        if off == 0:
            tap = h
        else:
            shifted = pltpu.roll(h, (-off) % TL, axis=1)      # XLU lane rotate
            tap = jnp.where(masks[off], shifted, jnp.zeros_like(shifted))
        term = jnp.dot(w_ref[t], tap, preferred_element_type=jnp.float32)
        acc = term if acc is None else acc + term
    return acc


# --------------------------------------------------------------------------
# Kernels (one per pass)
# --------------------------------------------------------------------------
def _stats1_kernel(x_ref, w1_ref, s_ref, ss_ref, *, L):
    K = w1_ref.shape[0]
    pad = K // 2
    TL = x_ref.shape[1]
    masks = _segment_masks(L, TL, K, pad)

    h1 = _fused_dwpw_conv(x_ref[...], w1_ref, masks, pad)       # f32 (C_out, TL)
    s_ref[...] = jnp.sum(h1, axis=1, keepdims=True)[None]
    ss_ref[...] = jnp.sum(h1 * h1, axis=1, keepdims=True)[None]


def _stats2_kernel(x_ref, w1_ref, w2_ref, a1_ref, b1_ref, s_ref, ss_ref, *, L):
    K = w1_ref.shape[0]
    pad = K // 2
    TL = x_ref.shape[1]
    cdt = x_ref.dtype
    masks = _segment_masks(L, TL, K, pad)

    h1 = _fused_dwpw_conv(x_ref[...], w1_ref, masks, pad)
    c1 = jnp.maximum(h1 * a1_ref[...] + b1_ref[...], 0.0).astype(cdt)
    h2 = _fused_dwpw_conv(c1, w2_ref, masks, pad)
    s_ref[...] = jnp.sum(h2, axis=1, keepdims=True)[None]
    ss_ref[...] = jnp.sum(h2 * h2, axis=1, keepdims=True)[None]


def _final_kernel(x_ref, w1_ref, w2_ref, wx_ref, bx_ref,
                  a1_ref, b1_ref, a2_ref, b2_ref, out_ref, *, L):
    K = w1_ref.shape[0]
    pad = K // 2
    TL = x_ref.shape[1]
    cdt = x_ref.dtype
    masks = _segment_masks(L, TL, K, pad)

    x = x_ref[...]
    h1 = _fused_dwpw_conv(x, w1_ref, masks, pad)
    c1 = jnp.maximum(h1 * a1_ref[...] + b1_ref[...], 0.0).astype(cdt)
    h2 = _fused_dwpw_conv(c1, w2_ref, masks, pad)
    c2 = h2 * a2_ref[...] + b2_ref[...]

    sc = jnp.dot(wx_ref[...], x, preferred_element_type=jnp.float32)
    sc = sc + bx_ref[...]
    out_ref[...] = jnp.maximum(c2 + sc, 0.0).astype(out_ref.dtype)


# --------------------------------------------------------------------------
# Wrapper-side helpers
# --------------------------------------------------------------------------
def _choose_batch_tile(N, L, max_lanes):
    """Largest batch-aligned tile (tb*L lanes) that is 128-lane aligned and
    fits the lane budget; fall back to the full array (always legal)."""
    aligned = [tb for tb in range(1, N + 1) if N % tb == 0 and (tb * L) % 128 == 0]
    if not aligned:
        return N
    within = [tb for tb in aligned if tb * L <= max_lanes]
    return max(within) if within else min(aligned)


def _vmem_limit_bytes():
    """Generation-aware VMEM budget (leave headroom below physical)."""
    try:
        cap = pltpu.get_tpu_info().vmem_capacity_bytes
    except Exception:
        cap = 64 << 20
    return min(int(cap * 3 // 4), 100 << 20)


def _bn_affine(s_tiles, ss_tiles, gamma, beta, count):
    """Reduce per-tile partial sums -> per-channel BN scale/shift (f32)."""
    s = jnp.sum(s_tiles, axis=0)                       # (C_out, 1)
    ss = jnp.sum(ss_tiles, axis=0)                     # (C_out, 1)
    mean = s / count
    var = jnp.maximum(ss / count - mean * mean, 0.0)   # clamp vs. cancellation
    scale = gamma * jax.lax.rsqrt(var + EPS)
    shift = beta - mean * scale
    return scale, shift


def _fold_weights(params, compute_dtype):
    """Fold depthwise taps into the pointwise matrices: W[t] = W_pw * w_dw[:,t]."""
    pw1 = params["pw1_w"][:, :, 0].astype(jnp.float32)      # (C_out, C_in)
    dw1 = params["dw1_w"][:, 0, :].astype(jnp.float32)      # (C_in, K)
    W1 = (pw1[None, :, :] * dw1.T[:, None, :]).astype(compute_dtype)  # (K,Co,Ci)

    pw2 = params["pw2_w"][:, :, 0].astype(jnp.float32)      # (C_out, C_out)
    dw2 = params["dw2_w"][:, 0, :].astype(jnp.float32)      # (C_out, K)
    W2 = (pw2[None, :, :] * dw2.T[:, None, :]).astype(compute_dtype)

    Wx = params["xx_w"][:, :, 0].astype(compute_dtype)      # (C_out, C_in)
    bx = params["xx_b"].reshape(-1, 1).astype(jnp.float32)  # (C_out, 1)
    return W1, W2, Wx, bx


def stack_conv_block_flat(x_flat, params, *, N, L, kernel_size, stride=1,
                          compute_dtype=jnp.float32, max_tile_lanes=8192):
    """StackConvBlock forward on the flat (C_in, N*L) layout -> (C_out, N*L)."""
    assert stride == 1, "residual add only shape-consistent for stride=1"
    C_in, NL = x_flat.shape
    assert NL == N * L
    K = kernel_size
    C_out = params["pw1_w"].shape[0]

    TB = _choose_batch_tile(N, L, max_tile_lanes)
    TL = TB * L
    num_tiles = N // TB

    x_c = x_flat.astype(compute_dtype)
    W1, W2, Wx, bx = _fold_weights(params, compute_dtype)

    def col(v):
        return v.reshape(-1, 1).astype(jnp.float32)

    g1, bt1 = col(params["bn1_g"]), col(params["bn1_b"])
    g2, bt2 = col(params["bn2_g"]), col(params["bn2_b"])

    cp = pltpu.CompilerParams(dimension_semantics=("parallel",),
                              vmem_limit_bytes=_vmem_limit_bytes())

    x_spec = pl.BlockSpec((C_in, TL), lambda i: (0, i))
    full = lambda a: pl.BlockSpec(a.shape, lambda i, _nd=a.ndim: (0,) * _nd)
    stat_spec = pl.BlockSpec((1, C_out, 1), lambda i: (i, 0, 0))
    stat_shape = jax.ShapeDtypeStruct((num_tiles, C_out, 1), jnp.float32)

    # ---- pass 1: BN1 partial statistics -----------------------------------
    s1, ss1 = pl.pallas_call(
        functools.partial(_stats1_kernel, L=L),
        grid=(num_tiles,),
        in_specs=[x_spec, full(W1)],
        out_specs=(stat_spec, stat_spec),
        out_shape=(stat_shape, stat_shape),
        compiler_params=cp,
    )(x_c, W1)
    a1, b1 = _bn_affine(s1, ss1, g1, bt1, float(NL))

    # ---- pass 2: BN2 partial statistics ------------------------------------
    s2, ss2 = pl.pallas_call(
        functools.partial(_stats2_kernel, L=L),
        grid=(num_tiles,),
        in_specs=[x_spec, full(W1), full(W2), full(a1), full(b1)],
        out_specs=(stat_spec, stat_spec),
        out_shape=(stat_shape, stat_shape),
        compiler_params=cp,
    )(x_c, W1, W2, a1, b1)
    a2, b2 = _bn_affine(s2, ss2, g2, bt2, float(NL))

    # ---- pass 3: normalize + shortcut + residual + relu ---------------------
    y_flat = pl.pallas_call(
        functools.partial(_final_kernel, L=L),
        grid=(num_tiles,),
        in_specs=[x_spec, full(W1), full(W2), full(Wx), full(bx),
                  full(a1), full(b1), full(a2), full(b2)],
        out_specs=pl.BlockSpec((C_out, TL), lambda i: (0, i)),
        out_shape=jax.ShapeDtypeStruct((C_out, NL), jnp.float32),
        compiler_params=cp,
    )(x_c, W1, W2, Wx, bx, a1, b1, a2, b2)
    return y_flat


def stack_conv_block(x, params, *, kernel_size, stride=1,
                     compute_dtype=jnp.float32, max_tile_lanes=8192):
    """PyTorch-layout (N, C, L) adapter around the flat-layout implementation.

    NOTE: when chaining several StackConvBlocks, keep activations in the
    (C, N*L) layout and call `stack_conv_block_flat` directly — the transposes
    here are only needed to match the standalone PyTorch interface.
    """
    N, C_in, L = x.shape
    x_flat = jnp.transpose(x, (1, 0, 2)).reshape(C_in, N * L)
    y_flat = stack_conv_block_flat(
        x_flat, params, N=N, L=L, kernel_size=kernel_size, stride=stride,
        compute_dtype=compute_dtype, max_tile_lanes=max_tile_lanes)
    C_out = y_flat.shape[0]
    return jnp.transpose(y_flat.reshape(C_out, N, L), (1, 0, 2))


# --------------------------------------------------------------------------
# Pure-JAX reference (matches PyTorch training-mode semantics exactly)
# --------------------------------------------------------------------------
def reference(x, params, *, kernel_size, stride=1):
    pad = kernel_size // 2

    def conv1d(x, w, b, pad, groups=1, stride=1):
        y = jax.lax.conv_general_dilated(
            x, w, window_strides=(stride,), padding=[(pad, pad)],
            dimension_numbers=("NCH", "OIH", "NCH"),
            feature_group_count=groups)
        return y + b[None, :, None]

    def bn(x, g, bt):
        m = jnp.mean(x, axis=(0, 2), keepdims=True)
        v = jnp.mean((x - m) ** 2, axis=(0, 2), keepdims=True)
        return g[None, :, None] * (x - m) / jnp.sqrt(v + EPS) + bt[None, :, None]

    C_in = x.shape[1]
    h = conv1d(x, params["dw1_w"], params["dw1_b"], pad, groups=C_in, stride=stride)
    h = conv1d(h, params["pw1_w"], params["pw1_b"], 0)
    c1 = jax.nn.relu(bn(h, params["bn1_g"], params["bn1_b"]))
    h = conv1d(c1, params["dw2_w"], params["dw2_b"], pad,
               groups=h.shape[1], stride=stride)
    h = conv1d(h, params["pw2_w"], params["pw2_b"], 0)
    c2 = bn(h, params["bn2_g"], params["bn2_b"])
    sc = conv1d(x, params["xx_w"], params["xx_b"], 0, stride=stride)
    return jax.nn.relu(c2 + sc)


def init_params(key, C_in, C_out, K):
    ks = jax.random.split(key, 16)
    return {
        "dw1_w": 0.3 * jax.random.normal(ks[0], (C_in, 1, K), jnp.float32),
        "dw1_b": 0.1 * jax.random.normal(ks[1], (C_in,), jnp.float32),
        "pw1_w": 0.3 * jax.random.normal(ks[2], (C_out, C_in, 1), jnp.float32),
        "pw1_b": 0.1 * jax.random.normal(ks[3], (C_out,), jnp.float32),
        "bn1_g": 1.0 + 0.1 * jax.random.normal(ks[4], (C_out,), jnp.float32),
        "bn1_b": 0.1 * jax.random.normal(ks[5], (C_out,), jnp.float32),
        "dw2_w": 0.3 * jax.random.normal(ks[6], (C_out, 1, K), jnp.float32),
        "dw2_b": 0.1 * jax.random.normal(ks[7], (C_out,), jnp.float32),
        "pw2_w": 0.3 * jax.random.normal(ks[8], (C_out, C_out, 1), jnp.float32),
        "pw2_b": 0.1 * jax.random.normal(ks[9], (C_out,), jnp.float32),
        "bn2_g": 1.0 + 0.1 * jax.random.normal(ks[10], (C_out,), jnp.float32),
        "bn2_b": 0.1 * jax.random.normal(ks[11], (C_out,), jnp.float32),
        "xx_w": 0.3 * jax.random.normal(ks[12], (C_out, C_in, 1), jnp.float32),
        "xx_b": 0.1 * jax.random.normal(ks[13], (C_out,), jnp.float32),
    }


if __name__ == "__main__":
    N, C_in, C_out, L, K = 4, 4, 8, 128, 3

    key = jax.random.PRNGKey(0)
    kx, kp = jax.random.split(key)
    x = jax.random.normal(kx, (N, C_in, L), jnp.float32)
    params = init_params(kp, C_in, C_out, K)

    y_ref = jax.block_until_ready(reference(x, params, kernel_size=K, stride=1))

    # f32 path (tight semantic check); max_tile_lanes=256 forces a 2-tile grid
    # so the tiled / multi-pass BN path is actually exercised at small shapes.
    fwd_f32 = jax.jit(functools.partial(
        stack_conv_block, kernel_size=K, stride=1,
        compute_dtype=jnp.float32, max_tile_lanes=256))
    y32 = jax.block_until_ready(fwd_f32(x, params))
    np.testing.assert_allclose(np.asarray(y32), np.asarray(y_ref),
                               rtol=1e-3, atol=1e-3)

    # bf16 fast path (halved HBM/VMEM traffic, bf16 MXU operands, f32 accum).
    fwd_bf16 = jax.jit(functools.partial(
        stack_conv_block, kernel_size=K, stride=1,
        compute_dtype=jnp.bfloat16, max_tile_lanes=256))
    y16 = jax.block_until_ready(fwd_bf16(x, params))
    np.testing.assert_allclose(np.asarray(y16), np.asarray(y_ref),
                               rtol=5e-2, atol=5e-2)

    print("KERNEL_OK")
</pallas_src>

<mosaic_0001>
module attributes {stable_mosaic.version = 11 : i64} {
  func.func @_stats1_kernel(%arg0: i32, %arg1: memref<4x256xf32, #tpu.memory_space<vmem>>, %arg2: memref<3x8x4xf32, #tpu.memory_space<vmem>>, %arg3: memref<1x8x1xf32, #tpu.memory_space<vmem>>, %arg4: memref<1x8x1xf32, #tpu.memory_space<vmem>>) attributes {dimension_semantics = [#tpu.dimension_semantics<parallel>], iteration_bounds = array<i64: 2>, scalar_prefetch = 0 : i64, scratch_operands = 0 : i64, tpu.core_type = #tpu.core_type<tc>, window_params = [{transform_indices = @transform_0, window_bounds = array<i64: 4, 256>}, {pipeline_mode = #tpu.pipeline_mode<synchronous>, transform_indices = @transform_1, window_bounds = array<i64: 3, 8, 4>}, {transform_indices = @transform_2, window_bounds = array<i64: 1, 8, 1>}, {transform_indices = @transform_3, window_bounds = array<i64: 1, 8, 1>}]} {
    %0 = tpu.iota {dimensions = array<i32: 1>} : vector<1x256xi32>
    %c128_i32 = arith.constant 128 : i32
    %c0_i32 = arith.constant 0 : i32
    %1 = arith.cmpi eq, %c128_i32, %c0_i32 : i32
    %c1_i32 = arith.constant 1 : i32
    %2 = arith.select %1, %c1_i32, %c128_i32 : i32
    %3 = vector.broadcast %2 : i32 to vector<1x256xi32>
    %4 = arith.remsi %0, %3 : vector<1x256xi32>
    %c0_i32_0 = arith.constant 0 : i32
    %5 = vector.broadcast %c0_i32_0 : i32 to vector<1x256xi32>
    %6 = arith.cmpi ne, %4, %5 : vector<1x256xi32>
    %c0_i32_1 = arith.constant 0 : i32
    %7 = vector.broadcast %c0_i32_1 : i32 to vector<1x256xi32>
    %8 = arith.cmpi slt, %4, %7 : vector<1x256xi32>
    %c0_i32_2 = arith.constant 0 : i32
    %9 = arith.cmpi slt, %2, %c0_i32_2 : i32
    %10 = vector.broadcast %9 : i1 to vector<1x256xi1>
    %11 = vector.broadcast %10 : vector<1x256xi1> to vector<1x256xi1>
    %12 = arith.xori %8, %11 : vector<1x256xi1>
    %13 = arith.andi %12, %6 : vector<1x256xi1>
    %14 = vector.broadcast %2 : i32 to vector<1x256xi32>
    %15 = arith.addi %4, %14 : vector<1x256xi32>
    %16 = arith.select %13, %15, %4 : vector<1x256xi1>, vector<1x256xi32>
    %c-1_i32 = arith.constant -1 : i32
    %17 = vector.broadcast %c-1_i32 : i32 to vector<1x256xi32>
    %18 = arith.addi %16, %17 : vector<1x256xi32>
    %c0_i32_3 = arith.constant 0 : i32
    %19 = vector.broadcast %c0_i32_3 : i32 to vector<1x256xi32>
    %20 = arith.cmpi sge, %18, %19 : vector<1x256xi32>
    %c-1_i32_4 = arith.constant -1 : i32
    %21 = vector.broadcast %c-1_i32_4 : i32 to vector<1x256xi32>
    %22 = arith.addi %16, %21 : vector<1x256xi32>
    %c128_i32_5 = arith.constant 128 : i32
    %23 = vector.broadcast %c128_i32_5 : i32 to vector<1x256xi32>
    %24 = arith.cmpi slt, %22, %23 : vector<1x256xi32>
    %25 = arith.andi %20, %24 : vector<1x256xi1>
    %c1_i32_6 = arith.constant 1 : i32
    %26 = vector.broadcast %c1_i32_6 : i32 to vector<1x256xi32>
    %27 = arith.addi %16, %26 : vector<1x256xi32>
    %c0_i32_7 = arith.constant 0 : i32
    %28 = vector.broadcast %c0_i32_7 : i32 to vector<1x256xi32>
    %29 = arith.cmpi sge, %27, %28 : vector<1x256xi32>
    %c1_i32_8 = arith.constant 1 : i32
    %30 = vector.broadcast %c1_i32_8 : i32 to vector<1x256xi32>
    %31 = arith.addi %16, %30 : vector<1x256xi32>
    %c128_i32_9 = arith.constant 128 : i32
    %32 = vector.broadcast %c128_i32_9 : i32 to vector<1x256xi32>
    %33 = arith.cmpi slt, %31, %32 : vector<1x256xi32>
    %34 = arith.andi %29, %33 : vector<1x256xi1>
    %c0 = arith.constant 0 : index
    %c0_10 = arith.constant 0 : index
    %35 = vector.load %arg1[%c0, %c0_10] : memref<4x256xf32, #tpu.memory_space<vmem>>, vector<4x256xf32>
    %c1_i32_11 = arith.constant 1 : i32
    %36 = tpu.dynamic_rotate %35 by %c1_i32_11 dim 1 : vector<4x256xf32>, i32 -> vector<4x256xf32>
    %cst = arith.constant 0.000000e+00 : f32
    %37 = vector.broadcast %cst : f32 to vector<4x256xf32>
    %38 = vector.shape_cast %25 : vector<1x256xi1> to vector<1x256xi1>
    %39 = vector.broadcast %38 : vector<1x256xi1> to vector<4x256xi1>
    %40 = arith.select %39, %36, %37 : vector<4x256xi1>, vector<4x256xf32>
    %c0_12 = arith.constant 0 : index
    %c0_13 = arith.constant 0 : index
    %c0_14 = arith.constant 0 : index
    %41 = vector.load %arg2[%c0_12, %c0_13, %c0_14] : memref<3x8x4xf32, #tpu.memory_space<vmem>>, vector<1x8x4xf32>
    %42 = vector.shape_cast %41 : vector<1x8x4xf32> to vector<8x4xf32>
    %cst_15 = arith.constant dense<0.000000e+00> : vector<8x256xf32>
    %43 = tpu.matmul %42, %40, %cst_15 {dimension_numbers = #tpu.dot_dimension_numbers<[1], [0], [0], [1], [0, 0, 1, 1], [], []>} : vector<8x4xf32>, vector<4x256xf32>, vector<8x256xf32> -> vector<8x256xf32>
    %c1 = arith.constant 1 : index
    %c0_16 = arith.constant 0 : index
    %c0_17 = arith.constant 0 : index
    %44 = vector.load %arg2[%c1, %c0_16, %c0_17] : memref<3x8x4xf32, #tpu.memory_space<vmem>>, vector<1x8x4xf32>
    %45 = vector.shape_cast %44 : vector<1x8x4xf32> to vector<8x4xf32>
    %cst_18 = arith.constant dense<0.000000e+00> : vector<8x256xf32>
    %46 = tpu.matmul %45, %35, %cst_18 {dimension_numbers = #tpu.dot_dimension_numbers<[1], [0], [0], [1], [0, 0, 1, 1], [], []>} : vector<8x4xf32>, vector<4x256xf32>, vector<8x256xf32> -> vector<8x256xf32>
    %47 = arith.addf %43, %46 : vector<8x256xf32>
    %c255_i32 = arith.constant 255 : i32
    %48 = tpu.dynamic_rotate %35 by %c255_i32 dim 1 : vector<4x256xf32>, i32 -> vector<4x256xf32>
    %cst_19 = arith.constant 0.000000e+00 : f32
    %49 = vector.broadcast %cst_19 : f32 to vector<4x256xf32>
    %50 = vector.shape_cast %34 : vector<1x256xi1> to vector<1x256xi1>
    %51 = vector.broadcast %50 : vector<1x256xi1> to vector<4x256xi1>
    %52 = arith.select %51, %48, %49 : vector<4x256xi1>, vector<4x256xf32>
    %c2 = arith.constant 2 : index
    %c0_20 = arith.constant 0 : index
    %c0_21 = arith.constant 0 : index
    %53 = vector.load %arg2[%c2, %c0_20, %c0_21] : memref<3x8x4xf32, #tpu.memory_space<vmem>>, vector<1x8x4xf32>
    %54 = vector.shape_cast %53 : vector<1x8x4xf32> to vector<8x4xf32>
    %cst_22 = arith.constant dense<0.000000e+00> : vector<8x256xf32>
    %55 = tpu.matmul %54, %52, %cst_22 {dimension_numbers = #tpu.dot_dimension_numbers<[1], [0], [0], [1], [0, 0, 1, 1], [], []>} : vector<8x4xf32>, vector<4x256xf32>, vector<8x256xf32> -> vector<8x256xf32>
    %56 = arith.addf %47, %55 : vector<8x256xf32>
    %cst_23 = arith.constant dense<0.000000e+00> : vector<8xf32>
    %57 = vector.multi_reduction <add>, %56, %cst_23 [1] : vector<8x256xf32> to vector<8xf32>
    %58 = vector.shape_cast %57 : vector<8xf32> to vector<8x1xf32>
    %59 = vector.shape_cast %58 : vector<8x1xf32> to vector<1x8x1xf32>
    %c0_24 = arith.constant 0 : index
    %c0_25 = arith.constant 0 : index
    %c0_26 = arith.constant 0 : index
    %60 = vector.load %arg3[%c0_24, %c0_25, %c0_26] : memref<1x8x1xf32, #tpu.memory_space<vmem>>, vector<1x8x1xf32>
    tpu.vector_store %arg3[%c0_24, %c0_25, %c0_26], %59 {strides = array<i32>} : memref<1x8x1xf32, #tpu.memory_space<vmem>>, vector<1x8x1xf32>,
    %61 = arith.mulf %56, %56 : vector<8x256xf32>
    %cst_27 = arith.constant dense<0.000000e+00> : vector<8xf32>
    %62 = vector.multi_reduction <add>, %61, %cst_27 [1] : vector<8x256xf32> to vector<8xf32>
    %63 = vector.shape_cast %62 : vector<8xf32> to vector<8x1xf32>
    %64 = vector.shape_cast %63 : vector<8x1xf32> to vector<1x8x1xf32>
    %c0_28 = arith.constant 0 : index
    %c0_29 = arith.constant 0 : index
    %c0_30 = arith.constant 0 : index
    %65 = vector.load %arg4[%c0_28, %c0_29, %c0_30] : memref<1x8x1xf32, #tpu.memory_space<vmem>>, vector<1x8x1xf32>
    tpu.vector_store %arg4[%c0_28, %c0_29, %c0_30], %64 {strides = array<i32>} : memref<1x8x1xf32, #tpu.memory_space<vmem>>, vector<1x8x1xf32>,
    return
  }
  func.func @transform_0(%arg0: i32) -> (i32, i32) {
    %c0_i32 = arith.constant 0 : i32
    %c0_i32_0 = arith.constant 0 : i32
    return %c0_i32, %arg0 : i32, i32
  }
  func.func @transform_1(%arg0: i32) -> (i32, i32, i32) {
    %c0_i32 = arith.constant 0 : i32
    %c0_i32_0 = arith.constant 0 : i32
    %c0_i32_1 = arith.constant 0 : i32
    %c0_i32_2 = arith.constant 0 : i32
    return %c0_i32, %c0_i32_0, %c0_i32_1 : i32, i32, i32
  }
  func.func @transform_2(%arg0: i32) -> (i32, i32, i32) {
    %c0_i32 = arith.constant 0 : i32
    %c0_i32_0 = arith.constant 0 : i32
    %c0_i32_1 = arith.constant 0 : i32
    return %arg0, %c0_i32, %c0_i32_0 : i32, i32, i32
  }
  func.func @transform_3(%arg0: i32) -> (i32, i32, i32) {
    %c0_i32 = arith.constant 0 : i32
    %c0_i32_0 = arith.constant 0 : i32
    %c0_i32_1 = arith.constant 0 : i32
    return %arg0, %c0_i32, %c0_i32_0 : i32, i32, i32
  }
}

module attributes {stable_mosaic.version = 11 : i64} {
  func.func @_stats2_kernel(%arg0: i32, %arg1: memref<4x256xf32, #tpu.memory_space<vmem>>, %arg2: memref<3x8x4xf32, #tpu.memory_space<vmem>>, %arg3: memref<3x8x8xf32, #tpu.memory_space<vmem>>, %arg4: memref<8x1xf32, #tpu.memory_space<vmem>>, %arg5: memref<8x1xf32, #tpu.memory_space<vmem>>, %arg6: memref<1x8x1xf32, #tpu.memory_space<vmem>>, %arg7: memref<1x8x1xf32, #tpu.memory_space<vmem>>) attributes {dimension_semantics = [#tpu.dimension_semantics<parallel>], iteration_bounds = array<i64: 2>, scalar_prefetch = 0 : i64, scratch_operands = 0 : i64, tpu.core_type = #tpu.core_type<tc>, window_params = [{transform_indices = @transform_0, window_bounds = array<i64: 4, 256>}, {pipeline_mode = #tpu.pipeline_mode<synchronous>, transform_indices = @transform_1, window_bounds = array<i64: 3, 8, 4>}, {pipeline_mode = #tpu.pipeline_mode<synchronous>, transform_indices = @transform_2, window_bounds = array<i64: 3, 8, 8>}, {pipeline_mode = #tpu.pipeline_mode<synchronous>, transform_indices = @transform_3, window_bounds = array<i64: 8, 1>}, {pipeline_mode = #tpu.pipeline_mode<synchronous>, transform_indices = @transform_4, window_bounds = array<i64: 8, 1>}, {transform_indices = @transform_5, window_bounds = array<i64: 1, 8, 1>}, {transform_indices = @transform_6, window_bounds = array<i64: 1, 8, 1>}]} {
    %0 = tpu.iota {dimensions = array<i32: 1>} : vector<1x256xi32>
    %c128_i32 = arith.constant 128 : i32
    %c0_i32 = arith.constant 0 : i32
    %1 = arith.cmpi eq, %c128_i32, %c0_i32 : i32
    %c1_i32 = arith.constant 1 : i32
    %2 = arith.select %1, %c1_i32, %c128_i32 : i32
    %3 = vector.broadcast %2 : i32 to vector<1x256xi32>
    %4 = arith.remsi %0, %3 : vector<1x256xi32>
    %c0_i32_0 = arith.constant 0 : i32
    %5 = vector.broadcast %c0_i32_0 : i32 to vector<1x256xi32>
    %6 = arith.cmpi ne, %4, %5 : vector<1x256xi32>
    %c0_i32_1 = arith.constant 0 : i32
    %7 = vector.broadcast %c0_i32_1 : i32 to vector<1x256xi32>
    %8 = arith.cmpi slt, %4, %7 : vector<1x256xi32>
    %c0_i32_2 = arith.constant 0 : i32
    %9 = arith.cmpi slt, %2, %c0_i32_2 : i32
    %10 = vector.broadcast %9 : i1 to vector<1x256xi1>
    %11 = vector.broadcast %10 : vector<1x256xi1> to vector<1x256xi1>
    %12 = arith.xori %8, %11 : vector<1x256xi1>
    %13 = arith.andi %12, %6 : vector<1x256xi1>
    %14 = vector.broadcast %2 : i32 to vector<1x256xi32>
    %15 = arith.addi %4, %14 : vector<1x256xi32>
    %16 = arith.select %13, %15, %4 : vector<1x256xi1>, vector<1x256xi32>
    %c-1_i32 = arith.constant -1 : i32
    %17 = vector.broadcast %c-1_i32 : i32 to vector<1x256xi32>
    %18 = arith.addi %16, %17 : vector<1x256xi32>
    %c0_i32_3 = arith.constant 0 : i32
    %19 = vector.broadcast %c0_i32_3 : i32 to vector<1x256xi32>
    %20 = arith.cmpi sge, %18, %19 : vector<1x256xi32>
    %c-1_i32_4 = arith.constant -1 : i32
    %21 = vector.broadcast %c-1_i32_4 : i32 to vector<1x256xi32>
    %22 = arith.addi %16, %21 : vector<1x256xi32>
    %c128_i32_5 = arith.constant 128 : i32
    %23 = vector.broadcast %c128_i32_5 : i32 to vector<1x256xi32>
    %24 = arith.cmpi slt, %22, %23 : vector<1x256xi32>
    %25 = arith.andi %20, %24 : vector<1x256xi1>
    %c1_i32_6 = arith.constant 1 : i32
    %26 = vector.broadcast %c1_i32_6 : i32 to vector<1x256xi32>
    %27 = arith.addi %16, %26 : vector<1x256xi32>
    %c0_i32_7 = arith.constant 0 : i32
    %28 = vector.broadcast %c0_i32_7 : i32 to vector<1x256xi32>
    %29 = arith.cmpi sge, %27, %28 : vector<1x256xi32>
    %c1_i32_8 = arith.constant 1 : i32
    %30 = vector.broadcast %c1_i32_8 : i32 to vector<1x256xi32>
    %31 = arith.addi %16, %30 : vector<1x256xi32>
    %c128_i32_9 = arith.constant 128 : i32
    %32 = vector.broadcast %c128_i32_9 : i32 to vector<1x256xi32>
    %33 = arith.cmpi slt, %31, %32 : vector<1x256xi32>
    %34 = arith.andi %29, %33 : vector<1x256xi1>
    %c0 = arith.constant 0 : index
    %c0_10 = arith.constant 0 : index
    %35 = vector.load %arg1[%c0, %c0_10] : memref<4x256xf32, #tpu.memory_space<vmem>>, vector<4x256xf32>
    %c1_i32_11 = arith.constant 1 : i32
    %36 = tpu.dynamic_rotate %35 by %c1_i32_11 dim 1 : vector<4x256xf32>, i32 -> vector<4x256xf32>
    %cst = arith.constant 0.000000e+00 : f32
    %37 = vector.broadcast %cst : f32 to vector<4x256xf32>
    %38 = vector.shape_cast %25 : vector<1x256xi1> to vector<1x256xi1>
    %39 = vector.broadcast %38 : vector<1x256xi1> to vector<4x256xi1>
    %40 = arith.select %39, %36, %37 : vector<4x256xi1>, vector<4x256xf32>
    %c0_12 = arith.constant 0 : index
    %c0_13 = arith.constant 0 : index
    %c0_14 = arith.constant 0 : index
    %41 = vector.load %arg2[%c0_12, %c0_13, %c0_14] : memref<3x8x4xf32, #tpu.memory_space<vmem>>, vector<1x8x4xf32>
    %42 = vector.shape_cast %41 : vector<1x8x4xf32> to vector<8x4xf32>
    %cst_15 = arith.constant dense<0.000000e+00> : vector<8x256xf32>
    %43 = tpu.matmul %42, %40, %cst_15 {dimension_numbers = #tpu.dot_dimension_numbers<[1], [0], [0], [1], [0, 0, 1, 1], [], []>} : vector<8x4xf32>, vector<4x256xf32>, vector<8x256xf32> -> vector<8x256xf32>
    %c1 = arith.constant 1 : index
    %c0_16 = arith.constant 0 : index
    %c0_17 = arith.constant 0 : index
    %44 = vector.load %arg2[%c1, %c0_16, %c0_17] : memref<3x8x4xf32, #tpu.memory_space<vmem>>, vector<1x8x4xf32>
    %45 = vector.shape_cast %44 : vector<1x8x4xf32> to vector<8x4xf32>
    %cst_18 = arith.constant dense<0.000000e+00> : vector<8x256xf32>
    %46 = tpu.matmul %45, %35, %cst_18 {dimension_numbers = #tpu.dot_dimension_numbers<[1], [0], [0], [1], [0, 0, 1, 1], [], []>} : vector<8x4xf32>, vector<4x256xf32>, vector<8x256xf32> -> vector<8x256xf32>
    %47 = arith.addf %43, %46 : vector<8x256xf32>
    %c255_i32 = arith.constant 255 : i32
    %48 = tpu.dynamic_rotate %35 by %c255_i32 dim 1 : vector<4x256xf32>, i32 -> vector<4x256xf32>
    %cst_19 = arith.constant 0.000000e+00 : f32
    %49 = vector.broadcast %cst_19 : f32 to vector<4x256xf32>
    %50 = vector.shape_cast %34 : vector<1x256xi1> to vector<1x256xi1>
    %51 = vector.broadcast %50 : vector<1x256xi1> to vector<4x256xi1>
    %52 = arith.select %51, %48, %49 : vector<4x256xi1>, vector<4x256xf32>
    %c2 = arith.constant 2 : index
    %c0_20 = arith.constant 0 : index
    %c0_21 = arith.constant 0 : index
    %53 = vector.load %arg2[%c2, %c0_20, %c0_21] : memref<3x8x4xf32, #tpu.memory_space<vmem>>, vector<1x8x4xf32>
    %54 = vector.shape_cast %53 : vector<1x8x4xf32> to vector<8x4xf32>
    %cst_22 = arith.constant dense<0.000000e+00> : vector<8x256xf32>
    %55 = tpu.matmul %54, %52, %cst_22 {dimension_numbers = #tpu.dot_dimension_numbers<[1], [0], [0], [1], [0, 0, 1, 1], [], []>} : vector<8x4xf32>, vector<4x256xf32>, vector<8x256xf32> -> vector<8x256xf32>
    %56 = arith.addf %47, %55 : vector<8x256xf32>
    %c0_23 = arith.constant 0 : index
    %c0_24 = arith.constant 0 : index
    %57 = vector.load %arg4[%c0_23, %c0_24] : memref<8x1xf32, #tpu.memory_space<vmem>>, vector<8x1xf32>
    %58 = vector.broadcast %57 : vector<8x1xf32> to vector<8x256xf32>
    %59 = arith.mulf %56, %58 : vector<8x256xf32>
    %c0_25 = arith.constant 0 : index
    %c0_26 = arith.constant 0 : index
    %60 = vector.load %arg5[%c0_25, %c0_26] : memref<8x1xf32, #tpu.memory_space<vmem>>, vector<8x1xf32>
    %61 = vector.broadcast %60 : vector<8x1xf32> to vector<8x256xf32>
    %62 = arith.addf %59, %61 : vector<8x256xf32>
    %cst_27 = arith.constant 0.000000e+00 : f32
    %63 = vector.broadcast %cst_27 : f32 to vector<8x256xf32>
    %64 = arith.maximumf %62, %63 : vector<8x256xf32>
    %c1_i32_28 = arith.constant 1 : i32
    %65 = tpu.dynamic_rotate %64 by %c1_i32_28 dim 1 : vector<8x256xf32>, i32 -> vector<8x256xf32>
    %cst_29 = arith.constant 0.000000e+00 : f32
    %66 = vector.broadcast %cst_29 : f32 to vector<8x256xf32>
    %67 = vector.shape_cast %25 : vector<1x256xi1> to vector<1x256xi1>
    %68 = vector.broadcast %67 : vector<1x256xi1> to vector<8x256xi1>
    %69 = arith.select %68, %65, %66 : vector<8x256xi1>, vector<8x256xf32>
    %c0_30 = arith.constant 0 : index
    %c0_31 = arith.constant 0 : index
    %c0_32 = arith.constant 0 : index
    %70 = vector.load %arg3[%c0_30, %c0_31, %c0_32] : memref<3x8x8xf32, #tpu.memory_space<vmem>>, vector<1x8x8xf32>
    %71 = vector.shape_cast %70 : vector<1x8x8xf32> to vector<8x8xf32>
    %cst_33 = arith.constant dense<0.000000e+00> : vector<8x256xf32>
    %72 = tpu.matmul %71, %69, %cst_33 {dimension_numbers = #tpu.dot_dimension_numbers<[1], [0], [0], [1], [0, 0, 1, 1], [], []>} : vector<8x8xf32>, vector<8x256xf32>, vector<8x256xf32> -> vector<8x256xf32>
    %c1_34 = arith.constant 1 : index
    %c0_35 = arith.constant 0 : index
    %c0_36 = arith.constant 0 : index
    %73 = vector.load %arg3[%c1_34, %c0_35, %c0_36] : memref<3x8x8xf32, #tpu.memory_space<vmem>>, vector<1x8x8xf32>
    %74 = vector.shape_cast %73 : vector<1x8x8xf32> to vector<8x8xf32>
    %cst_37 = arith.constant dense<0.000000e+00> : vector<8x256xf32>
    %75 = tpu.matmul %74, %64, %cst_37 {dimension_numbers = #tpu.dot_dimension_numbers<[1], [0], [0], [1], [0, 0, 1, 1], [], []>} : vector<8x8xf32>, vector<8x256xf32>, vector<8x256xf32> -> vector<8x256xf32>
    %76 = arith.addf %72, %75 : vector<8x256xf32>
    %c255_i32_38 = arith.constant 255 : i32
    %77 = tpu.dynamic_rotate %64 by %c255_i32_38 dim 1 : vector<8x256xf32>, i32 -> vector<8x256xf32>
    %cst_39 = arith.constant 0.000000e+00 : f32
    %78 = vector.broadcast %cst_39 : f32 to vector<8x256xf32>
    %79 = vector.shape_cast %34 : vector<1x256xi1> to vector<1x256xi1>
    %80 = vector.broadcast %79 : vector<1x256xi1> to vector<8x256xi1>
    %81 = arith.select %80, %77, %78 : vector<8x256xi1>, vector<8x256xf32>
    %c2_40 = arith.constant 2 : index
    %c0_41 = arith.constant 0 : index
    %c0_42 = arith.constant 0 : index
    %82 = vector.load %arg3[%c2_40, %c0_41, %c0_42] : memref<3x8x8xf32, #tpu.memory_space<vmem>>, vector<1x8x8xf32>
    %83 = vector.shape_cast %82 : vector<1x8x8xf32> to vector<8x8xf32>
    %cst_43 = arith.constant dense<0.000000e+00> : vector<8x256xf32>
    %84 = tpu.matmul %83, %81, %cst_43 {dimension_numbers = #tpu.dot_dimension_numbers<[1], [0], [0], [1], [0, 0, 1, 1], [], []>} : vector<8x8xf32>, vector<8x256xf32>, vector<8x256xf32> -> vector<8x256xf32>
    %85 = arith.addf %76, %84 : vector<8x256xf32>
    %cst_44 = arith.constant dense<0.000000e+00> : vector<8xf32>
    %86 = vector.multi_reduction <add>, %85, %cst_44 [1] : vector<8x256xf32> to vector<8xf32>
    %87 = vector.shape_cast %86 : vector<8xf32> to vector<8x1xf32>
    %88 = vector.shape_cast %87 : vector<8x1xf32> to vector<1x8x1xf32>
    %c0_45 = arith.constant 0 : index
    %c0_46 = arith.constant 0 : index
    %c0_47 = arith.constant 0 : index
    %89 = vector.load %arg6[%c0_45, %c0_46, %c0_47] : memref<1x8x1xf32, #tpu.memory_space<vmem>>, vector<1x8x1xf32>
    tpu.vector_store %arg6[%c0_45, %c0_46, %c0_47], %88 {strides = array<i32>} : memref<1x8x1xf32, #tpu.memory_space<vmem>>, vector<1x8x1xf32>,
    %90 = arith.mulf %85, %85 : vector<8x256xf32>
    %cst_48 = arith.constant dense<0.000000e+00> : vector<8xf32>
    %91 = vector.multi_reduction <add>, %90, %cst_48 [1] : vector<8x256xf32> to vector<8xf32>
    %92 = vector.shape_cast %91 : vector<8xf32> to vector<8x1xf32>
    %93 = vector.shape_cast %92 : vector<8x1xf32> to vector<1x8x1xf32>
    %c0_49 = arith.constant 0 : index
    %c0_50 = arith.constant 0 : index
    %c0_51 = arith.constant 0 : index
    %94 = vector.load %arg7[%c0_49, %c0_50, %c0_51] : memref<1x8x1xf32, #tpu.memory_space<vmem>>, vector<1x8x1xf32>
    tpu.vector_store %arg7[%c0_49, %c0_50, %c0_51], %93 {strides = array<i32>} : memref<1x8x1xf32, #tpu.memory_space<vmem>>, vector<1x8x1xf32>,
    return
  }
  func.func @transform_0(%arg0: i32) -> (i32, i32) {
    %c0_i32 = arith.constant 0 : i32
    %c0_i32_0 = arith.constant 0 : i32
    return %c0_i32, %arg0 : i32, i32
  }
  func.func @transform_1(%arg0: i32) -> (i32, i32, i32) {
    %c0_i32 = arith.constant 0 : i32
    %c0_i32_0 = arith.constant 0 : i32
    %c0_i32_1 = arith.constant 0 : i32
    %c0_i32_2 = arith.constant 0 : i32
    return %c0_i32, %c0_i32_0, %c0_i32_1 : i32, i32, i32
  }
  func.func @transform_2(%arg0: i32) -> (i32, i32, i32) {
    %c0_i32 = arith.constant 0 : i32
    %c0_i32_0 = arith.constant 0 : i32
    %c0_i32_1 = arith.constant 0 : i32
    %c0_i32_2 = arith.constant 0 : i32
    return %c0_i32, %c0_i32_0, %c0_i32_1 : i32, i32, i32
  }
  func.func @transform_3(%arg0: i32) -> (i32, i32) {
    %c0_i32 = arith.constant 0 : i32
    %c0_i32_0 = arith.constant 0 : i32
    %c0_i32_1 = arith.constant 0 : i32
    return %c0_i32, %c0_i32_0 : i32, i32
  }
  func.func @transform_4(%arg0: i32) -> (i32, i32) {
    %c0_i32 = arith.constant 0 : i32
    %c0_i32_0 = arith.constant 0 : i32
    %c0_i32_1 = arith.constant 0 : i32
    return %c0_i32, %c0_i32_0 : i32, i32
  }
  func.func @transform_5(%arg0: i32) -> (i32, i32, i32) {
    %c0_i32 = arith.constant 0 : i32
    %c0_i32_0 = arith.constant 0 : i32
    %c0_i32_1 = arith.constant 0 : i32
    return %arg0, %c0_i32, %c0_i32_0 : i32, i32, i32
  }
  func.func @transform_6(%arg0: i32) -> (i32, i32, i32) {
    %c0_i32 = arith.constant 0 : i32
    %c0_i32_0 = arith.constant 0 : i32
    %c0_i32_1 = arith.constant 0 : i32
    return %arg0, %c0_i32, %c0_i32_0 : i32, i32, i32
  }
}

module attributes {stable_mosaic.version = 11 : i64} {
  func.func @_final_kernel(%arg0: i32, %arg1: memref<4x256xf32, #tpu.memory_space<vmem>>, %arg2: memref<3x8x4xf32, #tpu.memory_space<vmem>>, %arg3: memref<3x8x8xf32, #tpu.memory_space<vmem>>, %arg4: memref<8x4xf32, #tpu.memory_space<vmem>>, %arg5: memref<8x1xf32, #tpu.memory_space<vmem>>, %arg6: memref<8x1xf32, #tpu.memory_space<vmem>>, %arg7: memref<8x1xf32, #tpu.memory_space<vmem>>, %arg8: memref<8x1xf32, #tpu.memory_space<vmem>>, %arg9: memref<8x1xf32, #tpu.memory_space<vmem>>, %arg10: memref<8x256xf32, #tpu.memory_space<vmem>>) attributes {dimension_semantics = [#tpu.dimension_semantics<parallel>], iteration_bounds = array<i64: 2>, scalar_prefetch = 0 : i64, scratch_operands = 0 : i64, tpu.core_type = #tpu.core_type<tc>, window_params = [{transform_indices = @transform_0, window_bounds = array<i64: 4, 256>}, {pipeline_mode = #tpu.pipeline_mode<synchronous>, transform_indices = @transform_1, window_bounds = array<i64: 3, 8, 4>}, {pipeline_mode = #tpu.pipeline_mode<synchronous>, transform_indices = @transform_2, window_bounds = array<i64: 3, 8, 8>}, {pipeline_mode = #tpu.pipeline_mode<synchronous>, transform_indices = @transform_3, window_bounds = array<i64: 8, 4>}, {pipeline_mode = #tpu.pipeline_mode<synchronous>, transform_indices = @transform_4, window_bounds = array<i64: 8, 1>}, {pipeline_mode = #tpu.pipeline_mode<synchronous>, transform_indices = @transform_5, window_bounds = array<i64: 8, 1>}, {pipeline_mode = #tpu.pipeline_mode<synchronous>, transform_indices = @transform_6, window_bounds = array<i64: 8, 1>}, {pipeline_mode = #tpu.pipeline_mode<synchronous>, transform_indices = @transform_7, window_bounds = array<i64: 8, 1>}, {pipeline_mode = #tpu.pipeline_mode<synchronous>, transform_indices = @transform_8, window_bounds = array<i64: 8, 1>}, {transform_indices = @transform_9, window_bounds = array<i64: 8, 256>}]} {
    %0 = tpu.iota {dimensions = array<i32: 1>} : vector<1x256xi32>
    %c128_i32 = arith.constant 128 : i32
    %c0_i32 = arith.constant 0 : i32
    %1 = arith.cmpi eq, %c128_i32, %c0_i32 : i32
    %c1_i32 = arith.constant 1 : i32
    %2 = arith.select %1, %c1_i32, %c128_i32 : i32
    %3 = vector.broadcast %2 : i32 to vector<1x256xi32>
    %4 = arith.remsi %0, %3 : vector<1x256xi32>
    %c0_i32_0 = arith.constant 0 : i32
    %5 = vector.broadcast %c0_i32_0 : i32 to vector<1x256xi32>
    %6 = arith.cmpi ne, %4, %5 : vector<1x256xi32>
    %c0_i32_1 = arith.constant 0 : i32
    %7 = vector.broadcast %c0_i32_1 : i32 to vector<1x256xi32>
    %8 = arith.cmpi slt, %4, %7 : vector<1x256xi32>
    %c0_i32_2 = arith.constant 0 : i32
    %9 = arith.cmpi slt, %2, %c0_i32_2 : i32
    %10 = vector.broadcast %9 : i1 to vector<1x256xi1>
    %11 = vector.broadcast %10 : vector<1x256xi1> to vector<1x256xi1>
    %12 = arith.xori %8, %11 : vector<1x256xi1>
    %13 = arith.andi %12, %6 : vector<1x256xi1>
    %14 = vector.broadcast %2 : i32 to vector<1x256xi32>
    %15 = arith.addi %4, %14 : vector<1x256xi32>
    %16 = arith.select %13, %15, %4 : vector<1x256xi1>, vector<1x256xi32>
    %c-1_i32 = arith.constant -1 : i32
    %17 = vector.broadcast %c-1_i32 : i32 to vector<1x256xi32>
    %18 = arith.addi %16, %17 : vector<1x256xi32>
    %c0_i32_3 = arith.constant 0 : i32
    %19 = vector.broadcast %c0_i32_3 : i32 to vector<1x256xi32>
    %20 = arith.cmpi sge, %18, %19 : vector<1x256xi32>
    %c-1_i32_4 = arith.constant -1 : i32
    %21 = vector.broadcast %c-1_i32_4 : i32 to vector<1x256xi32>
    %22 = arith.addi %16, %21 : vector<1x256xi32>
    %c128_i32_5 = arith.constant 128 : i32
    %23 = vector.broadcast %c128_i32_5 : i32 to vector<1x256xi32>
    %24 = arith.cmpi slt, %22, %23 : vector<1x256xi32>
    %25 = arith.andi %20, %24 : vector<1x256xi1>
    %c1_i32_6 = arith.constant 1 : i32
    %26 = vector.broadcast %c1_i32_6 : i32 to vector<1x256xi32>
    %27 = arith.addi %16, %26 : vector<1x256xi32>
    %c0_i32_7 = arith.constant 0 : i32
    %28 = vector.broadcast %c0_i32_7 : i32 to vector<1x256xi32>
    %29 = arith.cmpi sge, %27, %28 : vector<1x256xi32>
    %c1_i32_8 = arith.constant 1 : i32
    %30 = vector.broadcast %c1_i32_8 : i32 to vector<1x256xi32>
    %31 = arith.addi %16, %30 : vector<1x256xi32>
    %c128_i32_9 = arith.constant 128 : i32
    %32 = vector.broadcast %c128_i32_9 : i32 to vector<1x256xi32>
    %33 = arith.cmpi slt, %31, %32 : vector<1x256xi32>
    %34 = arith.andi %29, %33 : vector<1x256xi1>
    %c0 = arith.constant 0 : index
    %c0_10 = arith.constant 0 : index
    %35 = vector.load %arg1[%c0, %c0_10] : memref<4x256xf32, #tpu.memory_space<vmem>>, vector<4x256xf32>
    %c1_i32_11 = arith.constant 1 : i32
    %36 = tpu.dynamic_rotate %35 by %c1_i32_11 dim 1 : vector<4x256xf32>, i32 -> vector<4x256xf32>
    %cst = arith.constant 0.000000e+00 : f32
    %37 = vector.broadcast %cst : f32 to vector<4x256xf32>
    %38 = vector.shape_cast %25 : vector<1x256xi1> to vector<1x256xi1>
    %39 = vector.broadcast %38 : vector<1x256xi1> to vector<4x256xi1>
    %40 = arith.select %39, %36, %37 : vector<4x256xi1>, vector<4x256xf32>
    %c0_12 = arith.constant 0 : index
    %c0_13 = arith.constant 0 : index
    %c0_14 = arith.constant 0 : index
    %41 = vector.load %arg2[%c0_12, %c0_13, %c0_14] : memref<3x8x4xf32, #tpu.memory_space<vmem>>, vector<1x8x4xf32>
    %42 = vector.shape_cast %41 : vector<1x8x4xf32> to vector<8x4xf32>
    %cst_15 = arith.constant dense<0.000000e+00> : vector<8x256xf32>
    %43 = tpu.matmul %42, %40, %cst_15 {dimension_numbers = #tpu.dot_dimension_numbers<[1], [0], [0], [1], [0, 0, 1, 1], [], []>} : vector<8x4xf32>, vector<4x256xf32>, vector<8x256xf32> -> vector<8x256xf32>
    %c1 = arith.constant 1 : index
    %c0_16 = arith.constant 0 : index
    %c0_17 = arith.constant 0 : index
    %44 = vector.load %arg2[%c1, %c0_16, %c0_17] : memref<3x8x4xf32, #tpu.memory_space<vmem>>, vector<1x8x4xf32>
    %45 = vector.shape_cast %44 : vector<1x8x4xf32> to vector<8x4xf32>
    %cst_18 = arith.constant dense<0.000000e+00> : vector<8x256xf32>
    %46 = tpu.matmul %45, %35, %cst_18 {dimension_numbers = #tpu.dot_dimension_numbers<[1], [0], [0], [1], [0, 0, 1, 1], [], []>} : vector<8x4xf32>, vector<4x256xf32>, vector<8x256xf32> -> vector<8x256xf32>
    %47 = arith.addf %43, %46 : vector<8x256xf32>
    %c255_i32 = arith.constant 255 : i32
    %48 = tpu.dynamic_rotate %35 by %c255_i32 dim 1 : vector<4x256xf32>, i32 -> vector<4x256xf32>
    %cst_19 = arith.constant 0.000000e+00 : f32
    %49 = vector.broadcast %cst_19 : f32 to vector<4x256xf32>
    %50 = vector.shape_cast %34 : vector<1x256xi1> to vector<1x256xi1>
    %51 = vector.broadcast %50 : vector<1x256xi1> to vector<4x256xi1>
    %52 = arith.select %51, %48, %49 : vector<4x256xi1>, vector<4x256xf32>
    %c2 = arith.constant 2 : index
    %c0_20 = arith.constant 0 : index
    %c0_21 = arith.constant 0 : index
    %53 = vector.load %arg2[%c2, %c0_20, %c0_21] : memref<3x8x4xf32, #tpu.memory_space<vmem>>, vector<1x8x4xf32>
    %54 = vector.shape_cast %53 : vector<1x8x4xf32> to vector<8x4xf32>
    %cst_22 = arith.constant dense<0.000000e+00> : vector<8x256xf32>
    %55 = tpu.matmul %54, %52, %cst_22 {dimension_numbers = #tpu.dot_dimension_numbers<[1], [0], [0], [1], [0, 0, 1, 1], [], []>} : vector<8x4xf32>, vector<4x256xf32>, vector<8x256xf32> -> vector<8x256xf32>
    %56 = arith.addf %47, %55 : vector<8x256xf32>
    %c0_23 = arith.constant 0 : index
    %c0_24 = arith.constant 0 : index
    %57 = vector.load %arg6[%c0_23, %c0_24] : memref<8x1xf32, #tpu.memory_space<vmem>>, vector<8x1xf32>
    %58 = vector.broadcast %57 : vector<8x1xf32> to vector<8x256xf32>
    %59 = arith.mulf %56, %58 : vector<8x256xf32>
    %c0_25 = arith.constant 0 : index
    %c0_26 = arith.constant 0 : index
    %60 = vector.load %arg7[%c0_25, %c0_26] : memref<8x1xf32, #tpu.memory_space<vmem>>, vector<8x1xf32>
    %61 = vector.broadcast %60 : vector<8x1xf32> to vector<8x256xf32>
    %62 = arith.addf %59, %61 : vector<8x256xf32>
    %cst_27 = arith.constant 0.000000e+00 : f32
    %63 = vector.broadcast %cst_27 : f32 to vector<8x256xf32>
    %64 = arith.maximumf %62, %63 : vector<8x256xf32>
    %c1_i32_28 = arith.constant 1 : i32
    %65 = tpu.dynamic_rotate %64 by %c1_i32_28 dim 1 : vector<8x256xf32>, i32 -> vector<8x256xf32>
    %cst_29 = arith.constant 0.000000e+00 : f32
    %66 = vector.broadcast %cst_29 : f32 to vector<8x256xf32>
    %67 = vector.shape_cast %25 : vector<1x256xi1> to vector<1x256xi1>
    %68 = vector.broadcast %67 : vector<1x256xi1> to vector<8x256xi1>
    %69 = arith.select %68, %65, %66 : vector<8x256xi1>, vector<8x256xf32>
    %c0_30 = arith.constant 0 : index
    %c0_31 = arith.constant 0 : index
    %c0_32 = arith.constant 0 : index
    %70 = vector.load %arg3[%c0_30, %c0_31, %c0_32] : memref<3x8x8xf32, #tpu.memory_space<vmem>>, vector<1x8x8xf32>
    %71 = vector.shape_cast %70 : vector<1x8x8xf32> to vector<8x8xf32>
    %cst_33 = arith.constant dense<0.000000e+00> : vector<8x256xf32>
    %72 = tpu.matmul %71, %69, %cst_33 {dimension_numbers = #tpu.dot_dimension_numbers<[1], [0], [0], [1], [0, 0, 1, 1], [], []>} : vector<8x8xf32>, vector<8x256xf32>, vector<8x256xf32> -> vector<8x256xf32>
    %c1_34 = arith.constant 1 : index
    %c0_35 = arith.constant 0 : index
    %c0_36 = arith.constant 0 : index
    %73 = vector.load %arg3[%c1_34, %c0_35, %c0_36] : memref<3x8x8xf32, #tpu.memory_space<vmem>>, vector<1x8x8xf32>
    %74 = vector.shape_cast %73 : vector<1x8x8xf32> to vector<8x8xf32>
    %cst_37 = arith.constant dense<0.000000e+00> : vector<8x256xf32>
    %75 = tpu.matmul %74, %64, %cst_37 {dimension_numbers = #tpu.dot_dimension_numbers<[1], [0], [0], [1], [0, 0, 1, 1], [], []>} : vector<8x8xf32>, vector<8x256xf32>, vector<8x256xf32> -> vector<8x256xf32>
    %76 = arith.addf %72, %75 : vector<8x256xf32>
    %c255_i32_38 = arith.constant 255 : i32
    %77 = tpu.dynamic_rotate %64 by %c255_i32_38 dim 1 : vector<8x256xf32>, i32 -> vector<8x256xf32>
    %cst_39 = arith.constant 0.000000e+00 : f32
    %78 = vector.broadcast %cst_39 : f32 to vector<8x256xf32>
    %79 = vector.shape_cast %34 : vector<1x256xi1> to vector<1x256xi1>
    %80 = vector.broadcast %79 : vector<1x256xi1> to vector<8x256xi1>
    %81 = arith.select %80, %77, %78 : vector<8x256xi1>, vector<8x256xf32>
    %c2_40 = arith.constant 2 : index
    %c0_41 = arith.constant 0 : index
    %c0_42 = arith.constant 0 : index
    %82 = vector.load %arg3[%c2_40, %c0_41, %c0_42] : memref<3x8x8xf32, #tpu.memory_space<vmem>>, vector<1x8x8xf32>
    %83 = vector.shape_cast %82 : vector<1x8x8xf32> to vector<8x8xf32>
    %cst_43 = arith.constant dense<0.000000e+00> : vector<8x256xf32>
    %84 = tpu.matmul %83, %81, %cst_43 {dimension_numbers = #tpu.dot_dimension_numbers<[1], [0], [0], [1], [0, 0, 1, 1], [], []>} : vector<8x8xf32>, vector<8x256xf32>, vector<8x256xf32> -> vector<8x256xf32>
    %85 = arith.addf %76, %84 : vector<8x256xf32>
    %c0_44 = arith.constant 0 : index
    %c0_45 = arith.constant 0 : index
    %86 = vector.load %arg8[%c0_44, %c0_45] : memref<8x1xf32, #tpu.memory_space<vmem>>, vector<8x1xf32>
    %87 = vector.broadcast %86 : vector<8x1xf32> to vector<8x256xf32>
    %88 = arith.mulf %85, %87 : vector<8x256xf32>
    %c0_46 = arith.constant 0 : index
    %c0_47 = arith.constant 0 : index
    %89 = vector.load %arg9[%c0_46, %c0_47] : memref<8x1xf32, #tpu.memory_space<vmem>>, vector<8x1xf32>
    %90 = vector.broadcast %89 : vector<8x1xf32> to vector<8x256xf32>
    %91 = arith.addf %88, %90 : vector<8x256xf32>
    %c0_48 = arith.constant 0 : index
    %c0_49 = arith.constant 0 : index
    %92 = vector.load %arg4[%c0_48, %c0_49] : memref<8x4xf32, #tpu.memory_space<vmem>>, vector<8x4xf32>
    %cst_50 = arith.constant dense<0.000000e+00> : vector<8x256xf32>
    %93 = tpu.matmul %92, %35, %cst_50 {dimension_numbers = #tpu.dot_dimension_numbers<[1], [0], [0], [1], [0, 0, 1, 1], [], []>} : vector<8x4xf32>, vector<4x256xf32>, vector<8x256xf32> -> vector<8x256xf32>
    %c0_51 = arith.constant 0 : index
    %c0_52 = arith.constant 0 : index
    %94 = vector.load %arg5[%c0_51, %c0_52] : memref<8x1xf32, #tpu.memory_space<vmem>>, vector<8x1xf32>
    %95 = vector.broadcast %94 : vector<8x1xf32> to vector<8x256xf32>
    %96 = arith.addf %93, %95 : vector<8x256xf32>
    %97 = arith.addf %91, %96 : vector<8x256xf32>
    %cst_53 = arith.constant 0.000000e+00 : f32
    %98 = vector.broadcast %cst_53 : f32 to vector<8x256xf32>
    %99 = arith.maximumf %97, %98 : vector<8x256xf32>
    %c0_54 = arith.constant 0 : index
    %c0_55 = arith.constant 0 : index
    %100 = vector.load %arg10[%c0_54, %c0_55] : memref<8x256xf32, #tpu.memory_space<vmem>>, vector<8x256xf32>
    tpu.vector_store %arg10[%c0_54, %c0_55], %99 {strides = array<i32>} : memref<8x256xf32, #tpu.memory_space<vmem>>, vector<8x256xf32>,
    return
  }
  func.func @transform_0(%arg0: i32) -> (i32, i32) {
    %c0_i32 = arith.constant 0 : i32
    %c0_i32_0 = arith.constant 0 : i32
    return %c0_i32, %arg0 : i32, i32
  }
  func.func @transform_1(%arg0: i32) -> (i32, i32, i32) {
    %c0_i32 = arith.constant 0 : i32
    %c0_i32_0 = arith.constant 0 : i32
    %c0_i32_1 = arith.constant 0 : i32
    %c0_i32_2 = arith.constant 0 : i32
    return %c0_i32, %c0_i32_0, %c0_i32_1 : i32, i32, i32
  }
  func.func @transform_2(%arg0: i32) -> (i32, i32, i32) {
    %c0_i32 = arith.constant 0 : i32
    %c0_i32_0 = arith.constant 0 : i32
    %c0_i32_1 = arith.constant 0 : i32
    %c0_i32_2 = arith.constant 0 : i32
    return %c0_i32, %c0_i32_0, %c0_i32_1 : i32, i32, i32
  }
  func.func @transform_3(%arg0: i32) -> (i32, i32) {
    %c0_i32 = arith.constant 0 : i32
    %c0_i32_0 = arith.constant 0 : i32
    %c0_i32_1 = arith.constant 0 : i32
    return %c0_i32, %c0_i32_0 : i32, i32
  }
  func.func @transform_4(%arg0: i32) -> (i32, i32) {
    %c0_i32 = arith.constant 0 : i32
    %c0_i32_0 = arith.constant 0 : i32
    %c0_i32_1 = arith.constant 0 : i32
    return %c0_i32, %c0_i32_0 : i32, i32
  }
  func.func @transform_5(%arg0: i32) -> (i32, i32) {
    %c0_i32 = arith.constant 0 : i32
    %c0_i32_0 = arith.constant 0 : i32
    %c0_i32_1 = arith.constant 0 : i32
    return %c0_i32, %c0_i32_0 : i32, i32
  }
  func.func @transform_6(%arg0: i32) -> (i32, i32) {
    %c0_i32 = arith.constant 0 : i32
    %c0_i32_0 = arith.constant 0 : i32
    %c0_i32_1 = arith.constant 0 : i32
    return %c0_i32, %c0_i32_0 : i32, i32
  }
  func.func @transform_7(%arg0: i32) -> (i32, i32) {
    %c0_i32 = arith.constant 0 : i32
    %c0_i32_0 = arith.constant 0 : i32
    %c0_i32_1 = arith.constant 0 : i32
    return %c0_i32, %c0_i32_0 : i32, i32
  }
  func.func @transform_8(%arg0: i32) -> (i32, i32) {
    %c0_i32 = arith.constant 0 : i32
    %c0_i32_0 = arith.constant 0 : i32
    %c0_i32_1 = arith.constant 0 : i32
    return %c0_i32, %c0_i32_0 : i32, i32
  }
  func.func @transform_9(%arg0: i32) -> (i32, i32) {
    %c0_i32 = arith.constant 0 : i32
    %c0_i32_0 = arith.constant 0 : i32
    return %c0_i32, %arg0 : i32, i32
  }
}

</mosaic_0001>

<llo_original>
// kernel: stack_conv_block.3
$region0: #{stack_conv_block.3}
  #allocation0 [shape = 'u32[]', space=smem, size = 0x4, offset = 0x4, fixed_abs, tag = 'smem constant byte address 0x4 - core index']
  #allocation1 [shape = 'u32[144,128]{1,0:T(1,128)}', space=vmem, size = 0x12000, scoped, tag = 'internal scratch']
  %s0 = inlined_call_operand.vmem [shape: f32[4,512], index: 0, kind: input, shape index: {}]
  %s1 = inlined_call_operand.vmem [shape: f32[3,8,4], index: 1, kind: input, shape index: {}]
  %s2 = inlined_call_operand.vmem [shape: f32[2,8,1], index: 2, kind: output, shape index: {0}]
  %s3 = inlined_call_operand.vmem [shape: f32[2,8,1], index: 3, kind: output, shape index: {1}]
  %4 = xla_tuple %s2, %s3
  %s5 = sld [smem:[#allocation0]]
  $region49: #{stack_conv_block.3} parent=0
    _
  %s7 = ssub.s32 1, %s5
  %s8 = scalar_select 0, %s7, %s5
  loop: start=0, step=1, limit=4
  $region2: #{stack_conv_block.3} parent=0 // loop_pre_header
    _
  $region3: #{stack_conv_block.3} parent=0 // loop_header
    %s10 = sphi 0, %s14
    %p11 = scmp.ge.s32.totalorder %s10, 4
    %s20 = sphi 0, %s22
    %s23 = sphi 0, %s20
    %s24 = sphi 0, %s23
    %s40 = sphi 0, %s24
    %s44 = sphi 0, %s44
    %s46 = sphi 0, %s44
    %s47 = sphi 0, %s46
    %s61 = sphi 0, %s47
    %s67 = sphi 0, %s69
    %s70 = sphi 0, %s67
    %s71 = sphi 0, %s70
    %s87 = sphi 0, %s71
    %s93 = sphi 0, %s95
    %s96 = sphi 0, %s93
    %s97 = sphi 0, %s96
    %s113 = sphi 0, %s97
  $region4: #{stack_conv_block.3} parent=0 // loop_header_branch
    %13 = sbr.rel (%p11) target = $region8
  $region5: #{stack_conv_block.3} parent=0 // loop_body
    %s15 = ssub.s32 %s10, 1
    %s16 = ssub.s32 %s10, 2
    %s17 = sadd.s32 %s10, 1
    %s18 = ssub.s32 %s10, %s17
    %p19 = scmp.eq.s32.totalorder %s18, 0
    %s21 = sadd.s32 %s20, 1
    %s22 = scalar_select %p19, %s20, %s21
    %p25 = pneg %p19
    %p26 = scmp.eq.s32.totalorder %s10, 1
    %p27 = por %p25, %p26
    %p28 = scmp.ne.s32.totalorder %s20, %s23
    %p29 = scmp.eq.s32.totalorder %s10, 0
    %p30 = por %p28, %p29
    %p31 = scmp.ne.s32.totalorder %s20, %s23
    %p32 = scmp.eq.s32.totalorder %s15, 1
    %p33 = por %p31, %p32
    %p34 = scmp.ne.s32.totalorder %s23, %s24
    %p35 = scmp.eq.s32.totalorder %s15, 0
    %p36 = por %p34, %p35
    %p37 = scmp.ne.s32.totalorder %s23, %s24
    %p38 = scmp.eq.s32.totalorder %s16, 1
    %p39 = por %p37, %p38
    %p41 = scmp.ne.s32.totalorder %s24, %s40
    %p42 = scmp.eq.s32.totalorder %s16, 0
    %p43 = por %p41, %p42
    %s45 = sadd.s32 %s44, 1
    %p48 = scmp.eq.s32.totalorder %s10, 1
    %p49 = scmp.ne.s32.totalorder %s44, %s46
    %p50 = scmp.eq.s32.totalorder %s10, 0
    %p51 = por %p49, %p50
    %p52 = scmp.ne.s32.totalorder %s44, %s46
    %p53 = scmp.eq.s32.totalorder %s15, 1
    %p54 = por %p52, %p53
    %p55 = scmp.ne.s32.totalorder %s46, %s47
    %p56 = scmp.eq.s32.totalorder %s15, 0
    %p57 = por %p55, %p56
    %p58 = scmp.ne.s32.totalorder %s46, %s47
    %p59 = scmp.eq.s32.totalorder %s16, 1
    %p60 = por %p58, %p59
    %p62 = scmp.ne.s32.totalorder %s47, %s61
    %p63 = scmp.eq.s32.totalorder %s16, 0
    %p64 = por %p62, %p63
    %s65 = ssub.s32 %s10, %s17
    %p66 = scmp.eq.s32.totalorder %s65, 0
    %s68 = sadd.s32 %s67, 1
    %s69 = scalar_select %p66, %s67, %s68
    %p72 = pneg %p66
    %p73 = scmp.eq.s32.totalorder %s10, 1
    %p74 = por %p72, %p73
    %p75 = scmp.ne.s32.totalorder %s67, %s70
    %p76 = scmp.eq.s32.totalorder %s10, 0
    %p77 = por %p75, %p76
    %p78 = scmp.ne.s32.totalorder %s67, %s70
    %p79 = scmp.eq.s32.totalorder %s15, 1
    %p80 = por %p78, %p79
    %p81 = scmp.ne.s32.totalorder %s70, %s71
    %p82 = scmp.eq.s32.totalorder %s15, 0
    %p83 = por %p81, %p82
    %p84 = scmp.ne.s32.totalorder %s70, %s71
    %p85 = scmp.eq.s32.totalorder %s16, 1
    %p86 = por %p84, %p85
    %p88 = scmp.ne.s32.totalorder %s71, %s87
    %p89 = scmp.eq.s32.totalorder %s16, 0
    %p90 = por %p88, %p89
    %s91 = ssub.s32 %s10, %s17
    %p92 = scmp.eq.s32.totalorder %s91, 0
    %s94 = sadd.s32 %s93, 1
    %s95 = scalar_select %p92, %s93, %s94
    %p98 = pneg %p92
    %p99 = scmp.eq.s32.totalorder %s10, 1
    %p100 = por %p98, %p99
    %p101 = scmp.ne.s32.totalorder %s93, %s96
    %p102 = scmp.eq.s32.totalorder %s10, 0
    %p103 = por %p101, %p102
    %p104 = scmp.ne.s32.totalorder %s93, %s96
    %p105 = scmp.eq.s32.totalorder %s15, 1
    %p106 = por %p104, %p105
    %p107 = scmp.ne.s32.totalorder %s96, %s97
    %p108 = scmp.eq.s32.totalorder %s15, 0
    %p109 = por %p107, %p108
    %p110 = scmp.ne.s32.totalorder %s96, %s97
    %p111 = scmp.eq.s32.totalorder %s16, 1
    %p112 = por %p110, %p111
    %p114 = scmp.ne.s32.totalorder %s97, %s113
    %p115 = scmp.eq.s32.totalorder %s16, 0
    %p116 = por %p114, %p115
    %p117 = scmp.le.s32.totalorder 1, %s10
    %p118 = scmp.lt.s32.totalorder %s10, 3
    %p119 = pnand %p117, %p118
    %p120 = pneg %p119
    // Predicated region
    $region9: #{stack_conv_block.3} parent=5 // pred_check
      _
    $region10: #{stack_conv_block.3} parent=5 // pred_check_branch
      %122 = sbr.rel (%p119) target = $region12
    $region11: #{stack_conv_block.3} parent=5 // pred_region
      %s123 = ssub.s32 %s10, 1
      // Predicated region
      $region13: #{stack_conv_block.3} parent=11 // pred_check
        %p124 = pneg %p57
      $region14: #{stack_conv_block.3} parent=11 // pred_check_branch
        %126 = sbr.rel (%p124) target = $region16
      $region15: #{stack_conv_block.3} parent=11 // pred_region
        _
      $region16: #{stack_conv_block.3} parent=11 // pred_fallthru
        _
    $region12: #{stack_conv_block.3} parent=5 // pred_fallthru
      _
    %p127 = scmp.lt.s32.totalorder %s10, 2
    // Predicated region
    $region17: #{stack_conv_block.3} parent=5 // pred_check
      %p128 = pneg %p127
    $region18: #{stack_conv_block.3} parent=5 // pred_check_branch
      %130 = sbr.rel (%p128) target = $region20
    $region19: #{stack_conv_block.3} parent=5 // pred_region
      // Predicated region
      $region21: #{stack_conv_block.3} parent=19 // pred_check
        %p131 = pneg %p30
      $region22: #{stack_conv_block.3} parent=19 // pred_check_branch
        %133 = sbr.rel (%p131) target = $region24
      $region23: #{stack_conv_block.3} parent=19 // pred_region
        %s134 = smul.u32 2, %s10
        %p135 = scmp.lt.s32.totalorder %s134, 3
        %s136 = scalar_select %p135, %s134, 3
        %s137 = smul.addr %s136, 4
        %s138 = scalar_lea.vmem %s0, %s137
        %s139 = smul.u32 2, %s10
      $region24: #{stack_conv_block.3} parent=19 // pred_fallthru
        _
    $region20: #{stack_conv_block.3} parent=5 // pred_fallthru
      _
    %p140 = scmp.le.s32.totalorder 1, %s10
    %p141 = scmp.lt.s32.totalorder %s10, 3
    %p142 = pnand %p140, %p141
    %p143 = pneg %p142
    // Predicated region
    $region25: #{stack_conv_block.3} parent=5 // pred_check
      _
    $region26: #{stack_conv_block.3} parent=5 // pred_check_branch
      %145 = sbr.rel (%p142) target = $region28
    $region27: #{stack_conv_block.3} parent=5 // pred_region
      %s146 = ssub.s32 %s10, 1
      %s147 = smul.u32 2, %s15
      %p148 = scmp.lt.s32.totalorder %s147, 3
      %s149 = scalar_select %p148, %s147, 3
      %s150 = smul.addr %s149, 4
      %s151 = scalar_lea.vmem %s0, %s150
      %p152 = pneg %p36
      %p153 = pneg %p33
      %p154 = pneg %p57
      %p155 = pneg %p54
      %p156 = pneg %p83
      %p157 = pneg %p80
      %p158 = scmp.lt.s32.totalorder %s15, 1
      %s159 = scalar_select %p158, %s15, 1
      %s160 = smul.addr %s159, 8
      %s161 = scalar_lea.vmem %s2, %s160
      %p162 = pneg %p109
      %p163 = pneg %p106
      %p164 = scmp.lt.s32.totalorder %s15, 1
      %s165 = scalar_select %p164, %s15, 1
      %s166 = smul.addr %s165, 8
      %s167 = scalar_lea.vmem %s3, %s166
      %s168 = smul.u32 2, %s15
      %p169 = scmp.lt.s32.totalorder %s168, 3
      %s170 = scalar_select %p169, %s168, 3
      %s171 = smul.addr %s170, 4
      %s172 = scalar_lea.vmem %s0, %s171
      %s173 = smul.u32 2, %s15
      %p174 = scmp.lt.s32.totalorder %s15, 1
      %s175 = scalar_select %p174, %s15, 1
      %s176 = smul.addr %s175, 8
      %s177 = scalar_lea.vmem %s2, %s176
      %p178 = scmp.lt.s32.totalorder %s15, 1
      %s179 = scalar_select %p178, %s15, 1
      %s180 = smul.addr %s179, 8
      %s181 = scalar_lea.vmem %s3, %s180
      %v182 = vlaneseq
      %v183 = vand.u32 %v182, 127
      %v184 = vadd.s32 %v183, 128
      %vm185 = vcmp.lt.s32.totalorder %v183, 0
      %v186 = vsub.s32 0, %v183
      %v187 = vsel %vm185, %v186, %v183
      %v188 = vshrl.u32 %v187, 7
      %v189 = vand.u32 %v187, 127
      %v190 = vsub.s32 0, %v189
      %v191 = vsel %vm185, %v190, %v189
      %vm192 = vcmp.lt.s32.totalorder %v184, 0
      %v193 = vsub.s32 0, %v184
      %v194 = vsel %vm192, %v193, %v184
      %v195 = vshrl.u32 %v194, 7
      %v196 = vand.u32 %v194, 127
      %v197 = vsub.s32 0, %v196
      %v198 = vsel %vm192, %v197, %v196
      %vm199 = vcmp.ne.s32.totalorder %v191, 0
      %vm200 = vcmp.ne.s32.totalorder %v198, 0
      %vm201 = vcmp.lt.s32.totalorder %v191, 0
      %vm202 = vcmp.lt.s32.totalorder %v198, 0
      %vm203 = vmand %vm201, %vm199
      %vm204 = vmand %vm202, %vm200
      %v205 = vadd.s32 %v191, 128
      %v206 = vadd.s32 %v198, 128
      %v207 = vsel %vm203, %v205, %v191
      %v208 = vsel %vm204, %v206, %v198
      %v209 = vadd.s32 %v207, 4294967295
      %v210 = vadd.s32 %v208, 4294967295
      %vm211 = vcmp.ge.s32.totalorder %v209, 0
      %vm212 = vcmp.ge.s32.totalorder %v210, 0
      %vm213 = vcmp.lt.s32.totalorder %v209, 128
      %vm214 = vcmp.lt.s32.totalorder %v210, 128
      %vm215 = vmand %vm211, %vm213
      %vm216 = vmand %vm212, %vm214
      %v217 = vadd.s32 %v207, 1
      %v218 = vadd.s32 %v208, 1
      %vm219 = vcmp.ge.s32.totalorder %v217, 0
      %vm220 = vcmp.ge.s32.totalorder %v218, 0
      %vm221 = vcmp.lt.s32.totalorder %v217, 128
      %vm222 = vcmp.lt.s32.totalorder %v218, 128
      %vm223 = vmand %vm219, %vm221
      %vm224 = vmand %vm220, %vm222
      %v225 = vld [vmem:[%s172] sm:$0xff]
      %v227 = vcombine.high %v225, %v225
      %229 = vrot.lane.b32.xlu0 %v225, 1
      %v230 = vpop.permute.xlu0 %229
      %231 = vrot.lane.b32.xlu0 %v227, 1
      %v232 = vpop.permute.xlu0 %231
      %vm233 = vcmp.lt.s32.totalorder %v183, 1
      %v234 = vsel %vm233, %v230, %v232
      %v235 = vsel %vm233, %v232, %v230
      %v236 = vsel %vm215, 1, 0
      %v237 = vsel %vm216, 1, 0
      %vm238 = vcmp.eq.s32.totalorder %v236, 1
      %vm239 = vcmp.eq.s32.totalorder %v237, 1
      %v240 = vsel %vm238, %v235, 0.0
      %v241 = vsel %vm239, %v234, 0.0
      %v242 = vld [vmem:[%s1] sm:$0xff]
      %s243 = scalar_lea.vmem %s1, 8
      %v244 = vld [vmem:[%s243] sm:$0xff]
      %vm245 = vcmask 31744
      %v247 = vsel %vm245, %v244, 0
      %vm249 = vcmask 1043456
      %v250 = vsel %vm249, %v225, 0
      %v252 = vsel %vm249, %v227, 0
      %254 = vmatprep.subr.mxu0 0.0
      %255 = vmatpush1.msra.mxu0 0.0
      %256 = vmatprep.subr.mxu0 0.0
      %257 = vmatpush1.msra.mxu0 0.0
      %258 = vmatprep.subr.mxu0 0.0
      %259 = vmatpush1.msra.mxu0 0.0
      %260 = vmatprep.subr.mxu0 0.0
      %261 = vmatpush1.msra.mxu0 0.0
      %262 = vmatprep.subr.mxu0 0.0
      %263 = vmatpush1.msra.mxu0 0.0
      %264 = vmatprep.subr.mxu0 0.0
      %265 = vmatpush1.msra.mxu0 0.0
      %266 = vmatprep.subr.mxu0 0.0
      %267 = vmatpush1.msra.mxu0 0.0
      %268 = vmatprep.subr.mxu0 0.0
      %269 = vmatpush1.msra.mxu0 0.0
      %270 = vmatprep.subr.mxu0 0.0
      %271 = vmatpush1.msra.mxu0 0.0
      %272 = vmatprep.subr.mxu0 0.0
      %273 = vmatpush1.msra.mxu0 0.0
      %274 = vmatprep.subr.mxu0 0.0
      %275 = vmatpush1.msra.mxu0 0.0
      %276 = vmatprep.subr.mxu0 0.0
      %277 = vmatpush1.msra.mxu0 0.0
      %278 = vmatprep.subr.mxu0 0.0
      %279 = vmatpush1.msra.mxu0 0.0
      %280 = vmatprep.subr.mxu0 0.0
      %281 = vmatpush1.msra.mxu0 0.0
      %282 = vmatprep.subr.mxu0 0.0
      %283 = vmatpush1.msra.mxu0 0.0
      %284 = vmatprep.subr.mxu0 %v252
      %285 = vmatpush1.msra.mxu0 %v250
      %286 = vmatprep.subr.mxu0 0.0
      %287 = vmatpush2.msra.mxu0 0.0
      %288 = vmatprep.subr.mxu0 0.0
      %289 = vmatpush2.msra.mxu0 0.0
      %290 = vmatprep.subr.mxu0 0.0
      %291 = vmatpush2.msra.mxu0 0.0
      %292 = vmatprep.subr.mxu0 0.0
      %293 = vmatpush2.msra.mxu0 0.0
      %294 = vmatprep.subr.mxu0 0.0
      %295 = vmatpush2.msra.mxu0 0.0
      %296 = vmatprep.subr.mxu0 0.0
      %297 = vmatpush2.msra.mxu0 0.0
      %298 = vmatprep.subr.mxu0 0.0
      %299 = vmatpush2.msra.mxu0 0.0
      %300 = vmatprep.subr.mxu0 0.0
      %301 = vmatpush2.msra.mxu0 0.0
      %302 = vmatprep.subr.mxu0 0.0
      %303 = vmatpush2.msra.mxu0 0.0
      %304 = vmatprep.subr.mxu0 0.0
      %305 = vmatpush2.msra.mxu0 0.0
      %306 = vmatprep.subr.mxu0 0.0
      %307 = vmatpush2.msra.mxu0 0.0
      %308 = vmatprep.subr.mxu0 0.0
      %309 = vmatpush2.msra.mxu0 0.0
      %310 = vmatprep.subr.mxu0 0.0
      %311 = vmatpush2.msra.mxu0 0.0
      %312 = vmatprep.subr.mxu0 0.0
      %313 = vmatpush2.msra.mxu0 0.0
      %314 = vmatprep.subr.mxu0 0.0
      %315 = vmatpush2.msra.mxu0 0.0
      %316 = vmatprep.subr.mxu0 0.0
      %317 = vmatpush2.msra.mxu0 0.0
      %318 = vmatprep.mubr.f32.mxu0 0.0
      %319 = vmatmul.mubr.f32.gmra.mxu0 %v247
      %v320 = vpop.f32.mrf.mxu0
      %v321 = vadd.f32 0.0, %v320
      %v322 = vpop.f32.mrf.mxu0
      %v323 = vadd.f32 0.0, %v322
      %324 = vdwg.mxu0
      %v326 = vsel %vm245, %v242, 0
      %v329 = vsel %vm249, %v240, 0
      %v332 = vsel %vm249, %v241, 0
      %334 = vmatprep.subr.mxu0 0.0
      %335 = vmatpush1.msra.mxu0 0.0
      %336 = vmatprep.subr.mxu0 0.0
      %337 = vmatpush1.msra.mxu0 0.0
      %338 = vmatprep.subr.mxu0 0.0
      %339 = vmatpush1.msra.mxu0 0.0
      %340 = vmatprep.subr.mxu0 0.0
      %341 = vmatpush1.msra.mxu0 0.0
      %342 = vmatprep.subr.mxu0 0.0
      %343 = vmatpush1.msra.mxu0 0.0
      %344 = vmatprep.subr.mxu0 0.0
      %345 = vmatpush1.msra.mxu0 0.0
      %346 = vmatprep.subr.mxu0 0.0
      %347 = vmatpush1.msra.mxu0 0.0
      %348 = vmatprep.subr.mxu0 0.0
      %349 = vmatpush1.msra.mxu0 0.0
      %350 = vmatprep.subr.mxu0 0.0
      %351 = vmatpush1.msra.mxu0 0.0
      %352 = vmatprep.subr.mxu0 0.0
      %353 = vmatpush1.msra.mxu0 0.0
      %354 = vmatprep.subr.mxu0 0.0
      %355 = vmatpush1.msra.mxu0 0.0
      %356 = vmatprep.subr.mxu0 0.0
      %357 = vmatpush1.msra.mxu0 0.0
      %358 = vmatprep.subr.mxu0 0.0
      %359 = vmatpush1.msra.mxu0 0.0
      %360 = vmatprep.subr.mxu0 0.0
      %361 = vmatpush1.msra.mxu0 0.0
      %362 = vmatprep.subr.mxu0 0.0
      %363 = vmatpush1.msra.mxu0 0.0
      %364 = vmatprep.subr.mxu0 %v332
      %365 = vmatpush1.msra.mxu0 %v329
      %366 = vmatprep.subr.mxu0 0.0
      %367 = vmatpush2.msra.mxu0 0.0
      %368 = vmatprep.subr.mxu0 0.0
      %369 = vmatpush2.msra.mxu0 0.0
      %370 = vmatprep.subr.mxu0 0.0
      %371 = vmatpush2.msra.mxu0 0.0
      %372 = vmatprep.subr.mxu0 0.0
      %373 = vmatpush2.msra.mxu0 0.0
      %374 = vmatprep.subr.mxu0 0.0
      %375 = vmatpush2.msra.mxu0 0.0
      %376 = vmatprep.subr.mxu0 0.0
      %377 = vmatpush2.msra.mxu0 0.0
      %378 = vmatprep.subr.mxu0 0.0
      %379 = vmatpush2.msra.mxu0 0.0
      %380 = vmatprep.subr.mxu0 0.0
      %381 = vmatpush2.msra.mxu0 0.0
      %382 = vmatprep.subr.mxu0 0.0
      %383 = vmatpush2.msra.mxu0 0.0
      %384 = vmatprep.subr.mxu0 0.0
      %385 = vmatpush2.msra.mxu0 0.0
      %386 = vmatprep.subr.mxu0 0.0
      %387 = vmatpush2.msra.mxu0 0.0
      %388 = vmatprep.subr.mxu0 0.0
      %389 = vmatpush2.msra.mxu0 0.0
      %390 = vmatprep.subr.mxu0 0.0
      %391 = vmatpush2.msra.mxu0 0.0
      %392 = vmatprep.subr.mxu0 0.0
      %393 = vmatpush2.msra.mxu0 0.0
      %394 = vmatprep.subr.mxu0 0.0
      %395 = vmatpush2.msra.mxu0 0.0
      %396 = vmatprep.subr.mxu0 0.0
      %397 = vmatpush2.msra.mxu0 0.0
      %398 = vmatprep.mubr.f32.mxu0 0.0
      %399 = vmatmul.mubr.f32.gmra.mxu0 %v326
      %v400 = vpop.f32.mrf.mxu0
      %v401 = vadd.f32 %v321, %v400
      %v402 = vpop.f32.mrf.mxu0
      %v403 = vadd.f32 %v323, %v402
      %404 = vdwg.mxu0
      %405 = vrot.lane.b32.xlu0 %v225, 127
      %v406 = vpop.permute.xlu0 %405
      %407 = vrot.lane.b32.xlu0 %v227, 127
      %v408 = vpop.permute.xlu0 %407
      %vm409 = vcmp.lt.s32.totalorder %v183, 127
      %v410 = vsel %vm409, %v406, %v408
      %v411 = vsel %vm409, %v408, %v406
      %v412 = vsel %vm223, 1, 0
      %v413 = vsel %vm224, 1, 0
      %vm414 = vcmp.eq.s32.totalorder %v412, 1
      %vm415 = vcmp.eq.s32.totalorder %v413, 1
      %v416 = vsel %vm414, %v410, 0.0
      %v417 = vsel %vm415, %v411, 0.0
      %s418 = scalar_lea.vmem %s1, 16
      %v419 = vld [vmem:[%s418] sm:$0xff]
      %v421 = vsel %vm245, %v419, 0
      %v424 = vsel %vm249, %v416, 0
      %v427 = vsel %vm249, %v417, 0
      %429 = vmatprep.subr.mxu0 0.0
      %430 = vmatpush1.msra.mxu0 0.0
      %431 = vmatprep.subr.mxu0 0.0
      %432 = vmatpush1.msra.mxu0 0.0
      %433 = vmatprep.subr.mxu0 0.0
      %434 = vmatpush1.msra.mxu0 0.0
      %435 = vmatprep.subr.mxu0 0.0
      %436 = vmatpush1.msra.mxu0 0.0
      %437 = vmatprep.subr.mxu0 0.0
      %438 = vmatpush1.msra.mxu0 0.0
      %439 = vmatprep.subr.mxu0 0.0
      %440 = vmatpush1.msra.mxu0 0.0
      %441 = vmatprep.subr.mxu0 0.0
      %442 = vmatpush1.msra.mxu0 0.0
      %443 = vmatprep.subr.mxu0 0.0
      %444 = vmatpush1.msra.mxu0 0.0
      %445 = vmatprep.subr.mxu0 0.0
      %446 = vmatpush1.msra.mxu0 0.0
      %447 = vmatprep.subr.mxu0 0.0
      %448 = vmatpush1.msra.mxu0 0.0
      %449 = vmatprep.subr.mxu0 0.0
      %450 = vmatpush1.msra.mxu0 0.0
      %451 = vmatprep.subr.mxu0 0.0
      %452 = vmatpush1.msra.mxu0 0.0
      %453 = vmatprep.subr.mxu0 0.0
      %454 = vmatpush1.msra.mxu0 0.0
      %455 = vmatprep.subr.mxu0 0.0
      %456 = vmatpush1.msra.mxu0 0.0
      %457 = vmatprep.subr.mxu0 0.0
      %458 = vmatpush1.msra.mxu0 0.0
      %459 = vmatprep.subr.mxu0 %v427
      %460 = vmatpush1.msra.mxu0 %v424
      %461 = vmatprep.subr.mxu0 0.0
      %462 = vmatpush2.msra.mxu0 0.0
      %463 = vmatprep.subr.mxu0 0.0
      %464 = vmatpush2.msra.mxu0 0.0
      %465 = vmatprep.subr.mxu0 0.0
      %466 = vmatpush2.msra.mxu0 0.0
      %467 = vmatprep.subr.mxu0 0.0
      %468 = vmatpush2.msra.mxu0 0.0
      %469 = vmatprep.subr.mxu0 0.0
      %470 = vmatpush2.msra.mxu0 0.0
      %471 = vmatprep.subr.mxu0 0.0
      %472 = vmatpush2.msra.mxu0 0.0
      %473 = vmatprep.subr.mxu0 0.0
      %474 = vmatpush2.msra.mxu0 0.0
      %475 = vmatprep.subr.mxu0 0.0
      %476 = vmatpush2.msra.mxu0 0.0
      %477 = vmatprep.subr.mxu0 0.0
      %478 = vmatpush2.msra.mxu0 0.0
      %479 = vmatprep.subr.mxu0 0.0
      %480 = vmatpush2.msra.mxu0 0.0
      %481 = vmatprep.subr.mxu0 0.0
      %482 = vmatpush2.msra.mxu0 0.0
      %483 = vmatprep.subr.mxu0 0.0
      %484 = vmatpush2.msra.mxu0 0.0
      %485 = vmatprep.subr.mxu0 0.0
      %486 = vmatpush2.msra.mxu0 0.0
      %487 = vmatprep.subr.mxu0 0.0
      %488 = vmatpush2.msra.mxu0 0.0
      %489 = vmatprep.subr.mxu0 0.0
      %490 = vmatpush2.msra.mxu0 0.0
      %491 = vmatprep.subr.mxu0 0.0
      %492 = vmatpush2.msra.mxu0 0.0
      %493 = vmatprep.mubr.f32.mxu0 0.0
      %494 = vmatmul.mubr.f32.gmra.mxu0 %v421
      %v495 = vpop.f32.mrf.mxu0
      %v496 = vadd.f32 0.0, %v495
      %v497 = vpop.f32.mrf.mxu0
      %v498 = vadd.f32 0.0, %v497
      %499 = vdwg.mxu0
      %v500 = vadd.f32 %v401, %v496
      %v501 = vadd.f32 %v403, %v498
      %v502 = vadd.f32 %v500, %v501
      %503 = vadd.xlane.f32.xlu0 %v502
      %v504 = vpop.xlane.xlu0 %503
      %vm505 = vcmask 7168
      %506 = vst.msk [vmem:[%s177] sm:$0xff] %vm505, %v504
      %v507 = vmul.f32 %v500, %v500
      %v508 = vmul.f32 %v501, %v501
      %v509 = vadd.f32 %v507, %v508
      %510 = vadd.xlane.f32.xlu0 %v509
      %v511 = vpop.xlane.xlu0 %510
      %512 = vst.msk [vmem:[%s181] sm:$0xff] %vm505, %v511
      %p513 = scmp.lt.s32.totalorder %s15, 1
      %s514 = scalar_select %p513, %s15, 1
      %s515 = smul.addr %s514, 8
      %s516 = scalar_lea.vmem %s2, %s515
      %p517 = scmp.lt.s32.totalorder %s15, 1
      %s518 = scalar_select %p517, %s15, 1
      %s519 = smul.addr %s518, 8
      %s520 = scalar_lea.vmem %s3, %s519
      // Predicated region
      $region29: #{stack_conv_block.3} parent=27 // pred_check
        %p521 = pneg %p80
      $region30: #{stack_conv_block.3} parent=27 // pred_check_branch
        %523 = sbr.rel (%p521) target = $region32
      $region31: #{stack_conv_block.3} parent=27 // pred_region
        _
      $region32: #{stack_conv_block.3} parent=27 // pred_fallthru
        _
      // Predicated region
      $region33: #{stack_conv_block.3} parent=27 // pred_check
        %p524 = pneg %p106
      $region34: #{stack_conv_block.3} parent=27 // pred_check_branch
        %526 = sbr.rel (%p524) target = $region36
      $region35: #{stack_conv_block.3} parent=27 // pred_region
        _
      $region36: #{stack_conv_block.3} parent=27 // pred_fallthru
        _
    $region28: #{stack_conv_block.3} parent=5 // pred_fallthru
      _
    %p527 = scmp.le.s32.totalorder 2, %s10
    // Predicated region
    $region37: #{stack_conv_block.3} parent=5 // pred_check
      %p528 = pneg %p527
    $region38: #{stack_conv_block.3} parent=5 // pred_check_branch
      %530 = sbr.rel (%p528) target = $region40
    $region39: #{stack_conv_block.3} parent=5 // pred_region
      %s531 = ssub.s32 %s10, 2
      // Predicated region
      $region41: #{stack_conv_block.3} parent=39 // pred_check
        %p532 = pneg %p86
      $region42: #{stack_conv_block.3} parent=39 // pred_check_branch
        %534 = sbr.rel (%p532) target = $region44
      $region43: #{stack_conv_block.3} parent=39 // pred_region
        %p535 = scmp.lt.s32.totalorder %s16, 1
        %s536 = scalar_select %p535, %s16, 1
        %s537 = smul.addr %s536, 8
        %s538 = scalar_lea.vmem %s2, %s537
      $region44: #{stack_conv_block.3} parent=39 // pred_fallthru
        _
      // Predicated region
      $region45: #{stack_conv_block.3} parent=39 // pred_check
        %p539 = pneg %p112
      $region46: #{stack_conv_block.3} parent=39 // pred_check_branch
        %541 = sbr.rel (%p539) target = $region48
      $region47: #{stack_conv_block.3} parent=39 // pred_region
        %p542 = scmp.lt.s32.totalorder %s16, 1
        %s543 = scalar_select %p542, %s16, 1
        %s544 = smul.addr %s543, 8
        %s545 = scalar_lea.vmem %s3, %s544
      $region48: #{stack_conv_block.3} parent=39 // pred_fallthru
        _
    $region40: #{stack_conv_block.3} parent=5 // pred_fallthru
      _
  $region6: #{stack_conv_block.3} parent=0 // loop_footer
    %s14 = sadd.s32 1, %s10
  $region7: #{stack_conv_block.3} parent=0 // loop_footer_branch
    %9 = sbr.rel target = $region3
  $region8: #{stack_conv_block.3} parent=0 // loop_exit
    _

// kernel: stack_conv_block.4
$region0: #{stack_conv_block.4}
  #allocation0 [shape = 'u32[]', space=smem, size = 0x4, offset = 0x4, fixed_abs, tag = 'smem constant byte address 0x4 - core index']
  #allocation1 [shape = 'u32[144,128]{1,0:T(1,128)}', space=vmem, size = 0x12000, scoped, tag = 'internal scratch']
  %s0 = inlined_call_operand.vmem [shape: f32[4,512], index: 0, kind: input, shape index: {}]
  %s1 = inlined_call_operand.vmem [shape: f32[3,8,4], index: 1, kind: input, shape index: {}]
  %s2 = inlined_call_operand.vmem [shape: f32[3,8,8], index: 2, kind: input, shape index: {}]
  %s3 = inlined_call_operand.vmem [shape: f32[8,1], index: 3, kind: input, shape index: {}]
  %s4 = inlined_call_operand.vmem [shape: f32[8,1], index: 4, kind: input, shape index: {}]
  %s5 = inlined_call_operand.vmem [shape: f32[2,8,1], index: 5, kind: output, shape index: {0}]
  %s6 = inlined_call_operand.vmem [shape: f32[2,8,1], index: 6, kind: output, shape index: {1}]
  %7 = xla_tuple %s5, %s6
  %s8 = sld [smem:[#allocation0]]
  $region61: #{stack_conv_block.4} parent=0
    _
  %s10 = ssub.s32 1, %s8
  %s11 = scalar_select 0, %s10, %s8
  loop: start=0, step=1, limit=4
  $region2: #{stack_conv_block.4} parent=0 // loop_pre_header
    _
  $region3: #{stack_conv_block.4} parent=0 // loop_header
    %s13 = sphi 0, %s17
    %p14 = scmp.ge.s32.totalorder %s13, 4
    %s23 = sphi 0, %s25
    %s26 = sphi 0, %s23
    %s27 = sphi 0, %s26
    %s43 = sphi 0, %s27
    %s47 = sphi 0, %s47
    %s49 = sphi 0, %s47
    %s50 = sphi 0, %s49
    %s64 = sphi 0, %s50
    %s68 = sphi 0, %s68
    %s70 = sphi 0, %s68
    %s71 = sphi 0, %s70
    %s85 = sphi 0, %s71
    %s89 = sphi 0, %s89
    %s91 = sphi 0, %s89
    %s92 = sphi 0, %s91
    %s106 = sphi 0, %s92
    %s110 = sphi 0, %s110
    %s112 = sphi 0, %s110
    %s113 = sphi 0, %s112
    %s127 = sphi 0, %s113
    %s133 = sphi 0, %s135
    %s136 = sphi 0, %s133
    %s137 = sphi 0, %s136
    %s153 = sphi 0, %s137
    %s159 = sphi 0, %s161
    %s162 = sphi 0, %s159
    %s163 = sphi 0, %s162
    %s179 = sphi 0, %s163
  $region4: #{stack_conv_block.4} parent=0 // loop_header_branch
    %16 = sbr.rel (%p14) target = $region8
  $region5: #{stack_conv_block.4} parent=0 // loop_body
    %s18 = ssub.s32 %s13, 1
    %s19 = ssub.s32 %s13, 2
    %s20 = sadd.s32 %s13, 1
    %s21 = ssub.s32 %s13, %s20
    %p22 = scmp.eq.s32.totalorder %s21, 0
    %s24 = sadd.s32 %s23, 1
    %s25 = scalar_select %p22, %s23, %s24
    %p28 = pneg %p22
    %p29 = scmp.eq.s32.totalorder %s13, 1
    %p30 = por %p28, %p29
    %p31 = scmp.ne.s32.totalorder %s23, %s26
    %p32 = scmp.eq.s32.totalorder %s13, 0
    %p33 = por %p31, %p32
    %p34 = scmp.ne.s32.totalorder %s23, %s26
    %p35 = scmp.eq.s32.totalorder %s18, 1
    %p36 = por %p34, %p35
    %p37 = scmp.ne.s32.totalorder %s26, %s27
    %p38 = scmp.eq.s32.totalorder %s18, 0
    %p39 = por %p37, %p38
    %p40 = scmp.ne.s32.totalorder %s26, %s27
    %p41 = scmp.eq.s32.totalorder %s19, 1
    %p42 = por %p40, %p41
    %p44 = scmp.ne.s32.totalorder %s27, %s43
    %p45 = scmp.eq.s32.totalorder %s19, 0
    %p46 = por %p44, %p45
    %s48 = sadd.s32 %s47, 1
    %p51 = scmp.eq.s32.totalorder %s13, 1
    %p52 = scmp.ne.s32.totalorder %s47, %s49
    %p53 = scmp.eq.s32.totalorder %s13, 0
    %p54 = por %p52, %p53
    %p55 = scmp.ne.s32.totalorder %s47, %s49
    %p56 = scmp.eq.s32.totalorder %s18, 1
    %p57 = por %p55, %p56
    %p58 = scmp.ne.s32.totalorder %s49, %s50
    %p59 = scmp.eq.s32.totalorder %s18, 0
    %p60 = por %p58, %p59
    %p61 = scmp.ne.s32.totalorder %s49, %s50
    %p62 = scmp.eq.s32.totalorder %s19, 1
    %p63 = por %p61, %p62
    %p65 = scmp.ne.s32.totalorder %s50, %s64
    %p66 = scmp.eq.s32.totalorder %s19, 0
    %p67 = por %p65, %p66
    %s69 = sadd.s32 %s68, 1
    %p72 = scmp.eq.s32.totalorder %s13, 1
    %p73 = scmp.ne.s32.totalorder %s68, %s70
    %p74 = scmp.eq.s32.totalorder %s13, 0
    %p75 = por %p73, %p74
    %p76 = scmp.ne.s32.totalorder %s68, %s70
    %p77 = scmp.eq.s32.totalorder %s18, 1
    %p78 = por %p76, %p77
    %p79 = scmp.ne.s32.totalorder %s70, %s71
    %p80 = scmp.eq.s32.totalorder %s18, 0
    %p81 = por %p79, %p80
    %p82 = scmp.ne.s32.totalorder %s70, %s71
    %p83 = scmp.eq.s32.totalorder %s19, 1
    %p84 = por %p82, %p83
    %p86 = scmp.ne.s32.totalorder %s71, %s85
    %p87 = scmp.eq.s32.totalorder %s19, 0
    %p88 = por %p86, %p87
    %s90 = sadd.s32 %s89, 1
    %p93 = scmp.eq.s32.totalorder %s13, 1
    %p94 = scmp.ne.s32.totalorder %s89, %s91
    %p95 = scmp.eq.s32.totalorder %s13, 0
    %p96 = por %p94, %p95
    %p97 = scmp.ne.s32.totalorder %s89, %s91
    %p98 = scmp.eq.s32.totalorder %s18, 1
    %p99 = por %p97, %p98
    %p100 = scmp.ne.s32.totalorder %s91, %s92
    %p101 = scmp.eq.s32.totalorder %s18, 0
    %p102 = por %p100, %p101
    %p103 = scmp.ne.s32.totalorder %s91, %s92
    %p104 = scmp.eq.s32.totalorder %s19, 1
    %p105 = por %p103, %p104
    %p107 = scmp.ne.s32.totalorder %s92, %s106
    %p108 = scmp.eq.s32.totalorder %s19, 0
    %p109 = por %p107, %p108
    %s111 = sadd.s32 %s110, 1
    %p114 = scmp.eq.s32.totalorder %s13, 1
    %p115 = scmp.ne.s32.totalorder %s110, %s112
    %p116 = scmp.eq.s32.totalorder %s13, 0
    %p117 = por %p115, %p116
    %p118 = scmp.ne.s32.totalorder %s110, %s112
    %p119 = scmp.eq.s32.totalorder %s18, 1
    %p120 = por %p118, %p119
    %p121 = scmp.ne.s32.totalorder %s112, %s113
    %p122 = scmp.eq.s32.totalorder %s18, 0
    %p123 = por %p121, %p122
    %p124 = scmp.ne.s32.totalorder %s112, %s113
    %p125 = scmp.eq.s32.totalorder %s19, 1
    %p126 = por %p124, %p125
    %p128 = scmp.ne.s32.totalorder %s113, %s127
    %p129 = scmp.eq.s32.totalorder %s19, 0
    %p130 = por %p128, %p129
    %s131 = ssub.s32 %s13, %s20
    %p132 = scmp.eq.s32.totalorder %s131, 0
    %s134 = sadd.s32 %s133, 1
    %s135 = scalar_select %p132, %s133, %s134
    %p138 = pneg %p132
    %p139 = scmp.eq.s32.totalorder %s13, 1
    %p140 = por %p138, %p139
    %p141 = scmp.ne.s32.totalorder %s133, %s136
    %p142 = scmp.eq.s32.totalorder %s13, 0
    %p143 = por %p141, %p142
    %p144 = scmp.ne.s32.totalorder %s133, %s136
    %p145 = scmp.eq.s32.totalorder %s18, 1
    %p146 = por %p144, %p145
    %p147 = scmp.ne.s32.totalorder %s136, %s137
    %p148 = scmp.eq.s32.totalorder %s18, 0
    %p149 = por %p147, %p148
    %p150 = scmp.ne.s32.totalorder %s136, %s137
    %p151 = scmp.eq.s32.totalorder %s19, 1
    %p152 = por %p150, %p151
    %p154 = scmp.ne.s32.totalorder %s137, %s153
    %p155 = scmp.eq.s32.totalorder %s19, 0
    %p156 = por %p154, %p155
    %s157 = ssub.s32 %s13, %s20
    %p158 = scmp.eq.s32.totalorder %s157, 0
    %s160 = sadd.s32 %s159, 1
    %s161 = scalar_select %p158, %s159, %s160
    %p164 = pneg %p158
    %p165 = scmp.eq.s32.totalorder %s13, 1
    %p166 = por %p164, %p165
    %p167 = scmp.ne.s32.totalorder %s159, %s162
    %p168 = scmp.eq.s32.totalorder %s13, 0
    %p169 = por %p167, %p168
    %p170 = scmp.ne.s32.totalorder %s159, %s162
    %p171 = scmp.eq.s32.totalorder %s18, 1
    %p172 = por %p170, %p171
    %p173 = scmp.ne.s32.totalorder %s162, %s163
    %p174 = scmp.eq.s32.totalorder %s18, 0
    %p175 = por %p173, %p174
    %p176 = scmp.ne.s32.totalorder %s162, %s163
    %p177 = scmp.eq.s32.totalorder %s19, 1
    %p178 = por %p176, %p177
    %p180 = scmp.ne.s32.totalorder %s163, %s179
    %p181 = scmp.eq.s32.totalorder %s19, 0
    %p182 = por %p180, %p181
    %p183 = scmp.le.s32.totalorder 1, %s13
    %p184 = scmp.lt.s32.totalorder %s13, 3
    %p185 = pnand %p183, %p184
    %p186 = pneg %p185
    // Predicated region
    $region9: #{stack_conv_block.4} parent=5 // pred_check
      _
    $region10: #{stack_conv_block.4} parent=5 // pred_check_branch
      %188 = sbr.rel (%p185) target = $region12
    $region11: #{stack_conv_block.4} parent=5 // pred_region
      %s189 = ssub.s32 %s13, 1
      // Predicated region
      $region13: #{stack_conv_block.4} parent=11 // pred_check
        %p190 = pneg %p60
      $region14: #{stack_conv_block.4} parent=11 // pred_check_branch
        %192 = sbr.rel (%p190) target = $region16
      $region15: #{stack_conv_block.4} parent=11 // pred_region
        _
      $region16: #{stack_conv_block.4} parent=11 // pred_fallthru
        _
      // Predicated region
      $region17: #{stack_conv_block.4} parent=11 // pred_check
        %p193 = pneg %p81
      $region18: #{stack_conv_block.4} parent=11 // pred_check_branch
        %195 = sbr.rel (%p193) target = $region20
      $region19: #{stack_conv_block.4} parent=11 // pred_region
        _
      $region20: #{stack_conv_block.4} parent=11 // pred_fallthru
        _
      // Predicated region
      $region21: #{stack_conv_block.4} parent=11 // pred_check
        %p196 = pneg %p102
      $region22: #{stack_conv_block.4} parent=11 // pred_check_branch
        %198 = sbr.rel (%p196) target = $region24
      $region23: #{stack_conv_block.4} parent=11 // pred_region
        _
      $region24: #{stack_conv_block.4} parent=11 // pred_fallthru
        _
      // Predicated region
      $region25: #{stack_conv_block.4} parent=11 // pred_check
        %p199 = pneg %p123
      $region26: #{stack_conv_block.4} parent=11 // pred_check_branch
        %201 = sbr.rel (%p199) target = $region28
      $region27: #{stack_conv_block.4} parent=11 // pred_region
        _
      $region28: #{stack_conv_block.4} parent=11 // pred_fallthru
        _
    $region12: #{stack_conv_block.4} parent=5 // pred_fallthru
      _
    %p202 = scmp.lt.s32.totalorder %s13, 2
    // Predicated region
    $region29: #{stack_conv_block.4} parent=5 // pred_check
      %p203 = pneg %p202
    $region30: #{stack_conv_block.4} parent=5 // pred_check_branch
      %205 = sbr.rel (%p203) target = $region32
    $region31: #{stack_conv_block.4} parent=5 // pred_region
      // Predicated region
      $region33: #{stack_conv_block.4} parent=31 // pred_check
        %p206 = pneg %p33
      $region34: #{stack_conv_block.4} parent=31 // pred_check_branch
        %208 = sbr.rel (%p206) target = $region36
      $region35: #{stack_conv_block.4} parent=31 // pred_region
        %s209 = smul.u32 2, %s13
        %p210 = scmp.lt.s32.totalorder %s209, 3
        %s211 = scalar_select %p210, %s209, 3
        %s212 = smul.addr %s211, 4
        %s213 = scalar_lea.vmem %s0, %s212
        %s214 = smul.u32 2, %s13
      $region36: #{stack_conv_block.4} parent=31 // pred_fallthru
        _
    $region32: #{stack_conv_block.4} parent=5 // pred_fallthru
      _
    %p215 = scmp.le.s32.totalorder 1, %s13
    %p216 = scmp.lt.s32.totalorder %s13, 3
    %p217 = pnand %p215, %p216
    %p218 = pneg %p217
    // Predicated region
    $region37: #{stack_conv_block.4} parent=5 // pred_check
      _
    $region38: #{stack_conv_block.4} parent=5 // pred_check_branch
      %220 = sbr.rel (%p217) target = $region40
    $region39: #{stack_conv_block.4} parent=5 // pred_region
      %s221 = ssub.s32 %s13, 1
      %s222 = smul.u32 2, %s18
      %p223 = scmp.lt.s32.totalorder %s222, 3
      %s224 = scalar_select %p223, %s222, 3
      %s225 = smul.addr %s224, 4
      %s226 = scalar_lea.vmem %s0, %s225
      %p227 = pneg %p39
      %p228 = pneg %p36
      %p229 = pneg %p60
      %p230 = pneg %p57
      %p231 = pneg %p81
      %p232 = pneg %p78
      %p233 = pneg %p102
      %p234 = pneg %p99
      %p235 = pneg %p123
      %p236 = pneg %p120
      %p237 = pneg %p149
      %p238 = pneg %p146
      %p239 = scmp.lt.s32.totalorder %s18, 1
      %s240 = scalar_select %p239, %s18, 1
      %s241 = smul.addr %s240, 8
      %s242 = scalar_lea.vmem %s5, %s241
      %p243 = pneg %p175
      %p244 = pneg %p172
      %p245 = scmp.lt.s32.totalorder %s18, 1
      %s246 = scalar_select %p245, %s18, 1
      %s247 = smul.addr %s246, 8
      %s248 = scalar_lea.vmem %s6, %s247
      %s249 = smul.u32 2, %s18
      %p250 = scmp.lt.s32.totalorder %s249, 3
      %s251 = scalar_select %p250, %s249, 3
      %s252 = smul.addr %s251, 4
      %s253 = scalar_lea.vmem %s0, %s252
      %s254 = smul.u32 2, %s18
      %p255 = scmp.lt.s32.totalorder %s18, 1
      %s256 = scalar_select %p255, %s18, 1
      %s257 = smul.addr %s256, 8
      %s258 = scalar_lea.vmem %s5, %s257
      %p259 = scmp.lt.s32.totalorder %s18, 1
      %s260 = scalar_select %p259, %s18, 1
      %s261 = smul.addr %s260, 8
      %s262 = scalar_lea.vmem %s6, %s261
      %v263 = vlaneseq
      %v264 = vand.u32 %v263, 127
      %v265 = vadd.s32 %v264, 128
      %vm266 = vcmp.lt.s32.totalorder %v264, 0
      %v267 = vsub.s32 0, %v264
      %v268 = vsel %vm266, %v267, %v264
      %v269 = vshrl.u32 %v268, 7
      %v270 = vand.u32 %v268, 127
      %v271 = vsub.s32 0, %v270
      %v272 = vsel %vm266, %v271, %v270
      %vm273 = vcmp.lt.s32.totalorder %v265, 0
      %v274 = vsub.s32 0, %v265
      %v275 = vsel %vm273, %v274, %v265
      %v276 = vshrl.u32 %v275, 7
      %v277 = vand.u32 %v275, 127
      %v278 = vsub.s32 0, %v277
      %v279 = vsel %vm273, %v278, %v277
      %vm280 = vcmp.ne.s32.totalorder %v272, 0
      %vm281 = vcmp.ne.s32.totalorder %v279, 0
      %vm282 = vcmp.lt.s32.totalorder %v272, 0
      %vm283 = vcmp.lt.s32.totalorder %v279, 0
      %vm284 = vmand %vm282, %vm280
      %vm285 = vmand %vm283, %vm281
      %v286 = vadd.s32 %v272, 128
      %v287 = vadd.s32 %v279, 128
      %v288 = vsel %vm284, %v286, %v272
      %v289 = vsel %vm285, %v287, %v279
      %v290 = vadd.s32 %v288, 4294967295
      %v291 = vadd.s32 %v289, 4294967295
      %vm292 = vcmp.ge.s32.totalorder %v290, 0
      %vm293 = vcmp.ge.s32.totalorder %v291, 0
      %vm294 = vcmp.lt.s32.totalorder %v290, 128
      %vm295 = vcmp.lt.s32.totalorder %v291, 128
      %vm296 = vmand %vm292, %vm294
      %vm297 = vmand %vm293, %vm295
      %v298 = vadd.s32 %v288, 1
      %v299 = vadd.s32 %v289, 1
      %vm300 = vcmp.ge.s32.totalorder %v298, 0
      %vm301 = vcmp.ge.s32.totalorder %v299, 0
      %vm302 = vcmp.lt.s32.totalorder %v298, 128
      %vm303 = vcmp.lt.s32.totalorder %v299, 128
      %vm304 = vmand %vm300, %vm302
      %vm305 = vmand %vm301, %vm303
      %v306 = vld [vmem:[%s253] sm:$0xff]
      %v308 = vcombine.high %v306, %v306
      %310 = vrot.lane.b32.xlu0 %v306, 1
      %v311 = vpop.permute.xlu0 %310
      %312 = vrot.lane.b32.xlu0 %v308, 1
      %v313 = vpop.permute.xlu0 %312
      %vm314 = vcmp.lt.s32.totalorder %v264, 1
      %v315 = vsel %vm314, %v311, %v313
      %v316 = vsel %vm314, %v313, %v311
      %v317 = vsel %vm296, 1, 0
      %v318 = vsel %vm297, 1, 0
      %vm319 = vcmp.eq.s32.totalorder %v317, 1
      %vm320 = vcmp.eq.s32.totalorder %v318, 1
      %v321 = vsel %vm319, %v316, 0.0
      %v322 = vsel %vm320, %v315, 0.0
      %v323 = vld [vmem:[%s1] sm:$0xff]
      %s324 = scalar_lea.vmem %s1, 8
      %v325 = vld [vmem:[%s324] sm:$0xff]
      %vm326 = vcmask 31744
      %v328 = vsel %vm326, %v325, 0
      %vm330 = vcmask 1043456
      %v331 = vsel %vm330, %v306, 0
      %v333 = vsel %vm330, %v308, 0
      %335 = vmatprep.subr.mxu0 0.0
      %336 = vmatpush1.msra.mxu0 0.0
      %337 = vmatprep.subr.mxu0 0.0
      %338 = vmatpush1.msra.mxu0 0.0
      %339 = vmatprep.subr.mxu0 0.0
      %340 = vmatpush1.msra.mxu0 0.0
      %341 = vmatprep.subr.mxu0 0.0
      %342 = vmatpush1.msra.mxu0 0.0
      %343 = vmatprep.subr.mxu0 0.0
      %344 = vmatpush1.msra.mxu0 0.0
      %345 = vmatprep.subr.mxu0 0.0
      %346 = vmatpush1.msra.mxu0 0.0
      %347 = vmatprep.subr.mxu0 0.0
      %348 = vmatpush1.msra.mxu0 0.0
      %349 = vmatprep.subr.mxu0 0.0
      %350 = vmatpush1.msra.mxu0 0.0
      %351 = vmatprep.subr.mxu0 0.0
      %352 = vmatpush1.msra.mxu0 0.0
      %353 = vmatprep.subr.mxu0 0.0
      %354 = vmatpush1.msra.mxu0 0.0
      %355 = vmatprep.subr.mxu0 0.0
      %356 = vmatpush1.msra.mxu0 0.0
      %357 = vmatprep.subr.mxu0 0.0
      %358 = vmatpush1.msra.mxu0 0.0
      %359 = vmatprep.subr.mxu0 0.0
      %360 = vmatpush1.msra.mxu0 0.0
      %361 = vmatprep.subr.mxu0 0.0
      %362 = vmatpush1.msra.mxu0 0.0
      %363 = vmatprep.subr.mxu0 0.0
      %364 = vmatpush1.msra.mxu0 0.0
      %365 = vmatprep.subr.mxu0 %v333
      %366 = vmatpush1.msra.mxu0 %v331
      %367 = vmatprep.subr.mxu0 0.0
      %368 = vmatpush2.msra.mxu0 0.0
      %369 = vmatprep.subr.mxu0 0.0
      %370 = vmatpush2.msra.mxu0 0.0
      %371 = vmatprep.subr.mxu0 0.0
      %372 = vmatpush2.msra.mxu0 0.0
      %373 = vmatprep.subr.mxu0 0.0
      %374 = vmatpush2.msra.mxu0 0.0
      %375 = vmatprep.subr.mxu0 0.0
      %376 = vmatpush2.msra.mxu0 0.0
      %377 = vmatprep.subr.mxu0 0.0
      %378 = vmatpush2.msra.mxu0 0.0
      %379 = vmatprep.subr.mxu0 0.0
      %380 = vmatpush2.msra.mxu0 0.0
      %381 = vmatprep.subr.mxu0 0.0
      %382 = vmatpush2.msra.mxu0 0.0
      %383 = vmatprep.subr.mxu0 0.0
      %384 = vmatpush2.msra.mxu0 0.0
      %385 = vmatprep.subr.mxu0 0.0
      %386 = vmatpush2.msra.mxu0 0.0
      %387 = vmatprep.subr.mxu0 0.0
      %388 = vmatpush2.msra.mxu0 0.0
      %389 = vmatprep.subr.mxu0 0.0
      %390 = vmatpush2.msra.mxu0 0.0
      %391 = vmatprep.subr.mxu0 0.0
      %392 = vmatpush2.msra.mxu0 0.0
      %393 = vmatprep.subr.mxu0 0.0
      %394 = vmatpush2.msra.mxu0 0.0
      %395 = vmatprep.subr.mxu0 0.0
      %396 = vmatpush2.msra.mxu0 0.0
      %397 = vmatprep.subr.mxu0 0.0
      %398 = vmatpush2.msra.mxu0 0.0
      %399 = vmatprep.mubr.f32.mxu0 0.0
      %400 = vmatmul.mubr.f32.gmra.mxu0 %v328
      %v401 = vpop.f32.mrf.mxu0
      %v402 = vadd.f32 0.0, %v401
      %v403 = vpop.f32.mrf.mxu0
      %v404 = vadd.f32 0.0, %v403
      %405 = vdwg.mxu0
      %v407 = vsel %vm326, %v323, 0
      %v410 = vsel %vm330, %v321, 0
      %v413 = vsel %vm330, %v322, 0
      %415 = vmatprep.subr.mxu0 0.0
      %416 = vmatpush1.msra.mxu0 0.0
      %417 = vmatprep.subr.mxu0 0.0
      %418 = vmatpush1.msra.mxu0 0.0
      %419 = vmatprep.subr.mxu0 0.0
      %420 = vmatpush1.msra.mxu0 0.0
      %421 = vmatprep.subr.mxu0 0.0
      %422 = vmatpush1.msra.mxu0 0.0
      %423 = vmatprep.subr.mxu0 0.0
      %424 = vmatpush1.msra.mxu0 0.0
      %425 = vmatprep.subr.mxu0 0.0
      %426 = vmatpush1.msra.mxu0 0.0
      %427 = vmatprep.subr.mxu0 0.0
      %428 = vmatpush1.msra.mxu0 0.0
      %429 = vmatprep.subr.mxu0 0.0
      %430 = vmatpush1.msra.mxu0 0.0
      %431 = vmatprep.subr.mxu0 0.0
      %432 = vmatpush1.msra.mxu0 0.0
      %433 = vmatprep.subr.mxu0 0.0
      %434 = vmatpush1.msra.mxu0 0.0
      %435 = vmatprep.subr.mxu0 0.0
      %436 = vmatpush1.msra.mxu0 0.0
      %437 = vmatprep.subr.mxu0 0.0
      %438 = vmatpush1.msra.mxu0 0.0
      %439 = vmatprep.subr.mxu0 0.0
      %440 = vmatpush1.msra.mxu0 0.0
      %441 = vmatprep.subr.mxu0 0.0
      %442 = vmatpush1.msra.mxu0 0.0
      %443 = vmatprep.subr.mxu0 0.0
      %444 = vmatpush1.msra.mxu0 0.0
      %445 = vmatprep.subr.mxu0 %v413
      %446 = vmatpush1.msra.mxu0 %v410
      %447 = vmatprep.subr.mxu0 0.0
      %448 = vmatpush2.msra.mxu0 0.0
      %449 = vmatprep.subr.mxu0 0.0
      %450 = vmatpush2.msra.mxu0 0.0
      %451 = vmatprep.subr.mxu0 0.0
      %452 = vmatpush2.msra.mxu0 0.0
      %453 = vmatprep.subr.mxu0 0.0
      %454 = vmatpush2.msra.mxu0 0.0
      %455 = vmatprep.subr.mxu0 0.0
      %456 = vmatpush2.msra.mxu0 0.0
      %457 = vmatprep.subr.mxu0 0.0
      %458 = vmatpush2.msra.mxu0 0.0
      %459 = vmatprep.subr.mxu0 0.0
      %460 = vmatpush2.msra.mxu0 0.0
      %461 = vmatprep.subr.mxu0 0.0
      %462 = vmatpush2.msra.mxu0 0.0
      %463 = vmatprep.subr.mxu0 0.0
      %464 = vmatpush2.msra.mxu0 0.0
      %465 = vmatprep.subr.mxu0 0.0
      %466 = vmatpush2.msra.mxu0 0.0
      %467 = vmatprep.subr.mxu0 0.0
      %468 = vmatpush2.msra.mxu0 0.0
      %469 = vmatprep.subr.mxu0 0.0
      %470 = vmatpush2.msra.mxu0 0.0
      %471 = vmatprep.subr.mxu0 0.0
      %472 = vmatpush2.msra.mxu0 0.0
      %473 = vmatprep.subr.mxu0 0.0
      %474 = vmatpush2.msra.mxu0 0.0
      %475 = vmatprep.subr.mxu0 0.0
      %476 = vmatpush2.msra.mxu0 0.0
      %477 = vmatprep.subr.mxu0 0.0
      %478 = vmatpush2.msra.mxu0 0.0
      %479 = vmatprep.mubr.f32.mxu0 0.0
      %480 = vmatmul.mubr.f32.gmra.mxu0 %v407
      %v481 = vpop.f32.mrf.mxu0
      %v482 = vadd.f32 %v402, %v481
      %v483 = vpop.f32.mrf.mxu0
      %v484 = vadd.f32 %v404, %v483
      %485 = vdwg.mxu0
      %486 = vrot.lane.b32.xlu0 %v306, 127
      %v487 = vpop.permute.xlu0 %486
      %488 = vrot.lane.b32.xlu0 %v308, 127
      %v489 = vpop.permute.xlu0 %488
      %vm490 = vcmp.lt.s32.totalorder %v264, 127
      %v491 = vsel %vm490, %v487, %v489
      %v492 = vsel %vm490, %v489, %v487
      %v493 = vsel %vm304, 1, 0
      %v494 = vsel %vm305, 1, 0
      %vm495 = vcmp.eq.s32.totalorder %v493, 1
      %vm496 = vcmp.eq.s32.totalorder %v494, 1
      %v497 = vsel %vm495, %v491, 0.0
      %v498 = vsel %vm496, %v492, 0.0
      %s499 = scalar_lea.vmem %s1, 16
      %v500 = vld [vmem:[%s499] sm:$0xff]
      %v502 = vsel %vm326, %v500, 0
      %v505 = vsel %vm330, %v497, 0
      %v508 = vsel %vm330, %v498, 0
      %510 = vmatprep.subr.mxu0 0.0
      %511 = vmatpush1.msra.mxu0 0.0
      %512 = vmatprep.subr.mxu0 0.0
      %513 = vmatpush1.msra.mxu0 0.0
      %514 = vmatprep.subr.mxu0 0.0
      %515 = vmatpush1.msra.mxu0 0.0
      %516 = vmatprep.subr.mxu0 0.0
      %517 = vmatpush1.msra.mxu0 0.0
      %518 = vmatprep.subr.mxu0 0.0
      %519 = vmatpush1.msra.mxu0 0.0
      %520 = vmatprep.subr.mxu0 0.0
      %521 = vmatpush1.msra.mxu0 0.0
      %522 = vmatprep.subr.mxu0 0.0
      %523 = vmatpush1.msra.mxu0 0.0
      %524 = vmatprep.subr.mxu0 0.0
      %525 = vmatpush1.msra.mxu0 0.0
      %526 = vmatprep.subr.mxu0 0.0
      %527 = vmatpush1.msra.mxu0 0.0
      %528 = vmatprep.subr.mxu0 0.0
      %529 = vmatpush1.msra.mxu0 0.0
      %530 = vmatprep.subr.mxu0 0.0
      %531 = vmatpush1.msra.mxu0 0.0
      %532 = vmatprep.subr.mxu0 0.0
      %533 = vmatpush1.msra.mxu0 0.0
      %534 = vmatprep.subr.mxu0 0.0
      %535 = vmatpush1.msra.mxu0 0.0
      %536 = vmatprep.subr.mxu0 0.0
      %537 = vmatpush1.msra.mxu0 0.0
      %538 = vmatprep.subr.mxu0 0.0
      %539 = vmatpush1.msra.mxu0 0.0
      %540 = vmatprep.subr.mxu0 %v508
      %541 = vmatpush1.msra.mxu0 %v505
      %542 = vmatprep.subr.mxu0 0.0
      %543 = vmatpush2.msra.mxu0 0.0
      %544 = vmatprep.subr.mxu0 0.0
      %545 = vmatpush2.msra.mxu0 0.0
      %546 = vmatprep.subr.mxu0 0.0
      %547 = vmatpush2.msra.mxu0 0.0
      %548 = vmatprep.subr.mxu0 0.0
      %549 = vmatpush2.msra.mxu0 0.0
      %550 = vmatprep.subr.mxu0 0.0
      %551 = vmatpush2.msra.mxu0 0.0
      %552 = vmatprep.subr.mxu0 0.0
      %553 = vmatpush2.msra.mxu0 0.0
      %554 = vmatprep.subr.mxu0 0.0
      %555 = vmatpush2.msra.mxu0 0.0
      %556 = vmatprep.subr.mxu0 0.0
      %557 = vmatpush2.msra.mxu0 0.0
      %558 = vmatprep.subr.mxu0 0.0
      %559 = vmatpush2.msra.mxu0 0.0
      %560 = vmatprep.subr.mxu0 0.0
      %561 = vmatpush2.msra.mxu0 0.0
      %562 = vmatprep.subr.mxu0 0.0
      %563 = vmatpush2.msra.mxu0 0.0
      %564 = vmatprep.subr.mxu0 0.0
      %565 = vmatpush2.msra.mxu0 0.0
      %566 = vmatprep.subr.mxu0 0.0
      %567 = vmatpush2.msra.mxu0 0.0
      %568 = vmatprep.subr.mxu0 0.0
      %569 = vmatpush2.msra.mxu0 0.0
      %570 = vmatprep.subr.mxu0 0.0
      %571 = vmatpush2.msra.mxu0 0.0
      %572 = vmatprep.subr.mxu0 0.0
      %573 = vmatpush2.msra.mxu0 0.0
      %574 = vmatprep.mubr.f32.mxu0 0.0
      %575 = vmatmul.mubr.f32.gmra.mxu0 %v502
      %v576 = vpop.f32.mrf.mxu0
      %v577 = vadd.f32 0.0, %v576
      %v578 = vpop.f32.mrf.mxu0
      %v579 = vadd.f32 0.0, %v578
      %580 = vdwg.mxu0
      %v581 = vadd.f32 %v482, %v577
      %v582 = vadd.f32 %v484, %v579
      %v583 = vld [vmem:[%s3] sm:$0xff]
      %585 = vset.pattern.permute.xlu0 0
      %586 = vperm.xlu0 %585, %v583
      %v587 = vpop.permute.xlu0 %586
      %v589 = vmul.f32 %v581, %v587
      %v590 = vmul.f32 %v582, %v587
      %v591 = vld [vmem:[%s4] sm:$0xff]
      %593 = vset.pattern.permute.xlu0 0
      %594 = vperm.xlu0 %593, %v591
      %v595 = vpop.permute.xlu0 %594
      %v597 = vadd.f32 %v589, %v595
      %v598 = vadd.f32 %v590, %v595
      %v599 = vmax.f32 %v597, 0.0
      %v600 = vmax.f32 %v598, 0.0
      %601 = vrot.lane.b32.xlu0 %v599, 1
      %v602 = vpop.permute.xlu0 %601
      %603 = vrot.lane.b32.xlu0 %v600, 1
      %v604 = vpop.permute.xlu0 %603
      %v605 = vsel %vm314, %v602, %v604
      %v606 = vsel %vm314, %v604, %v602
      %v607 = vsel %vm319, %v606, 0.0
      %v608 = vsel %vm320, %v605, 0.0
      %v609 = vld [vmem:[%s2] sm:$0xff]
      %s610 = scalar_lea.vmem %s2, 8
      %v611 = vld [vmem:[%s610] sm:$0xff]
      %vm612 = vcmask 64512
      %v614 = vsel %vm612, %v611, 0
      %616 = vmatprep.subr.mxu0 0.0
      %617 = vmatpush1.msra.mxu0 0.0
      %618 = vmatprep.subr.mxu0 0.0
      %619 = vmatpush1.msra.mxu0 0.0
      %620 = vmatprep.subr.mxu0 0.0
      %621 = vmatpush1.msra.mxu0 0.0
      %622 = vmatprep.subr.mxu0 0.0
      %623 = vmatpush1.msra.mxu0 0.0
      %624 = vmatprep.subr.mxu0 0.0
      %625 = vmatpush1.msra.mxu0 0.0
      %626 = vmatprep.subr.mxu0 0.0
      %627 = vmatpush1.msra.mxu0 0.0
      %628 = vmatprep.subr.mxu0 0.0
      %629 = vmatpush1.msra.mxu0 0.0
      %630 = vmatprep.subr.mxu0 0.0
      %631 = vmatpush1.msra.mxu0 0.0
      %632 = vmatprep.subr.mxu0 0.0
      %633 = vmatpush1.msra.mxu0 0.0
      %634 = vmatprep.subr.mxu0 0.0
      %635 = vmatpush1.msra.mxu0 0.0
      %636 = vmatprep.subr.mxu0 0.0
      %637 = vmatpush1.msra.mxu0 0.0
      %638 = vmatprep.subr.mxu0 0.0
      %639 = vmatpush1.msra.mxu0 0.0
      %640 = vmatprep.subr.mxu0 0.0
      %641 = vmatpush1.msra.mxu0 0.0
      %642 = vmatprep.subr.mxu0 0.0
      %643 = vmatpush1.msra.mxu0 0.0
      %644 = vmatprep.subr.mxu0 0.0
      %645 = vmatpush1.msra.mxu0 0.0
      %646 = vmatprep.subr.mxu0 %v600
      %647 = vmatpush1.msra.mxu0 %v599
      %648 = vmatprep.subr.mxu0 0.0
      %649 = vmatpush2.msra.mxu0 0.0
      %650 = vmatprep.subr.mxu0 0.0
      %651 = vmatpush2.msra.mxu0 0.0
      %652 = vmatprep.subr.mxu0 0.0
      %653 = vmatpush2.msra.mxu0 0.0
      %654 = vmatprep.subr.mxu0 0.0
      %655 = vmatpush2.msra.mxu0 0.0
      %656 = vmatprep.subr.mxu0 0.0
      %657 = vmatpush2.msra.mxu0 0.0
      %658 = vmatprep.subr.mxu0 0.0
      %659 = vmatpush2.msra.mxu0 0.0
      %660 = vmatprep.subr.mxu0 0.0
      %661 = vmatpush2.msra.mxu0 0.0
      %662 = vmatprep.subr.mxu0 0.0
      %663 = vmatpush2.msra.mxu0 0.0
      %664 = vmatprep.subr.mxu0 0.0
      %665 = vmatpush2.msra.mxu0 0.0
      %666 = vmatprep.subr.mxu0 0.0
      %667 = vmatpush2.msra.mxu0 0.0
      %668 = vmatprep.subr.mxu0 0.0
      %669 = vmatpush2.msra.mxu0 0.0
      %670 = vmatprep.subr.mxu0 0.0
      %671 = vmatpush2.msra.mxu0 0.0
      %672 = vmatprep.subr.mxu0 0.0
      %673 = vmatpush2.msra.mxu0 0.0
      %674 = vmatprep.subr.mxu0 0.0
      %675 = vmatpush2.msra.mxu0 0.0
      %676 = vmatprep.subr.mxu0 0.0
      %677 = vmatpush2.msra.mxu0 0.0
      %678 = vmatprep.subr.mxu0 0.0
      %679 = vmatpush2.msra.mxu0 0.0
      %680 = vmatprep.mubr.f32.mxu0 0.0
      %681 = vmatmul.mubr.f32.gmra.mxu0 %v614
      %v682 = vpop.f32.mrf.mxu0
      %v683 = vadd.f32 0.0, %v682
      %v684 = vpop.f32.mrf.mxu0
      %v685 = vadd.f32 0.0, %v684
      %686 = vdwg.mxu0
      %v688 = vsel %vm612, %v609, 0
      %690 = vmatprep.subr.mxu0 0.0
      %691 = vmatpush1.msra.mxu0 0.0
      %692 = vmatprep.subr.mxu0 0.0
      %693 = vmatpush1.msra.mxu0 0.0
      %694 = vmatprep.subr.mxu0 0.0
      %695 = vmatpush1.msra.mxu0 0.0
      %696 = vmatprep.subr.mxu0 0.0
      %697 = vmatpush1.msra.mxu0 0.0
      %698 = vmatprep.subr.mxu0 0.0
      %699 = vmatpush1.msra.mxu0 0.0
      %700 = vmatprep.subr.mxu0 0.0
      %701 = vmatpush1.msra.mxu0 0.0
      %702 = vmatprep.subr.mxu0 0.0
      %703 = vmatpush1.msra.mxu0 0.0
      %704 = vmatprep.subr.mxu0 0.0
      %705 = vmatpush1.msra.mxu0 0.0
      %706 = vmatprep.subr.mxu0 0.0
      %707 = vmatpush1.msra.mxu0 0.0
      %708 = vmatprep.subr.mxu0 0.0
      %709 = vmatpush1.msra.mxu0 0.0
      %710 = vmatprep.subr.mxu0 0.0
      %711 = vmatpush1.msra.mxu0 0.0
      %712 = vmatprep.subr.mxu0 0.0
      %713 = vmatpush1.msra.mxu0 0.0
      %714 = vmatprep.subr.mxu0 0.0
      %715 = vmatpush1.msra.mxu0 0.0
      %716 = vmatprep.subr.mxu0 0.0
      %717 = vmatpush1.msra.mxu0 0.0
      %718 = vmatprep.subr.mxu0 0.0
      %719 = vmatpush1.msra.mxu0 0.0
      %720 = vmatprep.subr.mxu0 %v608
      %721 = vmatpush1.msra.mxu0 %v607
      %722 = vmatprep.subr.mxu0 0.0
      %723 = vmatpush2.msra.mxu0 0.0
      %724 = vmatprep.subr.mxu0 0.0
      %725 = vmatpush2.msra.mxu0 0.0
      %726 = vmatprep.subr.mxu0 0.0
      %727 = vmatpush2.msra.mxu0 0.0
      %728 = vmatprep.subr.mxu0 0.0
      %729 = vmatpush2.msra.mxu0 0.0
      %730 = vmatprep.subr.mxu0 0.0
      %731 = vmatpush2.msra.mxu0 0.0
      %732 = vmatprep.subr.mxu0 0.0
      %733 = vmatpush2.msra.mxu0 0.0
      %734 = vmatprep.subr.mxu0 0.0
      %735 = vmatpush2.msra.mxu0 0.0
      %736 = vmatprep.subr.mxu0 0.0
      %737 = vmatpush2.msra.mxu0 0.0
      %738 = vmatprep.subr.mxu0 0.0
      %739 = vmatpush2.msra.mxu0 0.0
      %740 = vmatprep.subr.mxu0 0.0
      %741 = vmatpush2.msra.mxu0 0.0
      %742 = vmatprep.subr.mxu0 0.0
      %743 = vmatpush2.msra.mxu0 0.0
      %744 = vmatprep.subr.mxu0 0.0
      %745 = vmatpush2.msra.mxu0 0.0
      %746 = vmatprep.subr.mxu0 0.0
      %747 = vmatpush2.msra.mxu0 0.0
      %748 = vmatprep.subr.mxu0 0.0
      %749 = vmatpush2.msra.mxu0 0.0
      %750 = vmatprep.subr.mxu0 0.0
      %751 = vmatpush2.msra.mxu0 0.0
      %752 = vmatprep.subr.mxu0 0.0
      %753 = vmatpush2.msra.mxu0 0.0
      %754 = vmatprep.mubr.f32.mxu0 0.0
      %755 = vmatmul.mubr.f32.gmra.mxu0 %v688
      %v756 = vpop.f32.mrf.mxu0
      %v757 = vadd.f32 %v683, %v756
      %v758 = vpop.f32.mrf.mxu0
      %v759 = vadd.f32 %v685, %v758
      %760 = vdwg.mxu0
      %761 = vrot.lane.b32.xlu0 %v599, 127
      %v762 = vpop.permute.xlu0 %761
      %763 = vrot.lane.b32.xlu0 %v600, 127
      %v764 = vpop.permute.xlu0 %763
      %v765 = vsel %vm490, %v762, %v764
      %v766 = vsel %vm490, %v764, %v762
      %v767 = vsel %vm495, %v765, 0.0
      %v768 = vsel %vm496, %v766, 0.0
      %s769 = scalar_lea.vmem %s2, 16
      %v770 = vld [vmem:[%s769] sm:$0xff]
      %v772 = vsel %vm612, %v770, 0
      %774 = vmatprep.subr.mxu0 0.0
      %775 = vmatpush1.msra.mxu0 0.0
      %776 = vmatprep.subr.mxu0 0.0
      %777 = vmatpush1.msra.mxu0 0.0
      %778 = vmatprep.subr.mxu0 0.0
      %779 = vmatpush1.msra.mxu0 0.0
      %780 = vmatprep.subr.mxu0 0.0
      %781 = vmatpush1.msra.mxu0 0.0
      %782 = vmatprep.subr.mxu0 0.0
      %783 = vmatpush1.msra.mxu0 0.0
      %784 = vmatprep.subr.mxu0 0.0
      %785 = vmatpush1.msra.mxu0 0.0
      %786 = vmatprep.subr.mxu0 0.0
      %787 = vmatpush1.msra.mxu0 0.0
      %788 = vmatprep.subr.mxu0 0.0
      %789 = vmatpush1.msra.mxu0 0.0
      %790 = vmatprep.subr.mxu0 0.0
      %791 = vmatpush1.msra.mxu0 0.0
      %792 = vmatprep.subr.mxu0 0.0
      %793 = vmatpush1.msra.mxu0 0.0
      %794 = vmatprep.subr.mxu0 0.0
      %795 = vmatpush1.msra.mxu0 0.0
      %796 = vmatprep.subr.mxu0 0.0
      %797 = vmatpush1.msra.mxu0 0.0
      %798 = vmatprep.subr.mxu0 0.0
      %799 = vmatpush1.msra.mxu0 0.0
      %800 = vmatprep.subr.mxu0 0.0
      %801 = vmatpush1.msra.mxu0 0.0
      %802 = vmatprep.subr.mxu0 0.0
      %803 = vmatpush1.msra.mxu0 0.0
      %804 = vmatprep.subr.mxu0 %v768
      %805 = vmatpush1.msra.mxu0 %v767
      %806 = vmatprep.subr.mxu0 0.0
      %807 = vmatpush2.msra.mxu0 0.0
      %808 = vmatprep.subr.mxu0 0.0
      %809 = vmatpush2.msra.mxu0 0.0
      %810 = vmatprep.subr.mxu0 0.0
      %811 = vmatpush2.msra.mxu0 0.0
      %812 = vmatprep.subr.mxu0 0.0
      %813 = vmatpush2.msra.mxu0 0.0
      %814 = vmatprep.subr.mxu0 0.0
      %815 = vmatpush2.msra.mxu0 0.0
      %816 = vmatprep.subr.mxu0 0.0
      %817 = vmatpush2.msra.mxu0 0.0
      %818 = vmatprep.subr.mxu0 0.0
      %819 = vmatpush2.msra.mxu0 0.0
      %820 = vmatprep.subr.mxu0 0.0
      %821 = vmatpush2.msra.mxu0 0.0
      %822 = vmatprep.subr.mxu0 0.0
      %823 = vmatpush2.msra.mxu0 0.0
      %824 = vmatprep.subr.mxu0 0.0
      %825 = vmatpush2.msra.mxu0 0.0
      %826 = vmatprep.subr.mxu0 0.0
      %827 = vmatpush2.msra.mxu0 0.0
      %828 = vmatprep.subr.mxu0 0.0
      %829 = vmatpush2.msra.mxu0 0.0
      %830 = vmatprep.subr.mxu0 0.0
      %831 = vmatpush2.msra.mxu0 0.0
      %832 = vmatprep.subr.mxu0 0.0
      %833 = vmatpush2.msra.mxu0 0.0
      %834 = vmatprep.subr.mxu0 0.0
      %835 = vmatpush2.msra.mxu0 0.0
      %836 = vmatprep.subr.mxu0 0.0
      %837 = vmatpush2.msra.mxu0 0.0
      %838 = vmatprep.mubr.f32.mxu0 0.0
      %839 = vmatmul.mubr.f32.gmra.mxu0 %v772
      %v840 = vpop.f32.mrf.mxu0
      %v841 = vadd.f32 0.0, %v840
      %v842 = vpop.f32.mrf.mxu0
      %v843 = vadd.f32 0.0, %v842
      %844 = vdwg.mxu0
      %v845 = vadd.f32 %v757, %v841
      %v846 = vadd.f32 %v759, %v843
      %v847 = vadd.f32 %v845, %v846
      %848 = vadd.xlane.f32.xlu0 %v847
      %v849 = vpop.xlane.xlu0 %848
      %vm850 = vcmask 7168
      %851 = vst.msk [vmem:[%s258] sm:$0xff] %vm850, %v849
      %v852 = vmul.f32 %v845, %v845
      %v853 = vmul.f32 %v846, %v846
      %v854 = vadd.f32 %v852, %v853
      %855 = vadd.xlane.f32.xlu0 %v854
      %v856 = vpop.xlane.xlu0 %855
      %857 = vst.msk [vmem:[%s262] sm:$0xff] %vm850, %v856
      %p858 = scmp.lt.s32.totalorder %s18, 1
      %s859 = scalar_select %p858, %s18, 1
      %s860 = smul.addr %s859, 8
      %s861 = scalar_lea.vmem %s5, %s860
      %p862 = scmp.lt.s32.totalorder %s18, 1
      %s863 = scalar_select %p862, %s18, 1
      %s864 = smul.addr %s863, 8
      %s865 = scalar_lea.vmem %s6, %s864
      // Predicated region
      $region41: #{stack_conv_block.4} parent=39 // pred_check
        %p866 = pneg %p146
      $region42: #{stack_conv_block.4} parent=39 // pred_check_branch
        %868 = sbr.rel (%p866) target = $region44
      $region43: #{stack_conv_block.4} parent=39 // pred_region
        _
      $region44: #{stack_conv_block.4} parent=39 // pred_fallthru
        _
      // Predicated region
      $region45: #{stack_conv_block.4} parent=39 // pred_check
        %p869 = pneg %p172
      $region46: #{stack_conv_block.4} parent=39 // pred_check_branch
        %871 = sbr.rel (%p869) target = $region48
      $region47: #{stack_conv_block.4} parent=39 // pred_region
        _
      $region48: #{stack_conv_block.4} parent=39 // pred_fallthru
        _
    $region40: #{stack_conv_block.4} parent=5 // pred_fallthru
      _
    %p872 = scmp.le.s32.totalorder 2, %s13
    // Predicated region
    $region49: #{stack_conv_block.4} parent=5 // pred_check
      %p873 = pneg %p872
    $region50: #{stack_conv_block.4} parent=5 // pred_check_branch
      %875 = sbr.rel (%p873) target = $region52
    $region51: #{stack_conv_block.4} parent=5 // pred_region
      %s876 = ssub.s32 %s13, 2
      // Predicated region
      $region53: #{stack_conv_block.4} parent=51 // pred_check
        %p877 = pneg %p152
      $region54: #{stack_conv_block.4} parent=51 // pred_check_branch
        %879 = sbr.rel (%p877) target = $region56
      $region55: #{stack_conv_block.4} parent=51 // pred_region
        %p880 = scmp.lt.s32.totalorder %s19, 1
        %s881 = scalar_select %p880, %s19, 1
        %s882 = smul.addr %s881, 8
        %s883 = scalar_lea.vmem %s5, %s882
      $region56: #{stack_conv_block.4} parent=51 // pred_fallthru
        _
      // Predicated region
      $region57: #{stack_conv_block.4} parent=51 // pred_check
        %p884 = pneg %p178
      $region58: #{stack_conv_block.4} parent=51 // pred_check_branch
        %886 = sbr.rel (%p884) target = $region60
      $region59: #{stack_conv_block.4} parent=51 // pred_region
        %p887 = scmp.lt.s32.totalorder %s19, 1
        %s888 = scalar_select %p887, %s19, 1
        %s889 = smul.addr %s888, 8
        %s890 = scalar_lea.vmem %s6, %s889
      $region60: #{stack_conv_block.4} parent=51 // pred_fallthru
        _
    $region52: #{stack_conv_block.4} parent=5 // pred_fallthru
      _
  $region6: #{stack_conv_block.4} parent=0 // loop_footer
    %s17 = sadd.s32 1, %s13
  $region7: #{stack_conv_block.4} parent=0 // loop_footer_branch
    %12 = sbr.rel target = $region3
  $region8: #{stack_conv_block.4} parent=0 // loop_exit
    _

// kernel: stack_conv_block.5
$region0: #{stack_conv_block.5}
  #allocation0 [shape = 'u32[]', space=smem, size = 0x4, offset = 0x4, fixed_abs, tag = 'smem constant byte address 0x4 - core index']
  #allocation1 [shape = 'u32[144,128]{1,0:T(1,128)}', space=vmem, size = 0x12000, scoped, tag = 'internal scratch']
  %s0 = inlined_call_operand.vmem [shape: f32[4,512], index: 0, kind: input, shape index: {}]
  %s1 = inlined_call_operand.vmem [shape: f32[3,8,4], index: 1, kind: input, shape index: {}]
  %s2 = inlined_call_operand.vmem [shape: f32[3,8,8], index: 2, kind: input, shape index: {}]
  %s3 = inlined_call_operand.vmem [shape: f32[8,4], index: 3, kind: input, shape index: {}]
  %s4 = inlined_call_operand.vmem [shape: f32[8,1], index: 4, kind: input, shape index: {}]
  %s5 = inlined_call_operand.vmem [shape: f32[8,1], index: 5, kind: input, shape index: {}]
  %s6 = inlined_call_operand.vmem [shape: f32[8,1], index: 6, kind: input, shape index: {}]
  %s7 = inlined_call_operand.vmem [shape: f32[8,1], index: 7, kind: input, shape index: {}]
  %s8 = inlined_call_operand.vmem [shape: f32[8,1], index: 8, kind: input, shape index: {}]
  %s9 = inlined_call_operand.hbm [shape: f32[8,512], index: 9, kind: output, shape index: {}]
  %s10 = sld [smem:[#allocation0]]
  $region69: #{stack_conv_block.5} parent=0
    _
  %s12 = ssub.s32 1, %s10
  %s13 = scalar_select 0, %s12, %s10
  $region1: #{stack_conv_block.5} parent=0
    #allocation2 [shape = 'u8[16384]{0}', space=vmem, size = 0x4000, scoped, tag = 'output window, operand 0']
    #allocation3 [shape = 's32[2]{0}', space=sflag, size = 0x8, scoped, tag = 'scoped memory for stack_conv_block.5']
    %14 = vsyncpa [#allocation3], 0
    %s15 = scalar_lea.sflag [#allocation3], 1
    %16 = vsyncpa %s15, 0
    loop: start=0, step=1, limit=4
    $region2: #{stack_conv_block.5} parent=1 // loop_pre_header
      _
    $region3: #{stack_conv_block.5} parent=1 // loop_header
      %s18 = sphi 0, %s22
      %p19 = scmp.ge.s32.totalorder %s18, 4
      %s28 = sphi 0, %s30
      %s31 = sphi 0, %s28
      %s32 = sphi 0, %s31
      %s48 = sphi 0, %s32
      %s52 = sphi 0, %s52
      %s54 = sphi 0, %s52
      %s55 = sphi 0, %s54
      %s69 = sphi 0, %s55
      %s73 = sphi 0, %s73
      %s75 = sphi 0, %s73
      %s76 = sphi 0, %s75
      %s90 = sphi 0, %s76
      %s94 = sphi 0, %s94
      %s96 = sphi 0, %s94
      %s97 = sphi 0, %s96
      %s111 = sphi 0, %s97
      %s115 = sphi 0, %s115
      %s117 = sphi 0, %s115
      %s118 = sphi 0, %s117
      %s132 = sphi 0, %s118
      %s136 = sphi 0, %s136
      %s138 = sphi 0, %s136
      %s139 = sphi 0, %s138
      %s153 = sphi 0, %s139
      %s157 = sphi 0, %s157
      %s159 = sphi 0, %s157
      %s160 = sphi 0, %s159
      %s174 = sphi 0, %s160
      %s178 = sphi 0, %s178
      %s180 = sphi 0, %s178
      %s181 = sphi 0, %s180
      %s195 = sphi 0, %s181
      %s199 = sphi 0, %s199
      %s201 = sphi 0, %s199
      %s202 = sphi 0, %s201
      %s216 = sphi 0, %s202
      %s222 = sphi 0, %s224
      %s225 = sphi 0, %s222
      %s226 = sphi 0, %s225
      %s242 = sphi 0, %s226
    $region4: #{stack_conv_block.5} parent=1 // loop_header_branch
      %21 = sbr.rel (%p19) target = $region8
    $region5: #{stack_conv_block.5} parent=1 // loop_body
      %s23 = ssub.s32 %s18, 1
      %s24 = ssub.s32 %s18, 2
      %s25 = sadd.s32 %s18, 1
      %s26 = ssub.s32 %s18, %s25
      %p27 = scmp.eq.s32.totalorder %s26, 0
      %s29 = sadd.s32 %s28, 1
      %s30 = scalar_select %p27, %s28, %s29
      %p33 = pneg %p27
      %p34 = scmp.eq.s32.totalorder %s18, 1
      %p35 = por %p33, %p34
      %p36 = scmp.ne.s32.totalorder %s28, %s31
      %p37 = scmp.eq.s32.totalorder %s18, 0
      %p38 = por %p36, %p37
      %p39 = scmp.ne.s32.totalorder %s28, %s31
      %p40 = scmp.eq.s32.totalorder %s23, 1
      %p41 = por %p39, %p40
      %p42 = scmp.ne.s32.totalorder %s31, %s32
      %p43 = scmp.eq.s32.totalorder %s23, 0
      %p44 = por %p42, %p43
      %p45 = scmp.ne.s32.totalorder %s31, %s32
      %p46 = scmp.eq.s32.totalorder %s24, 1
      %p47 = por %p45, %p46
      %p49 = scmp.ne.s32.totalorder %s32, %s48
      %p50 = scmp.eq.s32.totalorder %s24, 0
      %p51 = por %p49, %p50
      %s53 = sadd.s32 %s52, 1
      %p56 = scmp.eq.s32.totalorder %s18, 1
      %p57 = scmp.ne.s32.totalorder %s52, %s54
      %p58 = scmp.eq.s32.totalorder %s18, 0
      %p59 = por %p57, %p58
      %p60 = scmp.ne.s32.totalorder %s52, %s54
      %p61 = scmp.eq.s32.totalorder %s23, 1
      %p62 = por %p60, %p61
      %p63 = scmp.ne.s32.totalorder %s54, %s55
      %p64 = scmp.eq.s32.totalorder %s23, 0
      %p65 = por %p63, %p64
      %p66 = scmp.ne.s32.totalorder %s54, %s55
      %p67 = scmp.eq.s32.totalorder %s24, 1
      %p68 = por %p66, %p67
      %p70 = scmp.ne.s32.totalorder %s55, %s69
      %p71 = scmp.eq.s32.totalorder %s24, 0
      %p72 = por %p70, %p71
      %s74 = sadd.s32 %s73, 1
      %p77 = scmp.eq.s32.totalorder %s18, 1
      %p78 = scmp.ne.s32.totalorder %s73, %s75
      %p79 = scmp.eq.s32.totalorder %s18, 0
      %p80 = por %p78, %p79
      %p81 = scmp.ne.s32.totalorder %s73, %s75
      %p82 = scmp.eq.s32.totalorder %s23, 1
      %p83 = por %p81, %p82
      %p84 = scmp.ne.s32.totalorder %s75, %s76
      %p85 = scmp.eq.s32.totalorder %s23, 0
      %p86 = por %p84, %p85
      %p87 = scmp.ne.s32.totalorder %s75, %s76
      %p88 = scmp.eq.s32.totalorder %s24, 1
      %p89 = por %p87, %p88
      %p91 = scmp.ne.s32.totalorder %s76, %s90
      %p92 = scmp.eq.s32.totalorder %s24, 0
      %p93 = por %p91, %p92
      %s95 = sadd.s32 %s94, 1
      %p98 = scmp.eq.s32.totalorder %s18, 1
      %p99 = scmp.ne.s32.totalorder %s94, %s96
      %p100 = scmp.eq.s32.totalorder %s18, 0
      %p101 = por %p99, %p100
      %p102 = scmp.ne.s32.totalorder %s94, %s96
      %p103 = scmp.eq.s32.totalorder %s23, 1
      %p104 = por %p102, %p103
      %p105 = scmp.ne.s32.totalorder %s96, %s97
      %p106 = scmp.eq.s32.totalorder %s23, 0
      %p107 = por %p105, %p106
      %p108 = scmp.ne.s32.totalorder %s96, %s97
      %p109 = scmp.eq.s32.totalorder %s24, 1
      %p110 = por %p108, %p109
      %p112 = scmp.ne.s32.totalorder %s97, %s111
      %p113 = scmp.eq.s32.totalorder %s24, 0
      %p114 = por %p112, %p113
      %s116 = sadd.s32 %s115, 1
      %p119 = scmp.eq.s32.totalorder %s18, 1
      %p120 = scmp.ne.s32.totalorder %s115, %s117
      %p121 = scmp.eq.s32.totalorder %s18, 0
      %p122 = por %p120, %p121
      %p123 = scmp.ne.s32.totalorder %s115, %s117
      %p124 = scmp.eq.s32.totalorder %s23, 1
      %p125 = por %p123, %p124
      %p126 = scmp.ne.s32.totalorder %s117, %s118
      %p127 = scmp.eq.s32.totalorder %s23, 0
      %p128 = por %p126, %p127
      %p129 = scmp.ne.s32.totalorder %s117, %s118
      %p130 = scmp.eq.s32.totalorder %s24, 1
      %p131 = por %p129, %p130
      %p133 = scmp.ne.s32.totalorder %s118, %s132
      %p134 = scmp.eq.s32.totalorder %s24, 0
      %p135 = por %p133, %p134
      %s137 = sadd.s32 %s136, 1
      %p140 = scmp.eq.s32.totalorder %s18, 1
      %p141 = scmp.ne.s32.totalorder %s136, %s138
      %p142 = scmp.eq.s32.totalorder %s18, 0
      %p143 = por %p141, %p142
      %p144 = scmp.ne.s32.totalorder %s136, %s138
      %p145 = scmp.eq.s32.totalorder %s23, 1
      %p146 = por %p144, %p145
      %p147 = scmp.ne.s32.totalorder %s138, %s139
      %p148 = scmp.eq.s32.totalorder %s23, 0
      %p149 = por %p147, %p148
      %p150 = scmp.ne.s32.totalorder %s138, %s139
      %p151 = scmp.eq.s32.totalorder %s24, 1
      %p152 = por %p150, %p151
      %p154 = scmp.ne.s32.totalorder %s139, %s153
      %p155 = scmp.eq.s32.totalorder %s24, 0
      %p156 = por %p154, %p155
      %s158 = sadd.s32 %s157, 1
      %p161 = scmp.eq.s32.totalorder %s18, 1
      %p162 = scmp.ne.s32.totalorder %s157, %s159
      %p163 = scmp.eq.s32.totalorder %s18, 0
      %p164 = por %p162, %p163
      %p165 = scmp.ne.s32.totalorder %s157, %s159
      %p166 = scmp.eq.s32.totalorder %s23, 1
      %p167 = por %p165, %p166
      %p168 = scmp.ne.s32.totalorder %s159, %s160
      %p169 = scmp.eq.s32.totalorder %s23, 0
      %p170 = por %p168, %p169
      %p171 = scmp.ne.s32.totalorder %s159, %s160
      %p172 = scmp.eq.s32.totalorder %s24, 1
      %p173 = por %p171, %p172
      %p175 = scmp.ne.s32.totalorder %s160, %s174
      %p176 = scmp.eq.s32.totalorder %s24, 0
      %p177 = por %p175, %p176
      %s179 = sadd.s32 %s178, 1
      %p182 = scmp.eq.s32.totalorder %s18, 1
      %p183 = scmp.ne.s32.totalorder %s178, %s180
      %p184 = scmp.eq.s32.totalorder %s18, 0
      %p185 = por %p183, %p184
      %p186 = scmp.ne.s32.totalorder %s178, %s180
      %p187 = scmp.eq.s32.totalorder %s23, 1
      %p188 = por %p186, %p187
      %p189 = scmp.ne.s32.totalorder %s180, %s181
      %p190 = scmp.eq.s32.totalorder %s23, 0
      %p191 = por %p189, %p190
      %p192 = scmp.ne.s32.totalorder %s180, %s181
      %p193 = scmp.eq.s32.totalorder %s24, 1
      %p194 = por %p192, %p193
      %p196 = scmp.ne.s32.totalorder %s181, %s195
      %p197 = scmp.eq.s32.totalorder %s24, 0
      %p198 = por %p196, %p197
      %s200 = sadd.s32 %s199, 1
      %p203 = scmp.eq.s32.totalorder %s18, 1
      %p204 = scmp.ne.s32.totalorder %s199, %s201
      %p205 = scmp.eq.s32.totalorder %s18, 0
      %p206 = por %p204, %p205
      %p207 = scmp.ne.s32.totalorder %s199, %s201
      %p208 = scmp.eq.s32.totalorder %s23, 1
      %p209 = por %p207, %p208
      %p210 = scmp.ne.s32.totalorder %s201, %s202
      %p211 = scmp.eq.s32.totalorder %s23, 0
      %p212 = por %p210, %p211
      %p213 = scmp.ne.s32.totalorder %s201, %s202
      %p214 = scmp.eq.s32.totalorder %s24, 1
      %p215 = por %p213, %p214
      %p217 = scmp.ne.s32.totalorder %s202, %s216
      %p218 = scmp.eq.s32.totalorder %s24, 0
      %p219 = por %p217, %p218
      %s220 = ssub.s32 %s18, %s25
      %p221 = scmp.eq.s32.totalorder %s220, 0
      %s223 = sadd.s32 %s222, 1
      %s224 = scalar_select %p221, %s222, %s223
      %p227 = pneg %p221
      %p228 = scmp.eq.s32.totalorder %s18, 1
      %p229 = por %p227, %p228
      %p230 = scmp.ne.s32.totalorder %s222, %s225
      %p231 = scmp.eq.s32.totalorder %s18, 0
      %p232 = por %p230, %p231
      %p233 = scmp.ne.s32.totalorder %s222, %s225
      %p234 = scmp.eq.s32.totalorder %s23, 1
      %p235 = por %p233, %p234
      %p236 = scmp.ne.s32.totalorder %s225, %s226
      %p237 = scmp.eq.s32.totalorder %s23, 0
      %p238 = por %p236, %p237
      %p239 = scmp.ne.s32.totalorder %s225, %s226
      %p240 = scmp.eq.s32.totalorder %s24, 1
      %p241 = por %p239, %p240
      %p243 = scmp.ne.s32.totalorder %s226, %s242
      %p244 = scmp.eq.s32.totalorder %s24, 0
      %p245 = por %p243, %p244
      %p246 = scmp.le.s32.totalorder 1, %s18
      %p247 = scmp.lt.s32.totalorder %s18, 3
      %p248 = pnand %p246, %p247
      %p249 = pneg %p248
      // Predicated region
      $region9: #{stack_conv_block.5} parent=5 // pred_check
        _
      $region10: #{stack_conv_block.5} parent=5 // pred_check_branch
        %251 = sbr.rel (%p248) target = $region12
      $region11: #{stack_conv_block.5} parent=5 // pred_region
        %s252 = ssub.s32 %s18, 1
        // Predicated region
        $region13: #{stack_conv_block.5} parent=11 // pred_check
          %p253 = pneg %p65
        $region14: #{stack_conv_block.5} parent=11 // pred_check_branch
          %255 = sbr.rel (%p253) target = $region16
        $region15: #{stack_conv_block.5} parent=11 // pred_region
          _
        $region16: #{stack_conv_block.5} parent=11 // pred_fallthru
          _
        // Predicated region
        $region17: #{stack_conv_block.5} parent=11 // pred_check
          %p256 = pneg %p86
        $region18: #{stack_conv_block.5} parent=11 // pred_check_branch
          %258 = sbr.rel (%p256) target = $region20
        $region19: #{stack_conv_block.5} parent=11 // pred_region
          _
        $region20: #{stack_conv_block.5} parent=11 // pred_fallthru
          _
        // Predicated region
        $region21: #{stack_conv_block.5} parent=11 // pred_check
          %p259 = pneg %p107
        $region22: #{stack_conv_block.5} parent=11 // pred_check_branch
          %261 = sbr.rel (%p259) target = $region24
        $region23: #{stack_conv_block.5} parent=11 // pred_region
          _
        $region24: #{stack_conv_block.5} parent=11 // pred_fallthru
          _
        // Predicated region
        $region25: #{stack_conv_block.5} parent=11 // pred_check
          %p262 = pneg %p128
        $region26: #{stack_conv_block.5} parent=11 // pred_check_branch
          %264 = sbr.rel (%p262) target = $region28
        $region27: #{stack_conv_block.5} parent=11 // pred_region
          _
        $region28: #{stack_conv_block.5} parent=11 // pred_fallthru
          _
        // Predicated region
        $region29: #{stack_conv_block.5} parent=11 // pred_check
          %p265 = pneg %p149
        $region30: #{stack_conv_block.5} parent=11 // pred_check_branch
          %267 = sbr.rel (%p265) target = $region32
        $region31: #{stack_conv_block.5} parent=11 // pred_region
          _
        $region32: #{stack_conv_block.5} parent=11 // pred_fallthru
          _
        // Predicated region
        $region33: #{stack_conv_block.5} parent=11 // pred_check
          %p268 = pneg %p170
        $region34: #{stack_conv_block.5} parent=11 // pred_check_branch
          %270 = sbr.rel (%p268) target = $region36
        $region35: #{stack_conv_block.5} parent=11 // pred_region
          _
        $region36: #{stack_conv_block.5} parent=11 // pred_fallthru
          _
        // Predicated region
        $region37: #{stack_conv_block.5} parent=11 // pred_check
          %p271 = pneg %p191
        $region38: #{stack_conv_block.5} parent=11 // pred_check_branch
          %273 = sbr.rel (%p271) target = $region40
        $region39: #{stack_conv_block.5} parent=11 // pred_region
          _
        $region40: #{stack_conv_block.5} parent=11 // pred_fallthru
          _
        // Predicated region
        $region41: #{stack_conv_block.5} parent=11 // pred_check
          %p274 = pneg %p212
        $region42: #{stack_conv_block.5} parent=11 // pred_check_branch
          %276 = sbr.rel (%p274) target = $region44
        $region43: #{stack_conv_block.5} parent=11 // pred_region
          _
        $region44: #{stack_conv_block.5} parent=11 // pred_fallthru
          _
      $region12: #{stack_conv_block.5} parent=5 // pred_fallthru
        _
      %p277 = scmp.lt.s32.totalorder %s18, 2
      // Predicated region
      $region45: #{stack_conv_block.5} parent=5 // pred_check
        %p278 = pneg %p277
      $region46: #{stack_conv_block.5} parent=5 // pred_check_branch
        %280 = sbr.rel (%p278) target = $region48
      $region47: #{stack_conv_block.5} parent=5 // pred_region
        // Predicated region
        $region49: #{stack_conv_block.5} parent=47 // pred_check
          %p281 = pneg %p38
        $region50: #{stack_conv_block.5} parent=47 // pred_check_branch
          %283 = sbr.rel (%p281) target = $region52
        $region51: #{stack_conv_block.5} parent=47 // pred_region
          %s284 = smul.u32 2, %s18
          %p285 = scmp.lt.s32.totalorder %s284, 3
          %s286 = scalar_select %p285, %s284, 3
          %s287 = smul.addr %s286, 4
          %s288 = scalar_lea.vmem %s0, %s287
          %s289 = smul.u32 2, %s18
        $region52: #{stack_conv_block.5} parent=47 // pred_fallthru
          _
      $region48: #{stack_conv_block.5} parent=5 // pred_fallthru
        _
      %p290 = scmp.le.s32.totalorder 1, %s18
      %p291 = scmp.lt.s32.totalorder %s18, 3
      %p292 = pnand %p290, %p291
      %p293 = pneg %p292
      // Predicated region
      $region53: #{stack_conv_block.5} parent=5 // pred_check
        _
      $region54: #{stack_conv_block.5} parent=5 // pred_check_branch
        %295 = sbr.rel (%p292) target = $region56
      $region55: #{stack_conv_block.5} parent=5 // pred_region
        %s296 = ssub.s32 %s18, 1
        %s297 = smul.u32 2, %s23
        %p298 = scmp.lt.s32.totalorder %s297, 3
        %s299 = scalar_select %p298, %s297, 3
        %s300 = smul.addr %s299, 4
        %s301 = scalar_lea.vmem %s0, %s300
        %p302 = pneg %p44
        %p303 = pneg %p41
        %p304 = pneg %p65
        %p305 = pneg %p62
        %p306 = pneg %p86
        %p307 = pneg %p83
        %p308 = pneg %p107
        %p309 = pneg %p104
        %p310 = pneg %p128
        %p311 = pneg %p125
        %p312 = pneg %p149
        %p313 = pneg %p146
        %p314 = pneg %p170
        %p315 = pneg %p167
        %p316 = pneg %p191
        %p317 = pneg %p188
        %p318 = pneg %p212
        %p319 = pneg %p209
        %p320 = pneg %p238
        %p321 = pneg %p235
        %s322 = sand.u32 %s225, 1
        %s323 = scalar_lea.sflag [#allocation3], %s322
        %s324 = sand.u32 %s225, 1
        %s325 = smul.addr %s324, 16
        %s326 = scalar_lea.vmem [#allocation2], %s325
        %s327 = smul.u32 2, %s23
        %p328 = scmp.lt.s32.totalorder %s327, 3
        %s329 = scalar_select %p328, %s327, 3
        %s330 = smul.addr %s329, 4
        %s331 = scalar_lea.vmem %s0, %s330
        %s332 = smul.u32 2, %s23
        %s333 = smul.u32 2, %s23
        %v334 = vlaneseq
        %v335 = vand.u32 %v334, 127
        %v336 = vadd.s32 %v335, 128
        %vm337 = vcmp.lt.s32.totalorder %v335, 0
        %v338 = vsub.s32 0, %v335
        %v339 = vsel %vm337, %v338, %v335
        %v340 = vshrl.u32 %v339, 7
        %v341 = vand.u32 %v339, 127
        %v342 = vsub.s32 0, %v341
        %v343 = vsel %vm337, %v342, %v341
        %vm344 = vcmp.lt.s32.totalorder %v336, 0
        %v345 = vsub.s32 0, %v336
        %v346 = vsel %vm344, %v345, %v336
        %v347 = vshrl.u32 %v346, 7
        %v348 = vand.u32 %v346, 127
        %v349 = vsub.s32 0, %v348
        %v350 = vsel %vm344, %v349, %v348
        %vm351 = vcmp.ne.s32.totalorder %v343, 0
        %vm352 = vcmp.ne.s32.totalorder %v350, 0
        %vm353 = vcmp.lt.s32.totalorder %v343, 0
        %vm354 = vcmp.lt.s32.totalorder %v350, 0
        %vm355 = vmand %vm353, %vm351
        %vm356 = vmand %vm354, %vm352
        %v357 = vadd.s32 %v343, 128
        %v358 = vadd.s32 %v350, 128
        %v359 = vsel %vm355, %v357, %v343
        %v360 = vsel %vm356, %v358, %v350
        %v361 = vadd.s32 %v359, 4294967295
        %v362 = vadd.s32 %v360, 4294967295
        %vm363 = vcmp.ge.s32.totalorder %v361, 0
        %vm364 = vcmp.ge.s32.totalorder %v362, 0
        %vm365 = vcmp.lt.s32.totalorder %v361, 128
        %vm366 = vcmp.lt.s32.totalorder %v362, 128
        %vm367 = vmand %vm363, %vm365
        %vm368 = vmand %vm364, %vm366
        %v369 = vadd.s32 %v359, 1
        %v370 = vadd.s32 %v360, 1
        %vm371 = vcmp.ge.s32.totalorder %v369, 0
        %vm372 = vcmp.ge.s32.totalorder %v370, 0
        %vm373 = vcmp.lt.s32.totalorder %v369, 128
        %vm374 = vcmp.lt.s32.totalorder %v370, 128
        %vm375 = vmand %vm371, %vm373
        %vm376 = vmand %vm372, %vm374
        %v377 = vld [vmem:[%s331] sm:$0xff]
        %v379 = vcombine.high %v377, %v377
        %381 = vrot.lane.b32.xlu0 %v377, 1
        %v382 = vpop.permute.xlu0 %381
        %383 = vrot.lane.b32.xlu0 %v379, 1
        %v384 = vpop.permute.xlu0 %383
        %vm385 = vcmp.lt.s32.totalorder %v335, 1
        %v386 = vsel %vm385, %v382, %v384
        %v387 = vsel %vm385, %v384, %v382
        %v388 = vsel %vm367, 1, 0
        %v389 = vsel %vm368, 1, 0
        %vm390 = vcmp.eq.s32.totalorder %v388, 1
        %vm391 = vcmp.eq.s32.totalorder %v389, 1
        %v392 = vsel %vm390, %v387, 0.0
        %v393 = vsel %vm391, %v386, 0.0
        %v394 = vld [vmem:[%s1] sm:$0xff]
        %s395 = scalar_lea.vmem %s1, 8
        %v396 = vld [vmem:[%s395] sm:$0xff]
        %vm397 = vcmask 31744
        %v399 = vsel %vm397, %v396, 0
        %vm401 = vcmask 1043456
        %v402 = vsel %vm401, %v377, 0
        %v404 = vsel %vm401, %v379, 0
        %406 = vmatprep.subr.mxu0 0.0
        %407 = vmatpush1.msra.mxu0 0.0
        %408 = vmatprep.subr.mxu0 0.0
        %409 = vmatpush1.msra.mxu0 0.0
        %410 = vmatprep.subr.mxu0 0.0
        %411 = vmatpush1.msra.mxu0 0.0
        %412 = vmatprep.subr.mxu0 0.0
        %413 = vmatpush1.msra.mxu0 0.0
        %414 = vmatprep.subr.mxu0 0.0
        %415 = vmatpush1.msra.mxu0 0.0
        %416 = vmatprep.subr.mxu0 0.0
        %417 = vmatpush1.msra.mxu0 0.0
        %418 = vmatprep.subr.mxu0 0.0
        %419 = vmatpush1.msra.mxu0 0.0
        %420 = vmatprep.subr.mxu0 0.0
        %421 = vmatpush1.msra.mxu0 0.0
        %422 = vmatprep.subr.mxu0 0.0
        %423 = vmatpush1.msra.mxu0 0.0
        %424 = vmatprep.subr.mxu0 0.0
        %425 = vmatpush1.msra.mxu0 0.0
        %426 = vmatprep.subr.mxu0 0.0
        %427 = vmatpush1.msra.mxu0 0.0
        %428 = vmatprep.subr.mxu0 0.0
        %429 = vmatpush1.msra.mxu0 0.0
        %430 = vmatprep.subr.mxu0 0.0
        %431 = vmatpush1.msra.mxu0 0.0
        %432 = vmatprep.subr.mxu0 0.0
        %433 = vmatpush1.msra.mxu0 0.0
        %434 = vmatprep.subr.mxu0 0.0
        %435 = vmatpush1.msra.mxu0 0.0
        %436 = vmatprep.subr.mxu0 %v404
        %437 = vmatpush1.msra.mxu0 %v402
        %438 = vmatprep.subr.mxu0 0.0
        %439 = vmatpush2.msra.mxu0 0.0
        %440 = vmatprep.subr.mxu0 0.0
        %441 = vmatpush2.msra.mxu0 0.0
        %442 = vmatprep.subr.mxu0 0.0
        %443 = vmatpush2.msra.mxu0 0.0
        %444 = vmatprep.subr.mxu0 0.0
        %445 = vmatpush2.msra.mxu0 0.0
        %446 = vmatprep.subr.mxu0 0.0
        %447 = vmatpush2.msra.mxu0 0.0
        %448 = vmatprep.subr.mxu0 0.0
        %449 = vmatpush2.msra.mxu0 0.0
        %450 = vmatprep.subr.mxu0 0.0
        %451 = vmatpush2.msra.mxu0 0.0
        %452 = vmatprep.subr.mxu0 0.0
        %453 = vmatpush2.msra.mxu0 0.0
        %454 = vmatprep.subr.mxu0 0.0
        %455 = vmatpush2.msra.mxu0 0.0
        %456 = vmatprep.subr.mxu0 0.0
        %457 = vmatpush2.msra.mxu0 0.0
        %458 = vmatprep.subr.mxu0 0.0
        %459 = vmatpush2.msra.mxu0 0.0
        %460 = vmatprep.subr.mxu0 0.0
        %461 = vmatpush2.msra.mxu0 0.0
        %462 = vmatprep.subr.mxu0 0.0
        %463 = vmatpush2.msra.mxu0 0.0
        %464 = vmatprep.subr.mxu0 0.0
        %465 = vmatpush2.msra.mxu0 0.0
        %466 = vmatprep.subr.mxu0 0.0
        %467 = vmatpush2.msra.mxu0 0.0
        %468 = vmatprep.subr.mxu0 0.0
        %469 = vmatpush2.msra.mxu0 0.0
        %470 = vmatprep.mubr.f32.mxu0 0.0
        %471 = vmatmul.mubr.f32.gmra.mxu0 %v399
        %v472 = vpop.f32.mrf.mxu0
        %v473 = vadd.f32 0.0, %v472
        %v474 = vpop.f32.mrf.mxu0
        %v475 = vadd.f32 0.0, %v474
        %476 = vdwg.mxu0
        %v478 = vsel %vm397, %v394, 0
        %v481 = vsel %vm401, %v392, 0
        %v484 = vsel %vm401, %v393, 0
        %486 = vmatprep.subr.mxu0 0.0
        %487 = vmatpush1.msra.mxu0 0.0
        %488 = vmatprep.subr.mxu0 0.0
        %489 = vmatpush1.msra.mxu0 0.0
        %490 = vmatprep.subr.mxu0 0.0
        %491 = vmatpush1.msra.mxu0 0.0
        %492 = vmatprep.subr.mxu0 0.0
        %493 = vmatpush1.msra.mxu0 0.0
        %494 = vmatprep.subr.mxu0 0.0
        %495 = vmatpush1.msra.mxu0 0.0
        %496 = vmatprep.subr.mxu0 0.0
        %497 = vmatpush1.msra.mxu0 0.0
        %498 = vmatprep.subr.mxu0 0.0
        %499 = vmatpush1.msra.mxu0 0.0
        %500 = vmatprep.subr.mxu0 0.0
        %501 = vmatpush1.msra.mxu0 0.0
        %502 = vmatprep.subr.mxu0 0.0
        %503 = vmatpush1.msra.mxu0 0.0
        %504 = vmatprep.subr.mxu0 0.0
        %505 = vmatpush1.msra.mxu0 0.0
        %506 = vmatprep.subr.mxu0 0.0
        %507 = vmatpush1.msra.mxu0 0.0
        %508 = vmatprep.subr.mxu0 0.0
        %509 = vmatpush1.msra.mxu0 0.0
        %510 = vmatprep.subr.mxu0 0.0
        %511 = vmatpush1.msra.mxu0 0.0
        %512 = vmatprep.subr.mxu0 0.0
        %513 = vmatpush1.msra.mxu0 0.0
        %514 = vmatprep.subr.mxu0 0.0
        %515 = vmatpush1.msra.mxu0 0.0
        %516 = vmatprep.subr.mxu0 %v484
        %517 = vmatpush1.msra.mxu0 %v481
        %518 = vmatprep.subr.mxu0 0.0
        %519 = vmatpush2.msra.mxu0 0.0
        %520 = vmatprep.subr.mxu0 0.0
        %521 = vmatpush2.msra.mxu0 0.0
        %522 = vmatprep.subr.mxu0 0.0
        %523 = vmatpush2.msra.mxu0 0.0
        %524 = vmatprep.subr.mxu0 0.0
        %525 = vmatpush2.msra.mxu0 0.0
        %526 = vmatprep.subr.mxu0 0.0
        %527 = vmatpush2.msra.mxu0 0.0
        %528 = vmatprep.subr.mxu0 0.0
        %529 = vmatpush2.msra.mxu0 0.0
        %530 = vmatprep.subr.mxu0 0.0
        %531 = vmatpush2.msra.mxu0 0.0
        %532 = vmatprep.subr.mxu0 0.0
        %533 = vmatpush2.msra.mxu0 0.0
        %534 = vmatprep.subr.mxu0 0.0
        %535 = vmatpush2.msra.mxu0 0.0
        %536 = vmatprep.subr.mxu0 0.0
        %537 = vmatpush2.msra.mxu0 0.0
        %538 = vmatprep.subr.mxu0 0.0
        %539 = vmatpush2.msra.mxu0 0.0
        %540 = vmatprep.subr.mxu0 0.0
        %541 = vmatpush2.msra.mxu0 0.0
        %542 = vmatprep.subr.mxu0 0.0
        %543 = vmatpush2.msra.mxu0 0.0
        %544 = vmatprep.subr.mxu0 0.0
        %545 = vmatpush2.msra.mxu0 0.0
        %546 = vmatprep.subr.mxu0 0.0
        %547 = vmatpush2.msra.mxu0 0.0
        %548 = vmatprep.subr.mxu0 0.0
        %549 = vmatpush2.msra.mxu0 0.0
        %550 = vmatprep.mubr.f32.mxu0 0.0
        %551 = vmatmul.mubr.f32.gmra.mxu0 %v478
        %v552 = vpop.f32.mrf.mxu0
        %v553 = vadd.f32 %v473, %v552
        %v554 = vpop.f32.mrf.mxu0
        %v555 = vadd.f32 %v475, %v554
        %556 = vdwg.mxu0
        %557 = vrot.lane.b32.xlu0 %v377, 127
        %v558 = vpop.permute.xlu0 %557
        %559 = vrot.lane.b32.xlu0 %v379, 127
        %v560 = vpop.permute.xlu0 %559
        %vm561 = vcmp.lt.s32.totalorder %v335, 127
        %v562 = vsel %vm561, %v558, %v560
        %v563 = vsel %vm561, %v560, %v558
        %v564 = vsel %vm375, 1, 0
        %v565 = vsel %vm376, 1, 0
        %vm566 = vcmp.eq.s32.totalorder %v564, 1
        %vm567 = vcmp.eq.s32.totalorder %v565, 1
        %v568 = vsel %vm566, %v562, 0.0
        %v569 = vsel %vm567, %v563, 0.0
        %s570 = scalar_lea.vmem %s1, 16
        %v571 = vld [vmem:[%s570] sm:$0xff]
        %v573 = vsel %vm397, %v571, 0
        %v576 = vsel %vm401, %v568, 0
        %v579 = vsel %vm401, %v569, 0
        %581 = vmatprep.subr.mxu0 0.0
        %582 = vmatpush1.msra.mxu0 0.0
        %583 = vmatprep.subr.mxu0 0.0
        %584 = vmatpush1.msra.mxu0 0.0
        %585 = vmatprep.subr.mxu0 0.0
        %586 = vmatpush1.msra.mxu0 0.0
        %587 = vmatprep.subr.mxu0 0.0
        %588 = vmatpush1.msra.mxu0 0.0
        %589 = vmatprep.subr.mxu0 0.0
        %590 = vmatpush1.msra.mxu0 0.0
        %591 = vmatprep.subr.mxu0 0.0
        %592 = vmatpush1.msra.mxu0 0.0
        %593 = vmatprep.subr.mxu0 0.0
        %594 = vmatpush1.msra.mxu0 0.0
        %595 = vmatprep.subr.mxu0 0.0
        %596 = vmatpush1.msra.mxu0 0.0
        %597 = vmatprep.subr.mxu0 0.0
        %598 = vmatpush1.msra.mxu0 0.0
        %599 = vmatprep.subr.mxu0 0.0
        %600 = vmatpush1.msra.mxu0 0.0
        %601 = vmatprep.subr.mxu0 0.0
        %602 = vmatpush1.msra.mxu0 0.0
        %603 = vmatprep.subr.mxu0 0.0
        %604 = vmatpush1.msra.mxu0 0.0
        %605 = vmatprep.subr.mxu0 0.0
        %606 = vmatpush1.msra.mxu0 0.0
        %607 = vmatprep.subr.mxu0 0.0
        %608 = vmatpush1.msra.mxu0 0.0
        %609 = vmatprep.subr.mxu0 0.0
        %610 = vmatpush1.msra.mxu0 0.0
        %611 = vmatprep.subr.mxu0 %v579
        %612 = vmatpush1.msra.mxu0 %v576
        %613 = vmatprep.subr.mxu0 0.0
        %614 = vmatpush2.msra.mxu0 0.0
        %615 = vmatprep.subr.mxu0 0.0
        %616 = vmatpush2.msra.mxu0 0.0
        %617 = vmatprep.subr.mxu0 0.0
        %618 = vmatpush2.msra.mxu0 0.0
        %619 = vmatprep.subr.mxu0 0.0
        %620 = vmatpush2.msra.mxu0 0.0
        %621 = vmatprep.subr.mxu0 0.0
        %622 = vmatpush2.msra.mxu0 0.0
        %623 = vmatprep.subr.mxu0 0.0
        %624 = vmatpush2.msra.mxu0 0.0
        %625 = vmatprep.subr.mxu0 0.0
        %626 = vmatpush2.msra.mxu0 0.0
        %627 = vmatprep.subr.mxu0 0.0
        %628 = vmatpush2.msra.mxu0 0.0
        %629 = vmatprep.subr.mxu0 0.0
        %630 = vmatpush2.msra.mxu0 0.0
        %631 = vmatprep.subr.mxu0 0.0
        %632 = vmatpush2.msra.mxu0 0.0
        %633 = vmatprep.subr.mxu0 0.0
        %634 = vmatpush2.msra.mxu0 0.0
        %635 = vmatprep.subr.mxu0 0.0
        %636 = vmatpush2.msra.mxu0 0.0
        %637 = vmatprep.subr.mxu0 0.0
        %638 = vmatpush2.msra.mxu0 0.0
        %639 = vmatprep.subr.mxu0 0.0
        %640 = vmatpush2.msra.mxu0 0.0
        %641 = vmatprep.subr.mxu0 0.0
        %642 = vmatpush2.msra.mxu0 0.0
        %643 = vmatprep.subr.mxu0 0.0
        %644 = vmatpush2.msra.mxu0 0.0
        %645 = vmatprep.mubr.f32.mxu0 0.0
        %646 = vmatmul.mubr.f32.gmra.mxu0 %v573
        %v647 = vpop.f32.mrf.mxu0
        %v648 = vadd.f32 0.0, %v647
        %v649 = vpop.f32.mrf.mxu0
        %v650 = vadd.f32 0.0, %v649
        %651 = vdwg.mxu0
        %v652 = vadd.f32 %v553, %v648
        %v653 = vadd.f32 %v555, %v650
        %v654 = vld [vmem:[%s5] sm:$0xff]
        %656 = vset.pattern.permute.xlu0 0
        %657 = vperm.xlu0 %656, %v654
        %v658 = vpop.permute.xlu0 %657
        %v660 = vmul.f32 %v652, %v658
        %v661 = vmul.f32 %v653, %v658
        %v662 = vld [vmem:[%s6] sm:$0xff]
        %664 = vset.pattern.permute.xlu0 0
        %665 = vperm.xlu0 %664, %v662
        %v666 = vpop.permute.xlu0 %665
        %v668 = vadd.f32 %v660, %v666
        %v669 = vadd.f32 %v661, %v666
        %v670 = vmax.f32 %v668, 0.0
        %v671 = vmax.f32 %v669, 0.0
        %672 = vrot.lane.b32.xlu0 %v670, 1
        %v673 = vpop.permute.xlu0 %672
        %674 = vrot.lane.b32.xlu0 %v671, 1
        %v675 = vpop.permute.xlu0 %674
        %v676 = vsel %vm385, %v673, %v675
        %v677 = vsel %vm385, %v675, %v673
        %v678 = vsel %vm390, %v677, 0.0
        %v679 = vsel %vm391, %v676, 0.0
        %v680 = vld [vmem:[%s2] sm:$0xff]
        %s681 = scalar_lea.vmem %s2, 8
        %v682 = vld [vmem:[%s681] sm:$0xff]
        %vm683 = vcmask 64512
        %v685 = vsel %vm683, %v682, 0
        %687 = vmatprep.subr.mxu0 0.0
        %688 = vmatpush1.msra.mxu0 0.0
        %689 = vmatprep.subr.mxu0 0.0
        %690 = vmatpush1.msra.mxu0 0.0
        %691 = vmatprep.subr.mxu0 0.0
        %692 = vmatpush1.msra.mxu0 0.0
        %693 = vmatprep.subr.mxu0 0.0
        %694 = vmatpush1.msra.mxu0 0.0
        %695 = vmatprep.subr.mxu0 0.0
        %696 = vmatpush1.msra.mxu0 0.0
        %697 = vmatprep.subr.mxu0 0.0
        %698 = vmatpush1.msra.mxu0 0.0
        %699 = vmatprep.subr.mxu0 0.0
        %700 = vmatpush1.msra.mxu0 0.0
        %701 = vmatprep.subr.mxu0 0.0
        %702 = vmatpush1.msra.mxu0 0.0
        %703 = vmatprep.subr.mxu0 0.0
        %704 = vmatpush1.msra.mxu0 0.0
        %705 = vmatprep.subr.mxu0 0.0
        %706 = vmatpush1.msra.mxu0 0.0
        %707 = vmatprep.subr.mxu0 0.0
        %708 = vmatpush1.msra.mxu0 0.0
        %709 = vmatprep.subr.mxu0 0.0
        %710 = vmatpush1.msra.mxu0 0.0
        %711 = vmatprep.subr.mxu0 0.0
        %712 = vmatpush1.msra.mxu0 0.0
        %713 = vmatprep.subr.mxu0 0.0
        %714 = vmatpush1.msra.mxu0 0.0
        %715 = vmatprep.subr.mxu0 0.0
        %716 = vmatpush1.msra.mxu0 0.0
        %717 = vmatprep.subr.mxu0 %v671
        %718 = vmatpush1.msra.mxu0 %v670
        %719 = vmatprep.subr.mxu0 0.0
        %720 = vmatpush2.msra.mxu0 0.0
        %721 = vmatprep.subr.mxu0 0.0
        %722 = vmatpush2.msra.mxu0 0.0
        %723 = vmatprep.subr.mxu0 0.0
        %724 = vmatpush2.msra.mxu0 0.0
        %725 = vmatprep.subr.mxu0 0.0
        %726 = vmatpush2.msra.mxu0 0.0
        %727 = vmatprep.subr.mxu0 0.0
        %728 = vmatpush2.msra.mxu0 0.0
        %729 = vmatprep.subr.mxu0 0.0
        %730 = vmatpush2.msra.mxu0 0.0
        %731 = vmatprep.subr.mxu0 0.0
        %732 = vmatpush2.msra.mxu0 0.0
        %733 = vmatprep.subr.mxu0 0.0
        %734 = vmatpush2.msra.mxu0 0.0
        %735 = vmatprep.subr.mxu0 0.0
        %736 = vmatpush2.msra.mxu0 0.0
        %737 = vmatprep.subr.mxu0 0.0
        %738 = vmatpush2.msra.mxu0 0.0
        %739 = vmatprep.subr.mxu0 0.0
        %740 = vmatpush2.msra.mxu0 0.0
        %741 = vmatprep.subr.mxu0 0.0
        %742 = vmatpush2.msra.mxu0 0.0
        %743 = vmatprep.subr.mxu0 0.0
        %744 = vmatpush2.msra.mxu0 0.0
        %745 = vmatprep.subr.mxu0 0.0
        %746 = vmatpush2.msra.mxu0 0.0
        %747 = vmatprep.subr.mxu0 0.0
        %748 = vmatpush2.msra.mxu0 0.0
        %749 = vmatprep.subr.mxu0 0.0
        %750 = vmatpush2.msra.mxu0 0.0
        %751 = vmatprep.mubr.f32.mxu0 0.0
        %752 = vmatmul.mubr.f32.gmra.mxu0 %v685
        %v753 = vpop.f32.mrf.mxu0
        %v754 = vadd.f32 0.0, %v753
        %v755 = vpop.f32.mrf.mxu0
        %v756 = vadd.f32 0.0, %v755
        %757 = vdwg.mxu0
        %v759 = vsel %vm683, %v680, 0
        %761 = vmatprep.subr.mxu0 0.0
        %762 = vmatpush1.msra.mxu0 0.0
        %763 = vmatprep.subr.mxu0 0.0
        %764 = vmatpush1.msra.mxu0 0.0
        %765 = vmatprep.subr.mxu0 0.0
        %766 = vmatpush1.msra.mxu0 0.0
        %767 = vmatprep.subr.mxu0 0.0
        %768 = vmatpush1.msra.mxu0 0.0
        %769 = vmatprep.subr.mxu0 0.0
        %770 = vmatpush1.msra.mxu0 0.0
        %771 = vmatprep.subr.mxu0 0.0
        %772 = vmatpush1.msra.mxu0 0.0
        %773 = vmatprep.subr.mxu0 0.0
        %774 = vmatpush1.msra.mxu0 0.0
        %775 = vmatprep.subr.mxu0 0.0
        %776 = vmatpush1.msra.mxu0 0.0
        %777 = vmatprep.subr.mxu0 0.0
        %778 = vmatpush1.msra.mxu0 0.0
        %779 = vmatprep.subr.mxu0 0.0
        %780 = vmatpush1.msra.mxu0 0.0
        %781 = vmatprep.subr.mxu0 0.0
        %782 = vmatpush1.msra.mxu0 0.0
        %783 = vmatprep.subr.mxu0 0.0
        %784 = vmatpush1.msra.mxu0 0.0
        %785 = vmatprep.subr.mxu0 0.0
        %786 = vmatpush1.msra.mxu0 0.0
        %787 = vmatprep.subr.mxu0 0.0
        %788 = vmatpush1.msra.mxu0 0.0
        %789 = vmatprep.subr.mxu0 0.0
        %790 = vmatpush1.msra.mxu0 0.0
        %791 = vmatprep.subr.mxu0 %v679
        %792 = vmatpush1.msra.mxu0 %v678
        %793 = vmatprep.subr.mxu0 0.0
        %794 = vmatpush2.msra.mxu0 0.0
        %795 = vmatprep.subr.mxu0 0.0
        %796 = vmatpush2.msra.mxu0 0.0
        %797 = vmatprep.subr.mxu0 0.0
        %798 = vmatpush2.msra.mxu0 0.0
        %799 = vmatprep.subr.mxu0 0.0
        %800 = vmatpush2.msra.mxu0 0.0
        %801 = vmatprep.subr.mxu0 0.0
        %802 = vmatpush2.msra.mxu0 0.0
        %803 = vmatprep.subr.mxu0 0.0
        %804 = vmatpush2.msra.mxu0 0.0
        %805 = vmatprep.subr.mxu0 0.0
        %806 = vmatpush2.msra.mxu0 0.0
        %807 = vmatprep.subr.mxu0 0.0
        %808 = vmatpush2.msra.mxu0 0.0
        %809 = vmatprep.subr.mxu0 0.0
        %810 = vmatpush2.msra.mxu0 0.0
        %811 = vmatprep.subr.mxu0 0.0
        %812 = vmatpush2.msra.mxu0 0.0
        %813 = vmatprep.subr.mxu0 0.0
        %814 = vmatpush2.msra.mxu0 0.0
        %815 = vmatprep.subr.mxu0 0.0
        %816 = vmatpush2.msra.mxu0 0.0
        %817 = vmatprep.subr.mxu0 0.0
        %818 = vmatpush2.msra.mxu0 0.0
        %819 = vmatprep.subr.mxu0 0.0
        %820 = vmatpush2.msra.mxu0 0.0
        %821 = vmatprep.subr.mxu0 0.0
        %822 = vmatpush2.msra.mxu0 0.0
        %823 = vmatprep.subr.mxu0 0.0
        %824 = vmatpush2.msra.mxu0 0.0
        %825 = vmatprep.mubr.f32.mxu0 0.0
        %826 = vmatmul.mubr.f32.gmra.mxu0 %v759
        %v827 = vpop.f32.mrf.mxu0
        %v828 = vadd.f32 %v754, %v827
        %v829 = vpop.f32.mrf.mxu0
        %v830 = vadd.f32 %v756, %v829
        %831 = vdwg.mxu0
        %832 = vrot.lane.b32.xlu0 %v670, 127
        %v833 = vpop.permute.xlu0 %832
        %834 = vrot.lane.b32.xlu0 %v671, 127
        %v835 = vpop.permute.xlu0 %834
        %v836 = vsel %vm561, %v833, %v835
        %v837 = vsel %vm561, %v835, %v833
        %v838 = vsel %vm566, %v836, 0.0
        %v839 = vsel %vm567, %v837, 0.0
        %s840 = scalar_lea.vmem %s2, 16
        %v841 = vld [vmem:[%s840] sm:$0xff]
        %v843 = vsel %vm683, %v841, 0
        %845 = vmatprep.subr.mxu0 0.0
        %846 = vmatpush1.msra.mxu0 0.0
        %847 = vmatprep.subr.mxu0 0.0
        %848 = vmatpush1.msra.mxu0 0.0
        %849 = vmatprep.subr.mxu0 0.0
        %850 = vmatpush1.msra.mxu0 0.0
        %851 = vmatprep.subr.mxu0 0.0
        %852 = vmatpush1.msra.mxu0 0.0
        %853 = vmatprep.subr.mxu0 0.0
        %854 = vmatpush1.msra.mxu0 0.0
        %855 = vmatprep.subr.mxu0 0.0
        %856 = vmatpush1.msra.mxu0 0.0
        %857 = vmatprep.subr.mxu0 0.0
        %858 = vmatpush1.msra.mxu0 0.0
        %859 = vmatprep.subr.mxu0 0.0
        %860 = vmatpush1.msra.mxu0 0.0
        %861 = vmatprep.subr.mxu0 0.0
        %862 = vmatpush1.msra.mxu0 0.0
        %863 = vmatprep.subr.mxu0 0.0
        %864 = vmatpush1.msra.mxu0 0.0
        %865 = vmatprep.subr.mxu0 0.0
        %866 = vmatpush1.msra.mxu0 0.0
        %867 = vmatprep.subr.mxu0 0.0
        %868 = vmatpush1.msra.mxu0 0.0
        %869 = vmatprep.subr.mxu0 0.0
        %870 = vmatpush1.msra.mxu0 0.0
        %871 = vmatprep.subr.mxu0 0.0
        %872 = vmatpush1.msra.mxu0 0.0
        %873 = vmatprep.subr.mxu0 0.0
        %874 = vmatpush1.msra.mxu0 0.0
        %875 = vmatprep.subr.mxu0 %v839
        %876 = vmatpush1.msra.mxu0 %v838
        %877 = vmatprep.subr.mxu0 0.0
        %878 = vmatpush2.msra.mxu0 0.0
        %879 = vmatprep.subr.mxu0 0.0
        %880 = vmatpush2.msra.mxu0 0.0
        %881 = vmatprep.subr.mxu0 0.0
        %882 = vmatpush2.msra.mxu0 0.0
        %883 = vmatprep.subr.mxu0 0.0
        %884 = vmatpush2.msra.mxu0 0.0
        %885 = vmatprep.subr.mxu0 0.0
        %886 = vmatpush2.msra.mxu0 0.0
        %887 = vmatprep.subr.mxu0 0.0
        %888 = vmatpush2.msra.mxu0 0.0
        %889 = vmatprep.subr.mxu0 0.0
        %890 = vmatpush2.msra.mxu0 0.0
        %891 = vmatprep.subr.mxu0 0.0
        %892 = vmatpush2.msra.mxu0 0.0
        %893 = vmatprep.subr.mxu0 0.0
        %894 = vmatpush2.msra.mxu0 0.0
        %895 = vmatprep.subr.mxu0 0.0
        %896 = vmatpush2.msra.mxu0 0.0
        %897 = vmatprep.subr.mxu0 0.0
        %898 = vmatpush2.msra.mxu0 0.0
        %899 = vmatprep.subr.mxu0 0.0
        %900 = vmatpush2.msra.mxu0 0.0
        %901 = vmatprep.subr.mxu0 0.0
        %902 = vmatpush2.msra.mxu0 0.0
        %903 = vmatprep.subr.mxu0 0.0
        %904 = vmatpush2.msra.mxu0 0.0
        %905 = vmatprep.subr.mxu0 0.0
        %906 = vmatpush2.msra.mxu0 0.0
        %907 = vmatprep.subr.mxu0 0.0
        %908 = vmatpush2.msra.mxu0 0.0
        %909 = vmatprep.mubr.f32.mxu0 0.0
        %910 = vmatmul.mubr.f32.gmra.mxu0 %v843
        %v911 = vpop.f32.mrf.mxu0
        %v912 = vadd.f32 0.0, %v911
        %v913 = vpop.f32.mrf.mxu0
        %v914 = vadd.f32 0.0, %v913
        %915 = vdwg.mxu0
        %v916 = vadd.f32 %v828, %v912
        %v917 = vadd.f32 %v830, %v914
        %v918 = vld [vmem:[%s7] sm:$0xff]
        %920 = vset.pattern.permute.xlu0 0
        %921 = vperm.xlu0 %920, %v918
        %v922 = vpop.permute.xlu0 %921
        %v924 = vmul.f32 %v916, %v922
        %v925 = vmul.f32 %v917, %v922
        %v926 = vld [vmem:[%s8] sm:$0xff]
        %928 = vset.pattern.permute.xlu0 0
        %929 = vperm.xlu0 %928, %v926
        %v930 = vpop.permute.xlu0 %929
        %v932 = vadd.f32 %v924, %v930
        %v933 = vadd.f32 %v925, %v930
        %v934 = vld [vmem:[%s3] sm:$0xff]
        %v935 = vld [vmem:[%s4] sm:$0xff]
        %937 = vset.pattern.permute.xlu0 0
        %938 = vperm.xlu0 %937, %v935
        %v939 = vpop.permute.xlu0 %938
        %v942 = vsel %vm397, %v934, 0
        %944 = vmatprep.subr.mxu0 0.0
        %945 = vmatpush1.msra.mxu0 0.0
        %946 = vmatprep.subr.mxu0 0.0
        %947 = vmatpush1.msra.mxu0 0.0
        %948 = vmatprep.subr.mxu0 0.0
        %949 = vmatpush1.msra.mxu0 0.0
        %950 = vmatprep.subr.mxu0 0.0
        %951 = vmatpush1.msra.mxu0 0.0
        %952 = vmatprep.subr.mxu0 0.0
        %953 = vmatpush1.msra.mxu0 0.0
        %954 = vmatprep.subr.mxu0 0.0
        %955 = vmatpush1.msra.mxu0 0.0
        %956 = vmatprep.subr.mxu0 0.0
        %957 = vmatpush1.msra.mxu0 0.0
        %958 = vmatprep.subr.mxu0 0.0
        %959 = vmatpush1.msra.mxu0 0.0
        %960 = vmatprep.subr.mxu0 0.0
        %961 = vmatpush1.msra.mxu0 0.0
        %962 = vmatprep.subr.mxu0 0.0
        %963 = vmatpush1.msra.mxu0 0.0
        %964 = vmatprep.subr.mxu0 0.0
        %965 = vmatpush1.msra.mxu0 0.0
        %966 = vmatprep.subr.mxu0 0.0
        %967 = vmatpush1.msra.mxu0 0.0
        %968 = vmatprep.subr.mxu0 0.0
        %969 = vmatpush1.msra.mxu0 0.0
        %970 = vmatprep.subr.mxu0 0.0
        %971 = vmatpush1.msra.mxu0 0.0
        %972 = vmatprep.subr.mxu0 0.0
        %973 = vmatpush1.msra.mxu0 0.0
        %974 = vmatprep.subr.mxu0 %v404
        %975 = vmatpush1.msra.mxu0 %v402
        %976 = vmatprep.subr.mxu0 0.0
        %977 = vmatpush2.msra.mxu0 0.0
        %978 = vmatprep.subr.mxu0 0.0
        %979 = vmatpush2.msra.mxu0 0.0
        %980 = vmatprep.subr.mxu0 0.0
        %981 = vmatpush2.msra.mxu0 0.0
        %982 = vmatprep.subr.mxu0 0.0
        %983 = vmatpush2.msra.mxu0 0.0
        %984 = vmatprep.subr.mxu0 0.0
        %985 = vmatpush2.msra.mxu0 0.0
        %986 = vmatprep.subr.mxu0 0.0
        %987 = vmatpush2.msra.mxu0 0.0
        %988 = vmatprep.subr.mxu0 0.0
        %989 = vmatpush2.msra.mxu0 0.0
        %990 = vmatprep.subr.mxu0 0.0
        %991 = vmatpush2.msra.mxu0 0.0
        %992 = vmatprep.subr.mxu0 0.0
        %993 = vmatpush2.msra.mxu0 0.0
        %994 = vmatprep.subr.mxu0 0.0
        %995 = vmatpush2.msra.mxu0 0.0
        %996 = vmatprep.subr.mxu0 0.0
        %997 = vmatpush2.msra.mxu0 0.0
        %998 = vmatprep.subr.mxu0 0.0
        %999 = vmatpush2.msra.mxu0 0.0
        %1000 = vmatprep.subr.mxu0 0.0
        %1001 = vmatpush2.msra.mxu0 0.0
        %1002 = vmatprep.subr.mxu0 0.0
        %1003 = vmatpush2.msra.mxu0 0.0
        %1004 = vmatprep.subr.mxu0 0.0
        %1005 = vmatpush2.msra.mxu0 0.0
        %1006 = vmatprep.subr.mxu0 0.0
        %1007 = vmatpush2.msra.mxu0 0.0
        %1008 = vmatprep.mubr.f32.mxu0 0.0
        %1009 = vmatmul.mubr.f32.gmra.mxu0 %v942
        %v1010 = vpop.f32.mrf.mxu0
        %v1011 = vadd.f32 %v939, %v1010
        %v1012 = vpop.f32.mrf.mxu0
        %v1013 = vadd.f32 %v939, %v1012
        %1014 = vdwg.mxu0
        %v1015 = vadd.f32 %v932, %v1011
        %v1016 = vadd.f32 %v933, %v1013
        %v1017 = vmax.f32 %v1015, 0.0
        %v1018 = vmax.f32 %v1016, 0.0
        %1019 = vst [vmem:[%s326] sm:$0xff] %v1017
        %1020 = vst [vmem:[%s326 + $0x8] sm:$0xff] %v1018
        %s1021 = sand.u32 %s225, 1
        %s1022 = scalar_lea.sflag [#allocation3], %s1021
        %s1023 = sand.u32 %s225, 1
        %s1024 = smul.addr %s1023, 16
        %s1025 = scalar_lea.vmem [#allocation2], %s1024
        // Predicated region
        $region57: #{stack_conv_block.5} parent=55 // pred_check
          %p1026 = pneg %p235
        $region58: #{stack_conv_block.5} parent=55 // pred_check_branch
          %1028 = sbr.rel (%p1026) target = $region60
        $region59: #{stack_conv_block.5} parent=55 // pred_region
          %s1029 = smul.u32 2, %s23
          %s1031 = ssub.s32 256, 256
          %1032 = vsyncadd %s1022, %s1031
          %s1033 = smul.addr %s1029, 128
          %s1034 = scalar_lea.hbm %s9, %s1033
          %s1036 = sshll.u32 %s1025, 4
          %s1037 = int_to_ptr.vmem [resolvable:$true] %s1036
          %1039 = dma.vmem_to_hbm [thread:$0]  %s1037, 256, %s1034, %s1022
        $region60: #{stack_conv_block.5} parent=55 // pred_fallthru
          _
      $region56: #{stack_conv_block.5} parent=5 // pred_fallthru
        _
      %p1040 = scmp.le.s32.totalorder 2, %s18
      // Predicated region
      $region61: #{stack_conv_block.5} parent=5 // pred_check
        %p1041 = pneg %p1040
      $region62: #{stack_conv_block.5} parent=5 // pred_check_branch
        %1043 = sbr.rel (%p1041) target = $region64
      $region63: #{stack_conv_block.5} parent=5 // pred_region
        %s1044 = ssub.s32 %s18, 2
        // Predicated region
        $region65: #{stack_conv_block.5} parent=63 // pred_check
          %p1045 = pneg %p241
        $region66: #{stack_conv_block.5} parent=63 // pred_check_branch
          %1047 = sbr.rel (%p1045) target = $region68
        $region67: #{stack_conv_block.5} parent=63 // pred_region
          %s1048 = sand.u32 %s226, 1
          %s1049 = scalar_lea.sflag [#allocation3], %s1048
          %s1050 = sand.u32 %s226, 1
          %s1051 = smul.addr %s1050, 16
          %s1052 = scalar_lea.vmem [#allocation2], %s1051
          %1053 = dma.done %s1049, 256
        $region68: #{stack_conv_block.5} parent=63 // pred_fallthru
          _
      $region64: #{stack_conv_block.5} parent=5 // pred_fallthru
        _
    $region6: #{stack_conv_block.5} parent=1 // loop_footer
      %s22 = sadd.s32 1, %s18
    $region7: #{stack_conv_block.5} parent=1 // loop_footer_branch
      %17 = sbr.rel target = $region3
    $region8: #{stack_conv_block.5} parent=1 // loop_exit
      _
    %1054 = vsyncpa [#allocation3], 1
    %s1055 = scalar_lea.sflag [#allocation3], 1
    %1056 = vsyncpa %s1055, 1

</llo_original>
